<compile_context>
chip_gen: v7x
topology: tpu7x:2x2x1
jax: 0.10.0
libtpu: 0.0.40
codegen_flags: <defaults>
</compile_context>

<pallas_src>
import functools

import jax
import jax.numpy as jnp
from jax.experimental import pallas as pl
from jax.experimental.pallas import tpu as pltpu


_MASK_VALUE = -1e30   # big finite negative: safe with online softmax


def _rms_norm(x, w, eps):
    ms = jnp.mean(x * x, axis=-1, keepdims=True)
    return x * jax.lax.rsqrt(ms + eps) * w


def block_kernel(x_ref, ln1_ref, ln2_ref, wqkv_ref, bqkv_ref, wo_ref, bo_ref,
                 w13_ref, w2_ref, o_ref, qkv_sc, *, num_heads, eps):
    """One (batch, q-tile) grid step of the fused Block forward.

    qkv_sc is a persistent VMEM scratch of shape (num_q_tiles, tq, 3D) bf16.
    Tile `qi` is written here at grid step (b, qi); causality guarantees that
    step (b, qi) only ever reads kv tiles t <= qi, which were written at
    earlier (or the current) step of the same batch element.  The q-tile grid
    axis is therefore marked "arbitrary" (sequential); the batch axis is
    "parallel" (each core keeps its own scratch).
    """
    qi = pl.program_id(1)
    tq, D = x_ref.shape[1], x_ref.shape[2]
    hd = D // num_heads
    F = 4 * D

    # Residual stream in f32 for this q-tile.
    x_tile = x_ref[0].astype(jnp.float32)                        # (tq, D)

    # ---------------- ln1 + fused QKV projection (this tile only) -----------
    xn = _rms_norm(x_tile, ln1_ref[...].astype(jnp.float32), eps)
    qkv = jnp.dot(xn.astype(jnp.bfloat16), wqkv_ref[...],
                  preferred_element_type=jnp.float32) + bqkv_ref[...]   # (tq, 3D)
    qkv_sc[qi] = qkv.astype(jnp.bfloat16)                        # stash for later q-tiles

    r0 = pl.multiple_of(qi * tq, tq)
    row_g = r0 + jax.lax.broadcasted_iota(jnp.int32, (tq, tq), 0)
    col_l = jax.lax.broadcasted_iota(jnp.int32, (tq, tq), 1)

    # ---------------- causal multi-head attention (flash over KV tiles) -----
    attn = jnp.zeros((tq, D), jnp.float32)
    # TODO(synk): for num_heads >= ~8, switch this unrolled Python loop to a
    # fori_loop over heads to bound unrolled live ranges / vreg pressure.
    for h in range(num_heads):
        q_h = qkv_sc[qi, :, h * hd:(h + 1) * hd]                  # (tq, hd) bf16

        def kv_step(t, carry, q_h=q_h, h=h):
            m, l, acc = carry
            c0 = pl.multiple_of(t * tq, tq)
            k_h = qkv_sc[t, :, D + h * hd:D + (h + 1) * hd]       # (tq, hd) bf16
            v_h = qkv_sc[t, :, 2 * D + h * hd:2 * D + (h + 1) * hd]
            # q @ k^T without materializing a transpose.
            s = jax.lax.dot_general(q_h, k_h, (((1,), (1,)), ((), ())),
                                    preferred_element_type=jnp.float32)  # (tq, tq)
            s = jnp.where(row_g >= c0 + col_l, s, _MASK_VALUE)
            m_new = jnp.maximum(m, jnp.max(s, axis=-1, keepdims=True))
            alpha = jnp.exp(m - m_new)
            # exp in bf16: uses the EUP bf16 rate on v6e/v7x (v5e extends to
            # f32 internally); p is then already bf16 for the PV matmul.
            p = jnp.exp((s - m_new).astype(jnp.bfloat16))
            l = alpha * l + jnp.sum(p.astype(jnp.float32), axis=-1, keepdims=True)
            acc = alpha * acc + jnp.dot(p, v_h, preferred_element_type=jnp.float32)
            return m_new, l, acc

        m0 = jnp.full((tq, 1), -jnp.inf, jnp.float32)
        l0 = jnp.zeros((tq, 1), jnp.float32)
        a0 = jnp.zeros((tq, hd), jnp.float32)
        # Causality: only kv tiles 0..qi are needed.
        _, l, acc = jax.lax.fori_loop(0, qi + 1, kv_step, (m0, l0, a0))

        o_h = acc * pl.reciprocal(l, approx=True)                 # (tq, hd) f32
        # Fold the per-head output straight into the output projection
        # (sublane-aligned weight row-slice) -> no narrow masked column stores.
        attn = attn + jnp.dot(o_h.astype(jnp.bfloat16),
                              wo_ref[h * hd:(h + 1) * hd, :],
                              preferred_element_type=jnp.float32)
    attn = attn + bo_ref[...]

    x_mid = x_tile + attn

    # ---------------- ln2 + SwiGLU MLP (W1 | W3 fused) ----------------------
    xn2 = _rms_norm(x_mid, ln2_ref[...].astype(jnp.float32), eps)
    h13 = jnp.dot(xn2.astype(jnp.bfloat16), w13_ref[...],
                  preferred_element_type=jnp.float32)             # (tq, 8D)
    h1 = h13[:, :F]
    h3 = h13[:, F:]
    hidden = (h1 * jax.nn.sigmoid(h1)) * h3                       # silu(w1 x) * (w3 x)
    ff = jnp.dot(hidden.astype(jnp.bfloat16), w2_ref[...],
                 preferred_element_type=jnp.float32)

    o_ref[0] = (x_mid + ff).astype(o_ref.dtype)


def _pick_q_tile(T, target=256):
    """Largest multiple-of-8 divisor of T that is <= target (MXU-friendly)."""
    if T <= target:
        return T
    best = None
    for cand in range(8, target + 1, 8):
        if T % cand == 0:
            best = cand
    return best if best is not None else T


def _vmem_limit_bytes():
    # Derive the scoped-VMEM hint from the hardware (64 MiB/TC on v7x,
    # 128 MiB on v5e/v6e) and keep headroom for compiler-internal scratch.
    try:
        cap = int(pltpu.get_tpu_info().vmem_capacity_bytes)
    except Exception:
        cap = 64 * 1024 * 1024
    return int(min((cap * 3) // 4, 100 * 1024 * 1024))


def block_forward(x, params, num_heads, *, q_tile=None, single_buffer_weights=True):
    """Fused Block forward.  Expects params built by init_params (the attention
    scale is pre-folded into the Q columns of wqkv_t / bqkv)."""
    B, T, D = x.shape
    tq = _pick_q_tile(T) if q_tile is None else q_tile
    assert T % tq == 0, "sequence length must be divisible by the q-tile"
    nq = T // tq

    kernel = functools.partial(block_kernel, num_heads=num_heads, eps=1e-6)

    # Grid-invariant weight blocks: single-buffer them (their index_map is
    # constant), halving resident weight VMEM.
    wkw = dict(pipeline_mode=pl.Buffered(buffer_count=1)) if single_buffer_weights else {}

    def wspec(shape):
        return pl.BlockSpec(shape, lambda b, q: (0, 0), **wkw)

    def cspec(shape):   # small grid-invariant vectors (default buffering)
        return pl.BlockSpec(shape, lambda b, q: (0, 0))

    in_specs = [
        pl.BlockSpec((1, tq, D), lambda b, q: (b, q, 0)),   # x (q-tile of rows)
        cspec((1, D)), cspec((1, D)),                       # ln1, ln2 (f32)
        wspec((D, 3 * D)), cspec((1, 3 * D)),               # Wqkv^T (bf16, scale folded), bqkv
        wspec((D, D)), cspec((1, D)),                       # Wo^T (bf16), bo
        wspec((D, 8 * D)),                                  # [W1^T | W3^T] (bf16)
        wspec((4 * D, D)),                                  # W2^T (bf16)
    ]
    out_spec = pl.BlockSpec((1, tq, D), lambda b, q: (b, q, 0))

    # Advisory cost hint for XLA scheduling.
    flops = B * (2 * T * D * (3 * D + D + 8 * D + 4 * D) + 4 * T * T * D)
    trans = B * (num_heads * T * T + T * 4 * D + 2 * T)
    weight_bytes = (3 * D * D + D * D + 8 * D * D + 4 * D * D) * 2 + (4 * D) * 4 + 2 * D * 4
    bytes_acc = weight_bytes + 2 * B * T * D * x.dtype.itemsize

    return pl.pallas_call(
        kernel,
        out_shape=jax.ShapeDtypeStruct((B, T, D), x.dtype),
        grid_spec=pltpu.PrefetchScalarGridSpec(
            num_scalar_prefetch=0, grid=(B, nq),
            in_specs=in_specs, out_specs=out_spec,
            scratch_shapes=[pltpu.VMEM((nq, tq, 3 * D), jnp.bfloat16)]),
        compiler_params=pltpu.CompilerParams(
            # q-tile axis must stay sequential: tile qi's QKV (written at step
            # qi) is re-read as K/V by later q-tiles of the same batch element.
            dimension_semantics=("parallel", "arbitrary"),
            vmem_limit_bytes=_vmem_limit_bytes()),
        cost_estimate=pl.CostEstimate(flops=flops, transcendentals=trans,
                                      bytes_accessed=bytes_acc),
    )(x, params["ln1"], params["ln2"], params["wqkv_t"], params["bqkv"],
      params["wo_t"], params["bo"], params["w13_t"], params["w2_t"])


def init_params(key, n_heads, n_embd):
    D = n_embd
    hd = D // n_heads
    ks = jax.random.split(key, 7)
    wqkv = jax.random.normal(ks[0], (3 * D, D), jnp.float32) * 0.02
    bqkv = jax.random.normal(ks[1], (3 * D,), jnp.float32) * 0.02
    wo = jax.random.normal(ks[2], (D, D), jnp.float32) * 0.02
    bo = jax.random.normal(ks[3], (D,), jnp.float32) * 0.02
    w1 = jax.random.normal(ks[4], (4 * D, D), jnp.float32) * 0.02
    w2 = jax.random.normal(ks[5], (D, 4 * D), jnp.float32) * 0.02
    w3 = jax.random.normal(ks[6], (4 * D, D), jnp.float32) * 0.02
    ln1 = jnp.ones((D,), jnp.float32)
    ln2 = jnp.ones((D,), jnp.float32)

    # Torch packs qkv output columns as (head, {q,k,v}, head_dim); regroup to
    # ({q,k,v}, head, head_dim) so the kernel slices contiguous Q/K/V blocks.
    wqkv_t = wqkv.T.reshape(D, n_heads, 3, hd).transpose(0, 2, 1, 3).reshape(D, 3 * D)
    bqkv_g = bqkv.reshape(n_heads, 3, hd).transpose(1, 0, 2).reshape(3 * D)
    # Fold the attention scale (embed_dim ** -0.5, matching the reference
    # FlashAttention module) into the Q projection: zero in-kernel cost.
    scale = float(D) ** (-0.5)
    col_scale = jnp.concatenate([jnp.full((D,), scale, jnp.float32),
                                 jnp.ones((2 * D,), jnp.float32)])
    wqkv_t = wqkv_t * col_scale[None, :]
    bqkv_g = bqkv_g * col_scale
    # Fuse W1 / W3 into a single up-projection weight.
    w13_t = jnp.concatenate([w1.T, w3.T], axis=1)       # (D, 8D)

    return dict(
        ln1=ln1.reshape(1, D), ln2=ln2.reshape(1, D),
        wqkv_t=wqkv_t.astype(jnp.bfloat16), bqkv=bqkv_g.reshape(1, 3 * D),
        wo_t=wo.T.astype(jnp.bfloat16), bo=bo.reshape(1, D),
        w13_t=w13_t.astype(jnp.bfloat16), w2_t=w2.T.astype(jnp.bfloat16),
        raw=dict(wqkv=wqkv, bqkv=bqkv, wo=wo, bo=bo, w1=w1, w2=w2, w3=w3,
                 ln1=ln1, ln2=ln2))


def reference_block(x, params, n_heads):
    """Pure-JAX (f32) mirror of the PyTorch forward (inference, no dropout)."""
    p = params["raw"]
    B, T, D = x.shape
    hd = D // n_heads
    scale = float(D) ** (-0.5)
    eps = 1e-6

    def rms(v, w):
        return v * jax.lax.rsqrt(jnp.mean(v * v, -1, keepdims=True) + eps) * w

    xn = rms(x, p["ln1"])
    qkv = xn @ p["wqkv"].T + p["bqkv"]                  # (B, T, 3D)
    qkv = qkv.reshape(B, T, n_heads, 3, hd)
    q, k, v = qkv[..., 0, :], qkv[..., 1, :], qkv[..., 2, :]
    q, k, v = [jnp.transpose(t, (0, 2, 1, 3)) for t in (q, k, v)]  # (B, H, T, hd)

    s = jnp.einsum("bhqd,bhkd->bhqk", q, k) * scale
    mask = jnp.tril(jnp.ones((T, T), bool))
    s = jnp.where(mask, s, -jnp.inf)
    prob = jax.nn.softmax(s, axis=-1)
    attn = jnp.einsum("bhqk,bhkd->bhqd", prob, v)
    attn = jnp.transpose(attn, (0, 2, 1, 3)).reshape(B, T, D)
    x = x + (attn @ p["wo"].T + p["bo"])

    xn2 = rms(x, p["ln2"])
    h1 = xn2 @ p["w1"].T
    h3 = xn2 @ p["w3"].T
    ff = (jax.nn.silu(h1) * h3) @ p["w2"].T
    return x + ff


if __name__ == "__main__":
    B, T, D, H = 2, 8, 32, 4
    key = jax.random.PRNGKey(0)
    kx, kp = jax.random.split(key)
    x = jax.random.normal(kx, (B, T, D), jnp.float32)
    params = init_params(kp, H, D)

    try:
        out = jax.block_until_ready(block_forward(x, params, H))
    except Exception:
        # Fallback if this JAX build rejects pipeline_mode=pl.Buffered(1):
        # identical kernel, default (double) buffering on the weights.
        out = jax.block_until_ready(
            block_forward(x, params, H, single_buffer_weights=False))

    ref = reference_block(x, params, H)
    assert out.shape == (B, T, D)
    # bf16 matmul operands + bf16 exp + approx reciprocal -> loose tolerance.
    assert jnp.allclose(out, ref, atol=2e-2, rtol=2e-2), (
        float(jnp.max(jnp.abs(out - ref))))
    print("KERNEL_OK")
</pallas_src>

<mosaic_0001>
module attributes {stable_mosaic.version = 11 : i64} {
  func.func @block_kernel(%arg0: i32, %arg1: i32, %arg2: memref<1x8x32xf32, #tpu.memory_space<vmem>>, %arg3: memref<1x32xf32, #tpu.memory_space<vmem>>, %arg4: memref<1x32xf32, #tpu.memory_space<vmem>>, %arg5: memref<32x96xbf16, #tpu.memory_space<vmem>>, %arg6: memref<1x96xf32, #tpu.memory_space<vmem>>, %arg7: memref<32x32xbf16, #tpu.memory_space<vmem>>, %arg8: memref<1x32xf32, #tpu.memory_space<vmem>>, %arg9: memref<32x256xbf16, #tpu.memory_space<vmem>>, %arg10: memref<128x32xbf16, #tpu.memory_space<vmem>>, %arg11: memref<1x8x32xf32, #tpu.memory_space<vmem>>, %arg12: memref<1x8x96xbf16, #tpu.memory_space<vmem>>) attributes {dimension_semantics = [#tpu.dimension_semantics<parallel>, #tpu.dimension_semantics<arbitrary>], iteration_bounds = array<i64: 2, 1>, scalar_prefetch = 0 : i64, scratch_operands = 1 : i64, tpu.core_type = #tpu.core_type<tc>, window_params = [{transform_indices = @transform_0, window_bounds = array<i64: 1, 8, 32>}, {pipeline_mode = #tpu.pipeline_mode<synchronous>, transform_indices = @transform_1, window_bounds = array<i64: 1, 32>}, {pipeline_mode = #tpu.pipeline_mode<synchronous>, transform_indices = @transform_2, window_bounds = array<i64: 1, 32>}, {pipeline_mode = #tpu.pipeline_mode<synchronous>, transform_indices = @transform_3, window_bounds = array<i64: 32, 96>}, {pipeline_mode = #tpu.pipeline_mode<synchronous>, transform_indices = @transform_4, window_bounds = array<i64: 1, 96>}, {pipeline_mode = #tpu.pipeline_mode<synchronous>, transform_indices = @transform_5, window_bounds = array<i64: 32, 32>}, {pipeline_mode = #tpu.pipeline_mode<synchronous>, transform_indices = @transform_6, window_bounds = array<i64: 1, 32>}, {pipeline_mode = #tpu.pipeline_mode<synchronous>, transform_indices = @transform_7, window_bounds = array<i64: 32, 256>}, {pipeline_mode = #tpu.pipeline_mode<synchronous>, transform_indices = @transform_8, window_bounds = array<i64: 128, 32>}, {transform_indices = @transform_9, window_bounds = array<i64: 1, 8, 32>}]} {
    %c0 = arith.constant 0 : index
    %c0_0 = arith.constant 0 : index
    %c0_1 = arith.constant 0 : index
    %0 = vector.load %arg2[%c0, %c0_0, %c0_1] : memref<1x8x32xf32, #tpu.memory_space<vmem>>, vector<1x8x32xf32>
    %1 = vector.shape_cast %0 : vector<1x8x32xf32> to vector<8x32xf32>
    %c0_2 = arith.constant 0 : index
    %c0_3 = arith.constant 0 : index
    %2 = vector.load %arg3[%c0_2, %c0_3] : memref<1x32xf32, #tpu.memory_space<vmem>>, vector<1x32xf32>
    %3 = arith.mulf %1, %1 : vector<8x32xf32>
    %cst = arith.constant dense<0.000000e+00> : vector<8xf32>
    %4 = vector.multi_reduction <add>, %3, %cst [1] : vector<8x32xf32> to vector<8xf32>
    %5 = vector.shape_cast %4 : vector<8xf32> to vector<8x1xf32>
    %cst_4 = arith.constant 3.200000e+01 : f32
    %6 = vector.broadcast %cst_4 : f32 to vector<8x1xf32>
    %7 = arith.divf %5, %6 : vector<8x1xf32>
    %cst_5 = arith.constant 9.99999997E-7 : f32
    %8 = vector.broadcast %cst_5 : f32 to vector<8x1xf32>
    %9 = arith.addf %7, %8 : vector<8x1xf32>
    %10 = math.rsqrt %9 : vector<8x1xf32>
    %11 = vector.broadcast %10 : vector<8x1xf32> to vector<8x32xf32>
    %12 = arith.mulf %1, %11 : vector<8x32xf32>
    %13 = vector.broadcast %2 : vector<1x32xf32> to vector<8x32xf32>
    %14 = arith.mulf %12, %13 : vector<8x32xf32>
    %15 = arith.truncf %14 : vector<8x32xf32> to vector<8x32xbf16>
    %c0_6 = arith.constant 0 : index
    %c0_7 = arith.constant 0 : index
    %16 = vector.load %arg5[%c0_6, %c0_7] : memref<32x96xbf16, #tpu.memory_space<vmem>>, vector<32x96xbf16>
    %cst_8 = arith.constant dense<0.000000e+00> : vector<8x96xf32>
    %17 = tpu.matmul %15, %16, %cst_8 {dimension_numbers = #tpu.dot_dimension_numbers<[1], [0], [0], [1], [0, 0, 1, 1], [], []>} : vector<8x32xbf16>, vector<32x96xbf16>, vector<8x96xf32> -> vector<8x96xf32>
    %c0_9 = arith.constant 0 : index
    %c0_10 = arith.constant 0 : index
    %18 = vector.load %arg6[%c0_9, %c0_10] : memref<1x96xf32, #tpu.memory_space<vmem>>, vector<1x96xf32>
    %19 = vector.broadcast %18 : vector<1x96xf32> to vector<8x96xf32>
    %20 = arith.addf %17, %19 : vector<8x96xf32>
    %21 = arith.truncf %20 : vector<8x96xf32> to vector<8x96xbf16>
    %22 = arith.index_cast %arg1 : i32 to index
    %c0_11 = arith.constant 0 : index
    %c0_12 = arith.constant 0 : index
    %23 = vector.load %arg12[%22, %c0_11, %c0_12] : memref<1x8x96xbf16, #tpu.memory_space<vmem>>, vector<1x8x96xbf16>
    %24 = vector.shape_cast %23 : vector<1x8x96xbf16> to vector<8x96xbf16>
    %25 = vector.shape_cast %21 : vector<8x96xbf16> to vector<1x8x96xbf16>
    tpu.vector_store %arg12[%22, %c0_11, %c0_12], %25 {strides = array<i32>} : memref<1x8x96xbf16, #tpu.memory_space<vmem>>, vector<1x8x96xbf16>,
    %c8_i32 = arith.constant 8 : i32
    %26 = arith.muli %arg1, %c8_i32 : i32
    %27 = tpu.assume_multiple %26, 8 : i32
    %28 = tpu.iota {dimensions = array<i32: 0>} : vector<8x8xi32>
    %29 = vector.broadcast %27 : i32 to vector<8x8xi32>
    %30 = arith.addi %29, %28 : vector<8x8xi32>
    %31 = tpu.iota {dimensions = array<i32: 1>} : vector<8x8xi32>
    %cst_13 = arith.constant 0.000000e+00 : f32
    %32 = vector.broadcast %cst_13 : f32 to vector<8x32xf32>
    %33 = arith.index_cast %arg1 : i32 to index
    %c0_14 = arith.constant 0 : index
    %c0_15 = arith.constant 0 : index
    %34 = vector.load %arg12[%33, %c0_14, %c0_15] : memref<1x8x96xbf16, #tpu.memory_space<vmem>>, vector<1x8x8xbf16>
    %35 = vector.shape_cast %34 : vector<1x8x8xbf16> to vector<8x8xbf16>
    %cst_16 = arith.constant 0xFF800000 : f32
    %36 = vector.broadcast %cst_16 : f32 to vector<8x1xf32>
    %cst_17 = arith.constant 0.000000e+00 : f32
    %37 = vector.broadcast %cst_17 : f32 to vector<8x1xf32>
    %cst_18 = arith.constant 0.000000e+00 : f32
    %38 = vector.broadcast %cst_18 : f32 to vector<8x8xf32>
    %c1_i32 = arith.constant 1 : i32
    %39 = arith.addi %arg1, %c1_i32 : i32
    %c0_i32 = arith.constant 0 : i32
    %40 = arith.subi %39, %c0_i32 : i32
    %41 = arith.addi %c0_i32, %40 : i32
    %c1_i32_19 = arith.constant 1 : i32
    %42:3 = scf.for %arg13 = %c0_i32 to %41 step %c1_i32_19 iter_args(%arg14 = %36, %arg15 = %37, %arg16 = %38) -> (vector<8x1xf32>, vector<8x1xf32>, vector<8x8xf32>)  : i32 {
      %c8_i32_70 = arith.constant 8 : i32
      %137 = arith.muli %arg13, %c8_i32_70 : i32
      %138 = tpu.assume_multiple %137, 8 : i32
      %139 = arith.index_cast %arg13 : i32 to index
      %c0_71 = arith.constant 0 : index
      %c32 = arith.constant 32 : index
      %140 = vector.load %arg12[%139, %c0_71, %c32] : memref<1x8x96xbf16, #tpu.memory_space<vmem>>, vector<1x8x8xbf16>
      %141 = vector.shape_cast %140 : vector<1x8x8xbf16> to vector<8x8xbf16>
      %142 = arith.index_cast %arg13 : i32 to index
      %c0_72 = arith.constant 0 : index
      %c64 = arith.constant 64 : index
      %143 = vector.load %arg12[%142, %c0_72, %c64] : memref<1x8x96xbf16, #tpu.memory_space<vmem>>, vector<1x8x8xbf16>
      %144 = vector.shape_cast %143 : vector<1x8x8xbf16> to vector<8x8xbf16>
      %cst_73 = arith.constant dense<0.000000e+00> : vector<8x8xf32>
      %145 = tpu.matmul %35, %141, %cst_73 {dimension_numbers = #tpu.dot_dimension_numbers<[1], [1], [0], [0], [0, 0, 1, 0], [], []>} : vector<8x8xbf16>, vector<8x8xbf16>, vector<8x8xf32> -> vector<8x8xf32>
      %146 = vector.broadcast %138 : i32 to vector<8x8xi32>
      %147 = arith.addi %146, %31 : vector<8x8xi32>
      %148 = arith.cmpi sge, %30, %147 : vector<8x8xi32>
      %cst_74 = arith.constant -1.000000e+30 : f32
      %149 = vector.broadcast %cst_74 : f32 to vector<8x8xf32>
      %150 = arith.select %148, %145, %149 : vector<8x8xi1>, vector<8x8xf32>
      %cst_75 = arith.constant dense<0xFF800000> : vector<8xf32>
      %151 = vector.multi_reduction <maximumf>, %150, %cst_75 [1] : vector<8x8xf32> to vector<8xf32>
      %152 = vector.shape_cast %151 : vector<8xf32> to vector<8x1xf32>
      %153 = arith.maximumf %arg14, %152 : vector<8x1xf32>
      %154 = arith.subf %arg14, %153 : vector<8x1xf32>
      %155 = math.exp %154 : vector<8x1xf32>
      %156 = vector.broadcast %153 : vector<8x1xf32> to vector<8x8xf32>
      %157 = arith.subf %150, %156 : vector<8x8xf32>
      %158 = arith.truncf %157 : vector<8x8xf32> to vector<8x8xbf16>
      %159 = math.exp %158 : vector<8x8xbf16>
      %160 = arith.mulf %155, %arg15 : vector<8x1xf32>
      %161 = arith.extf %159 : vector<8x8xbf16> to vector<8x8xf32>
      %cst_76 = arith.constant dense<0.000000e+00> : vector<8xf32>
      %162 = vector.multi_reduction <add>, %161, %cst_76 [1] : vector<8x8xf32> to vector<8xf32>
      %163 = vector.shape_cast %162 : vector<8xf32> to vector<8x1xf32>
      %164 = arith.addf %160, %163 : vector<8x1xf32>
      %165 = vector.broadcast %155 : vector<8x1xf32> to vector<8x8xf32>
      %166 = arith.mulf %165, %arg16 : vector<8x8xf32>
      %cst_77 = arith.constant dense<0.000000e+00> : vector<8x8xf32>
      %167 = tpu.matmul %159, %144, %cst_77 {dimension_numbers = #tpu.dot_dimension_numbers<[1], [0], [0], [1], [0, 0, 1, 1], [], []>} : vector<8x8xbf16>, vector<8x8xbf16>, vector<8x8xf32> -> vector<8x8xf32>
      %168 = arith.addf %166, %167 : vector<8x8xf32>
      scf.yield %153, %164, %168 : vector<8x1xf32>, vector<8x1xf32>, vector<8x8xf32>
    }
    %43 = tpu.reciprocal %42#1 {approx = true} : vector<8x1xf32> -> vector<8x1xf32>
    %44 = vector.broadcast %43 : vector<8x1xf32> to vector<8x8xf32>
    %45 = arith.mulf %42#2, %44 : vector<8x8xf32>
    %46 = arith.truncf %45 : vector<8x8xf32> to vector<8x8xbf16>
    %c0_20 = arith.constant 0 : index
    %c0_21 = arith.constant 0 : index
    %47 = vector.load %arg7[%c0_20, %c0_21] : memref<32x32xbf16, #tpu.memory_space<vmem>>, vector<8x32xbf16>
    %cst_22 = arith.constant dense<0.000000e+00> : vector<8x32xf32>
    %48 = tpu.matmul %46, %47, %cst_22 {dimension_numbers = #tpu.dot_dimension_numbers<[1], [0], [0], [1], [0, 0, 1, 1], [], []>} : vector<8x8xbf16>, vector<8x32xbf16>, vector<8x32xf32> -> vector<8x32xf32>
    %49 = arith.addf %32, %48 : vector<8x32xf32>
    %50 = arith.index_cast %arg1 : i32 to index
    %c0_23 = arith.constant 0 : index
    %c8 = arith.constant 8 : index
    %51 = vector.load %arg12[%50, %c0_23, %c8] : memref<1x8x96xbf16, #tpu.memory_space<vmem>>, vector<1x8x8xbf16>
    %52 = vector.shape_cast %51 : vector<1x8x8xbf16> to vector<8x8xbf16>
    %cst_24 = arith.constant 0xFF800000 : f32
    %53 = vector.broadcast %cst_24 : f32 to vector<8x1xf32>
    %cst_25 = arith.constant 0.000000e+00 : f32
    %54 = vector.broadcast %cst_25 : f32 to vector<8x1xf32>
    %cst_26 = arith.constant 0.000000e+00 : f32
    %55 = vector.broadcast %cst_26 : f32 to vector<8x8xf32>
    %c1_i32_27 = arith.constant 1 : i32
    %56 = arith.addi %arg1, %c1_i32_27 : i32
    %c0_i32_28 = arith.constant 0 : i32
    %57 = arith.subi %56, %c0_i32_28 : i32
    %58 = arith.addi %c0_i32_28, %57 : i32
    %c1_i32_29 = arith.constant 1 : i32
    %59:3 = scf.for %arg13 = %c0_i32_28 to %58 step %c1_i32_29 iter_args(%arg14 = %53, %arg15 = %54, %arg16 = %55) -> (vector<8x1xf32>, vector<8x1xf32>, vector<8x8xf32>)  : i32 {
      %c8_i32_70 = arith.constant 8 : i32
      %137 = arith.muli %arg13, %c8_i32_70 : i32
      %138 = tpu.assume_multiple %137, 8 : i32
      %139 = arith.index_cast %arg13 : i32 to index
      %c0_71 = arith.constant 0 : index
      %c40 = arith.constant 40 : index
      %140 = vector.load %arg12[%139, %c0_71, %c40] : memref<1x8x96xbf16, #tpu.memory_space<vmem>>, vector<1x8x8xbf16>
      %141 = vector.shape_cast %140 : vector<1x8x8xbf16> to vector<8x8xbf16>
      %142 = arith.index_cast %arg13 : i32 to index
      %c0_72 = arith.constant 0 : index
      %c72 = arith.constant 72 : index
      %143 = vector.load %arg12[%142, %c0_72, %c72] : memref<1x8x96xbf16, #tpu.memory_space<vmem>>, vector<1x8x8xbf16>
      %144 = vector.shape_cast %143 : vector<1x8x8xbf16> to vector<8x8xbf16>
      %cst_73 = arith.constant dense<0.000000e+00> : vector<8x8xf32>
      %145 = tpu.matmul %52, %141, %cst_73 {dimension_numbers = #tpu.dot_dimension_numbers<[1], [1], [0], [0], [0, 0, 1, 0], [], []>} : vector<8x8xbf16>, vector<8x8xbf16>, vector<8x8xf32> -> vector<8x8xf32>
      %146 = vector.broadcast %138 : i32 to vector<8x8xi32>
      %147 = arith.addi %146, %31 : vector<8x8xi32>
      %148 = arith.cmpi sge, %30, %147 : vector<8x8xi32>
      %cst_74 = arith.constant -1.000000e+30 : f32
      %149 = vector.broadcast %cst_74 : f32 to vector<8x8xf32>
      %150 = arith.select %148, %145, %149 : vector<8x8xi1>, vector<8x8xf32>
      %cst_75 = arith.constant dense<0xFF800000> : vector<8xf32>
      %151 = vector.multi_reduction <maximumf>, %150, %cst_75 [1] : vector<8x8xf32> to vector<8xf32>
      %152 = vector.shape_cast %151 : vector<8xf32> to vector<8x1xf32>
      %153 = arith.maximumf %arg14, %152 : vector<8x1xf32>
      %154 = arith.subf %arg14, %153 : vector<8x1xf32>
      %155 = math.exp %154 : vector<8x1xf32>
      %156 = vector.broadcast %153 : vector<8x1xf32> to vector<8x8xf32>
      %157 = arith.subf %150, %156 : vector<8x8xf32>
      %158 = arith.truncf %157 : vector<8x8xf32> to vector<8x8xbf16>
      %159 = math.exp %158 : vector<8x8xbf16>
      %160 = arith.mulf %155, %arg15 : vector<8x1xf32>
      %161 = arith.extf %159 : vector<8x8xbf16> to vector<8x8xf32>
      %cst_76 = arith.constant dense<0.000000e+00> : vector<8xf32>
      %162 = vector.multi_reduction <add>, %161, %cst_76 [1] : vector<8x8xf32> to vector<8xf32>
      %163 = vector.shape_cast %162 : vector<8xf32> to vector<8x1xf32>
      %164 = arith.addf %160, %163 : vector<8x1xf32>
      %165 = vector.broadcast %155 : vector<8x1xf32> to vector<8x8xf32>
      %166 = arith.mulf %165, %arg16 : vector<8x8xf32>
      %cst_77 = arith.constant dense<0.000000e+00> : vector<8x8xf32>
      %167 = tpu.matmul %159, %144, %cst_77 {dimension_numbers = #tpu.dot_dimension_numbers<[1], [0], [0], [1], [0, 0, 1, 1], [], []>} : vector<8x8xbf16>, vector<8x8xbf16>, vector<8x8xf32> -> vector<8x8xf32>
      %168 = arith.addf %166, %167 : vector<8x8xf32>
      scf.yield %153, %164, %168 : vector<8x1xf32>, vector<8x1xf32>, vector<8x8xf32>
    }
    %60 = tpu.reciprocal %59#1 {approx = true} : vector<8x1xf32> -> vector<8x1xf32>
    %61 = vector.broadcast %60 : vector<8x1xf32> to vector<8x8xf32>
    %62 = arith.mulf %59#2, %61 : vector<8x8xf32>
    %63 = arith.truncf %62 : vector<8x8xf32> to vector<8x8xbf16>
    %c8_30 = arith.constant 8 : index
    %c0_31 = arith.constant 0 : index
    %64 = vector.load %arg7[%c8_30, %c0_31] : memref<32x32xbf16, #tpu.memory_space<vmem>>, vector<8x32xbf16>
    %cst_32 = arith.constant dense<0.000000e+00> : vector<8x32xf32>
    %65 = tpu.matmul %63, %64, %cst_32 {dimension_numbers = #tpu.dot_dimension_numbers<[1], [0], [0], [1], [0, 0, 1, 1], [], []>} : vector<8x8xbf16>, vector<8x32xbf16>, vector<8x32xf32> -> vector<8x32xf32>
    %66 = arith.addf %49, %65 : vector<8x32xf32>
    %67 = arith.index_cast %arg1 : i32 to index
    %c0_33 = arith.constant 0 : index
    %c16 = arith.constant 16 : index
    %68 = vector.load %arg12[%67, %c0_33, %c16] : memref<1x8x96xbf16, #tpu.memory_space<vmem>>, vector<1x8x8xbf16>
    %69 = vector.shape_cast %68 : vector<1x8x8xbf16> to vector<8x8xbf16>
    %cst_34 = arith.constant 0xFF800000 : f32
    %70 = vector.broadcast %cst_34 : f32 to vector<8x1xf32>
    %cst_35 = arith.constant 0.000000e+00 : f32
    %71 = vector.broadcast %cst_35 : f32 to vector<8x1xf32>
    %cst_36 = arith.constant 0.000000e+00 : f32
    %72 = vector.broadcast %cst_36 : f32 to vector<8x8xf32>
    %c1_i32_37 = arith.constant 1 : i32
    %73 = arith.addi %arg1, %c1_i32_37 : i32
    %c0_i32_38 = arith.constant 0 : i32
    %74 = arith.subi %73, %c0_i32_38 : i32
    %75 = arith.addi %c0_i32_38, %74 : i32
    %c1_i32_39 = arith.constant 1 : i32
    %76:3 = scf.for %arg13 = %c0_i32_38 to %75 step %c1_i32_39 iter_args(%arg14 = %70, %arg15 = %71, %arg16 = %72) -> (vector<8x1xf32>, vector<8x1xf32>, vector<8x8xf32>)  : i32 {
      %c8_i32_70 = arith.constant 8 : i32
      %137 = arith.muli %arg13, %c8_i32_70 : i32
      %138 = tpu.assume_multiple %137, 8 : i32
      %139 = arith.index_cast %arg13 : i32 to index
      %c0_71 = arith.constant 0 : index
      %c48 = arith.constant 48 : index
      %140 = vector.load %arg12[%139, %c0_71, %c48] : memref<1x8x96xbf16, #tpu.memory_space<vmem>>, vector<1x8x8xbf16>
      %141 = vector.shape_cast %140 : vector<1x8x8xbf16> to vector<8x8xbf16>
      %142 = arith.index_cast %arg13 : i32 to index
      %c0_72 = arith.constant 0 : index
      %c80 = arith.constant 80 : index
      %143 = vector.load %arg12[%142, %c0_72, %c80] : memref<1x8x96xbf16, #tpu.memory_space<vmem>>, vector<1x8x8xbf16>
      %144 = vector.shape_cast %143 : vector<1x8x8xbf16> to vector<8x8xbf16>
      %cst_73 = arith.constant dense<0.000000e+00> : vector<8x8xf32>
      %145 = tpu.matmul %69, %141, %cst_73 {dimension_numbers = #tpu.dot_dimension_numbers<[1], [1], [0], [0], [0, 0, 1, 0], [], []>} : vector<8x8xbf16>, vector<8x8xbf16>, vector<8x8xf32> -> vector<8x8xf32>
      %146 = vector.broadcast %138 : i32 to vector<8x8xi32>
      %147 = arith.addi %146, %31 : vector<8x8xi32>
      %148 = arith.cmpi sge, %30, %147 : vector<8x8xi32>
      %cst_74 = arith.constant -1.000000e+30 : f32
      %149 = vector.broadcast %cst_74 : f32 to vector<8x8xf32>
      %150 = arith.select %148, %145, %149 : vector<8x8xi1>, vector<8x8xf32>
      %cst_75 = arith.constant dense<0xFF800000> : vector<8xf32>
      %151 = vector.multi_reduction <maximumf>, %150, %cst_75 [1] : vector<8x8xf32> to vector<8xf32>
      %152 = vector.shape_cast %151 : vector<8xf32> to vector<8x1xf32>
      %153 = arith.maximumf %arg14, %152 : vector<8x1xf32>
      %154 = arith.subf %arg14, %153 : vector<8x1xf32>
      %155 = math.exp %154 : vector<8x1xf32>
      %156 = vector.broadcast %153 : vector<8x1xf32> to vector<8x8xf32>
      %157 = arith.subf %150, %156 : vector<8x8xf32>
      %158 = arith.truncf %157 : vector<8x8xf32> to vector<8x8xbf16>
      %159 = math.exp %158 : vector<8x8xbf16>
      %160 = arith.mulf %155, %arg15 : vector<8x1xf32>
      %161 = arith.extf %159 : vector<8x8xbf16> to vector<8x8xf32>
      %cst_76 = arith.constant dense<0.000000e+00> : vector<8xf32>
      %162 = vector.multi_reduction <add>, %161, %cst_76 [1] : vector<8x8xf32> to vector<8xf32>
      %163 = vector.shape_cast %162 : vector<8xf32> to vector<8x1xf32>
      %164 = arith.addf %160, %163 : vector<8x1xf32>
      %165 = vector.broadcast %155 : vector<8x1xf32> to vector<8x8xf32>
      %166 = arith.mulf %165, %arg16 : vector<8x8xf32>
      %cst_77 = arith.constant dense<0.000000e+00> : vector<8x8xf32>
      %167 = tpu.matmul %159, %144, %cst_77 {dimension_numbers = #tpu.dot_dimension_numbers<[1], [0], [0], [1], [0, 0, 1, 1], [], []>} : vector<8x8xbf16>, vector<8x8xbf16>, vector<8x8xf32> -> vector<8x8xf32>
      %168 = arith.addf %166, %167 : vector<8x8xf32>
      scf.yield %153, %164, %168 : vector<8x1xf32>, vector<8x1xf32>, vector<8x8xf32>
    }
    %77 = tpu.reciprocal %76#1 {approx = true} : vector<8x1xf32> -> vector<8x1xf32>
    %78 = vector.broadcast %77 : vector<8x1xf32> to vector<8x8xf32>
    %79 = arith.mulf %76#2, %78 : vector<8x8xf32>
    %80 = arith.truncf %79 : vector<8x8xf32> to vector<8x8xbf16>
    %c16_40 = arith.constant 16 : index
    %c0_41 = arith.constant 0 : index
    %81 = vector.load %arg7[%c16_40, %c0_41] : memref<32x32xbf16, #tpu.memory_space<vmem>>, vector<8x32xbf16>
    %cst_42 = arith.constant dense<0.000000e+00> : vector<8x32xf32>
    %82 = tpu.matmul %80, %81, %cst_42 {dimension_numbers = #tpu.dot_dimension_numbers<[1], [0], [0], [1], [0, 0, 1, 1], [], []>} : vector<8x8xbf16>, vector<8x32xbf16>, vector<8x32xf32> -> vector<8x32xf32>
    %83 = arith.addf %66, %82 : vector<8x32xf32>
    %84 = arith.index_cast %arg1 : i32 to index
    %c0_43 = arith.constant 0 : index
    %c24 = arith.constant 24 : index
    %85 = vector.load %arg12[%84, %c0_43, %c24] : memref<1x8x96xbf16, #tpu.memory_space<vmem>>, vector<1x8x8xbf16>
    %86 = vector.shape_cast %85 : vector<1x8x8xbf16> to vector<8x8xbf16>
    %cst_44 = arith.constant 0xFF800000 : f32
    %87 = vector.broadcast %cst_44 : f32 to vector<8x1xf32>
    %cst_45 = arith.constant 0.000000e+00 : f32
    %88 = vector.broadcast %cst_45 : f32 to vector<8x1xf32>
    %cst_46 = arith.constant 0.000000e+00 : f32
    %89 = vector.broadcast %cst_46 : f32 to vector<8x8xf32>
    %c1_i32_47 = arith.constant 1 : i32
    %90 = arith.addi %arg1, %c1_i32_47 : i32
    %c0_i32_48 = arith.constant 0 : i32
    %91 = arith.subi %90, %c0_i32_48 : i32
    %92 = arith.addi %c0_i32_48, %91 : i32
    %c1_i32_49 = arith.constant 1 : i32
    %93:3 = scf.for %arg13 = %c0_i32_48 to %92 step %c1_i32_49 iter_args(%arg14 = %87, %arg15 = %88, %arg16 = %89) -> (vector<8x1xf32>, vector<8x1xf32>, vector<8x8xf32>)  : i32 {
      %c8_i32_70 = arith.constant 8 : i32
      %137 = arith.muli %arg13, %c8_i32_70 : i32
      %138 = tpu.assume_multiple %137, 8 : i32
      %139 = arith.index_cast %arg13 : i32 to index
      %c0_71 = arith.constant 0 : index
      %c56 = arith.constant 56 : index
      %140 = vector.load %arg12[%139, %c0_71, %c56] : memref<1x8x96xbf16, #tpu.memory_space<vmem>>, vector<1x8x8xbf16>
      %141 = vector.shape_cast %140 : vector<1x8x8xbf16> to vector<8x8xbf16>
      %142 = arith.index_cast %arg13 : i32 to index
      %c0_72 = arith.constant 0 : index
      %c88 = arith.constant 88 : index
      %143 = vector.load %arg12[%142, %c0_72, %c88] : memref<1x8x96xbf16, #tpu.memory_space<vmem>>, vector<1x8x8xbf16>
      %144 = vector.shape_cast %143 : vector<1x8x8xbf16> to vector<8x8xbf16>
      %cst_73 = arith.constant dense<0.000000e+00> : vector<8x8xf32>
      %145 = tpu.matmul %86, %141, %cst_73 {dimension_numbers = #tpu.dot_dimension_numbers<[1], [1], [0], [0], [0, 0, 1, 0], [], []>} : vector<8x8xbf16>, vector<8x8xbf16>, vector<8x8xf32> -> vector<8x8xf32>
      %146 = vector.broadcast %138 : i32 to vector<8x8xi32>
      %147 = arith.addi %146, %31 : vector<8x8xi32>
      %148 = arith.cmpi sge, %30, %147 : vector<8x8xi32>
      %cst_74 = arith.constant -1.000000e+30 : f32
      %149 = vector.broadcast %cst_74 : f32 to vector<8x8xf32>
      %150 = arith.select %148, %145, %149 : vector<8x8xi1>, vector<8x8xf32>
      %cst_75 = arith.constant dense<0xFF800000> : vector<8xf32>
      %151 = vector.multi_reduction <maximumf>, %150, %cst_75 [1] : vector<8x8xf32> to vector<8xf32>
      %152 = vector.shape_cast %151 : vector<8xf32> to vector<8x1xf32>
      %153 = arith.maximumf %arg14, %152 : vector<8x1xf32>
      %154 = arith.subf %arg14, %153 : vector<8x1xf32>
      %155 = math.exp %154 : vector<8x1xf32>
      %156 = vector.broadcast %153 : vector<8x1xf32> to vector<8x8xf32>
      %157 = arith.subf %150, %156 : vector<8x8xf32>
      %158 = arith.truncf %157 : vector<8x8xf32> to vector<8x8xbf16>
      %159 = math.exp %158 : vector<8x8xbf16>
      %160 = arith.mulf %155, %arg15 : vector<8x1xf32>
      %161 = arith.extf %159 : vector<8x8xbf16> to vector<8x8xf32>
      %cst_76 = arith.constant dense<0.000000e+00> : vector<8xf32>
      %162 = vector.multi_reduction <add>, %161, %cst_76 [1] : vector<8x8xf32> to vector<8xf32>
      %163 = vector.shape_cast %162 : vector<8xf32> to vector<8x1xf32>
      %164 = arith.addf %160, %163 : vector<8x1xf32>
      %165 = vector.broadcast %155 : vector<8x1xf32> to vector<8x8xf32>
      %166 = arith.mulf %165, %arg16 : vector<8x8xf32>
      %cst_77 = arith.constant dense<0.000000e+00> : vector<8x8xf32>
      %167 = tpu.matmul %159, %144, %cst_77 {dimension_numbers = #tpu.dot_dimension_numbers<[1], [0], [0], [1], [0, 0, 1, 1], [], []>} : vector<8x8xbf16>, vector<8x8xbf16>, vector<8x8xf32> -> vector<8x8xf32>
      %168 = arith.addf %166, %167 : vector<8x8xf32>
      scf.yield %153, %164, %168 : vector<8x1xf32>, vector<8x1xf32>, vector<8x8xf32>
    }
    %94 = tpu.reciprocal %93#1 {approx = true} : vector<8x1xf32> -> vector<8x1xf32>
    %95 = vector.broadcast %94 : vector<8x1xf32> to vector<8x8xf32>
    %96 = arith.mulf %93#2, %95 : vector<8x8xf32>
    %97 = arith.truncf %96 : vector<8x8xf32> to vector<8x8xbf16>
    %c24_50 = arith.constant 24 : index
    %c0_51 = arith.constant 0 : index
    %98 = vector.load %arg7[%c24_50, %c0_51] : memref<32x32xbf16, #tpu.memory_space<vmem>>, vector<8x32xbf16>
    %cst_52 = arith.constant dense<0.000000e+00> : vector<8x32xf32>
    %99 = tpu.matmul %97, %98, %cst_52 {dimension_numbers = #tpu.dot_dimension_numbers<[1], [0], [0], [1], [0, 0, 1, 1], [], []>} : vector<8x8xbf16>, vector<8x32xbf16>, vector<8x32xf32> -> vector<8x32xf32>
    %100 = arith.addf %83, %99 : vector<8x32xf32>
    %c0_53 = arith.constant 0 : index
    %c0_54 = arith.constant 0 : index
    %101 = vector.load %arg8[%c0_53, %c0_54] : memref<1x32xf32, #tpu.memory_space<vmem>>, vector<1x32xf32>
    %102 = vector.broadcast %101 : vector<1x32xf32> to vector<8x32xf32>
    %103 = arith.addf %100, %102 : vector<8x32xf32>
    %104 = arith.addf %1, %103 : vector<8x32xf32>
    %c0_55 = arith.constant 0 : index
    %c0_56 = arith.constant 0 : index
    %105 = vector.load %arg4[%c0_55, %c0_56] : memref<1x32xf32, #tpu.memory_space<vmem>>, vector<1x32xf32>
    %106 = arith.mulf %104, %104 : vector<8x32xf32>
    %cst_57 = arith.constant dense<0.000000e+00> : vector<8xf32>
    %107 = vector.multi_reduction <add>, %106, %cst_57 [1] : vector<8x32xf32> to vector<8xf32>
    %108 = vector.shape_cast %107 : vector<8xf32> to vector<8x1xf32>
    %cst_58 = arith.constant 3.200000e+01 : f32
    %109 = vector.broadcast %cst_58 : f32 to vector<8x1xf32>
    %110 = arith.divf %108, %109 : vector<8x1xf32>
    %cst_59 = arith.constant 9.99999997E-7 : f32
    %111 = vector.broadcast %cst_59 : f32 to vector<8x1xf32>
    %112 = arith.addf %110, %111 : vector<8x1xf32>
    %113 = math.rsqrt %112 : vector<8x1xf32>
    %114 = vector.broadcast %113 : vector<8x1xf32> to vector<8x32xf32>
    %115 = arith.mulf %104, %114 : vector<8x32xf32>
    %116 = vector.broadcast %105 : vector<1x32xf32> to vector<8x32xf32>
    %117 = arith.mulf %115, %116 : vector<8x32xf32>
    %118 = arith.truncf %117 : vector<8x32xf32> to vector<8x32xbf16>
    %c0_60 = arith.constant 0 : index
    %c0_61 = arith.constant 0 : index
    %119 = vector.load %arg9[%c0_60, %c0_61] : memref<32x256xbf16, #tpu.memory_space<vmem>>, vector<32x256xbf16>
    %cst_62 = arith.constant dense<0.000000e+00> : vector<8x256xf32>
    %120 = tpu.matmul %118, %119, %cst_62 {dimension_numbers = #tpu.dot_dimension_numbers<[1], [0], [0], [1], [0, 0, 1, 1], [], []>} : vector<8x32xbf16>, vector<32x256xbf16>, vector<8x256xf32> -> vector<8x256xf32>
    %121 = vector.extract_strided_slice %120 {offsets = [0, 0], sizes = [8, 128], strides = [1, 1]} : vector<8x256xf32> to vector<8x128xf32>
    %122 = vector.extract_strided_slice %120 {offsets = [0, 128], sizes = [8, 128], strides = [1, 1]} : vector<8x256xf32> to vector<8x128xf32>
    %123 = arith.negf %121 : vector<8x128xf32>
    %124 = math.exp %123 : vector<8x128xf32>
    %cst_63 = arith.constant 1.000000e+00 : f32
    %125 = vector.broadcast %cst_63 : f32 to vector<8x128xf32>
    %126 = arith.addf %125, %124 : vector<8x128xf32>
    %127 = arith.divf %125, %126 : vector<8x128xf32>
    %128 = arith.mulf %121, %127 : vector<8x128xf32>
    %129 = arith.mulf %128, %122 : vector<8x128xf32>
    %130 = arith.truncf %129 : vector<8x128xf32> to vector<8x128xbf16>
    %c0_64 = arith.constant 0 : index
    %c0_65 = arith.constant 0 : index
    %131 = vector.load %arg10[%c0_64, %c0_65] : memref<128x32xbf16, #tpu.memory_space<vmem>>, vector<128x32xbf16>
    %cst_66 = arith.constant dense<0.000000e+00> : vector<8x32xf32>
    %132 = tpu.matmul %130, %131, %cst_66 {dimension_numbers = #tpu.dot_dimension_numbers<[1], [0], [0], [1], [0, 0, 1, 1], [], []>} : vector<8x128xbf16>, vector<128x32xbf16>, vector<8x32xf32> -> vector<8x32xf32>
    %133 = arith.addf %104, %132 : vector<8x32xf32>
    %c0_67 = arith.constant 0 : index
    %c0_68 = arith.constant 0 : index
    %c0_69 = arith.constant 0 : index
    %134 = vector.load %arg11[%c0_67, %c0_68, %c0_69] : memref<1x8x32xf32, #tpu.memory_space<vmem>>, vector<1x8x32xf32>
    %135 = vector.shape_cast %134 : vector<1x8x32xf32> to vector<8x32xf32>
    %136 = vector.shape_cast %133 : vector<8x32xf32> to vector<1x8x32xf32>
    tpu.vector_store %arg11[%c0_67, %c0_68, %c0_69], %136 {strides = array<i32>} : memref<1x8x32xf32, #tpu.memory_space<vmem>>, vector<1x8x32xf32>,
    return
  }
  func.func @transform_0(%arg0: i32, %arg1: i32) -> (i32, i32, i32) {
    %c0_i32 = arith.constant 0 : i32
    %c0_i32_0 = arith.constant 0 : i32
    return %arg0, %arg1, %c0_i32 : i32, i32, i32
  }
  func.func @transform_1(%arg0: i32, %arg1: i32) -> (i32, i32) {
    %c0_i32 = arith.constant 0 : i32
    %c0_i32_0 = arith.constant 0 : i32
    %c0_i32_1 = arith.constant 0 : i32
    return %c0_i32, %c0_i32_0 : i32, i32
  }
  func.func @transform_2(%arg0: i32, %arg1: i32) -> (i32, i32) {
    %c0_i32 = arith.constant 0 : i32
    %c0_i32_0 = arith.constant 0 : i32
    %c0_i32_1 = arith.constant 0 : i32
    return %c0_i32, %c0_i32_0 : i32, i32
  }
  func.func @transform_3(%arg0: i32, %arg1: i32) -> (i32, i32) {
    %c0_i32 = arith.constant 0 : i32
    %c0_i32_0 = arith.constant 0 : i32
    %c0_i32_1 = arith.constant 0 : i32
    return %c0_i32, %c0_i32_0 : i32, i32
  }
  func.func @transform_4(%arg0: i32, %arg1: i32) -> (i32, i32) {
    %c0_i32 = arith.constant 0 : i32
    %c0_i32_0 = arith.constant 0 : i32
    %c0_i32_1 = arith.constant 0 : i32
    return %c0_i32, %c0_i32_0 : i32, i32
  }
  func.func @transform_5(%arg0: i32, %arg1: i32) -> (i32, i32) {
    %c0_i32 = arith.constant 0 : i32
    %c0_i32_0 = arith.constant 0 : i32
    %c0_i32_1 = arith.constant 0 : i32
    return %c0_i32, %c0_i32_0 : i32, i32
  }
  func.func @transform_6(%arg0: i32, %arg1: i32) -> (i32, i32) {
    %c0_i32 = arith.constant 0 : i32
    %c0_i32_0 = arith.constant 0 : i32
    %c0_i32_1 = arith.constant 0 : i32
    return %c0_i32, %c0_i32_0 : i32, i32
  }
  func.func @transform_7(%arg0: i32, %arg1: i32) -> (i32, i32) {
    %c0_i32 = arith.constant 0 : i32
    %c0_i32_0 = arith.constant 0 : i32
    %c0_i32_1 = arith.constant 0 : i32
    return %c0_i32, %c0_i32_0 : i32, i32
  }
  func.func @transform_8(%arg0: i32, %arg1: i32) -> (i32, i32) {
    %c0_i32 = arith.constant 0 : i32
    %c0_i32_0 = arith.constant 0 : i32
    %c0_i32_1 = arith.constant 0 : i32
    return %c0_i32, %c0_i32_0 : i32, i32
  }
  func.func @transform_9(%arg0: i32, %arg1: i32) -> (i32, i32, i32) {
    %c0_i32 = arith.constant 0 : i32
    %c0_i32_0 = arith.constant 0 : i32
    return %arg0, %arg1, %c0_i32 : i32, i32, i32
  }
}

module attributes {stable_mosaic.version = 11 : i64} {
  func.func @block_kernel(%arg0: i32, %arg1: i32, %arg2: memref<1x8x32xf32, #tpu.memory_space<vmem>>, %arg3: memref<1x32xf32, #tpu.memory_space<vmem>>, %arg4: memref<1x32xf32, #tpu.memory_space<vmem>>, %arg5: memref<32x96xbf16, #tpu.memory_space<vmem>>, %arg6: memref<1x96xf32, #tpu.memory_space<vmem>>, %arg7: memref<32x32xbf16, #tpu.memory_space<vmem>>, %arg8: memref<1x32xf32, #tpu.memory_space<vmem>>, %arg9: memref<32x256xbf16, #tpu.memory_space<vmem>>, %arg10: memref<128x32xbf16, #tpu.memory_space<vmem>>, %arg11: memref<1x8x32xf32, #tpu.memory_space<vmem>>, %arg12: memref<1x8x96xbf16, #tpu.memory_space<vmem>>) attributes {dimension_semantics = [#tpu.dimension_semantics<parallel>, #tpu.dimension_semantics<arbitrary>], iteration_bounds = array<i64: 2, 1>, scalar_prefetch = 0 : i64, scratch_operands = 1 : i64, tpu.core_type = #tpu.core_type<tc>, window_params = [{transform_indices = @transform_0, window_bounds = array<i64: 1, 8, 32>}, {pipeline_mode = #tpu.pipeline_mode<synchronous>, transform_indices = @transform_1, window_bounds = array<i64: 1, 32>}, {pipeline_mode = #tpu.pipeline_mode<synchronous>, transform_indices = @transform_2, window_bounds = array<i64: 1, 32>}, {pipeline_mode = #tpu.pipeline_mode<synchronous>, transform_indices = @transform_3, window_bounds = array<i64: 32, 96>}, {pipeline_mode = #tpu.pipeline_mode<synchronous>, transform_indices = @transform_4, window_bounds = array<i64: 1, 96>}, {pipeline_mode = #tpu.pipeline_mode<synchronous>, transform_indices = @transform_5, window_bounds = array<i64: 32, 32>}, {pipeline_mode = #tpu.pipeline_mode<synchronous>, transform_indices = @transform_6, window_bounds = array<i64: 1, 32>}, {pipeline_mode = #tpu.pipeline_mode<synchronous>, transform_indices = @transform_7, window_bounds = array<i64: 32, 256>}, {pipeline_mode = #tpu.pipeline_mode<synchronous>, transform_indices = @transform_8, window_bounds = array<i64: 128, 32>}, {transform_indices = @transform_9, window_bounds = array<i64: 1, 8, 32>}]} {
    %c0 = arith.constant 0 : index
    %c0_0 = arith.constant 0 : index
    %c0_1 = arith.constant 0 : index
    %0 = vector.load %arg2[%c0, %c0_0, %c0_1] : memref<1x8x32xf32, #tpu.memory_space<vmem>>, vector<1x8x32xf32>
    %1 = vector.shape_cast %0 : vector<1x8x32xf32> to vector<8x32xf32>
    %c0_2 = arith.constant 0 : index
    %c0_3 = arith.constant 0 : index
    %2 = vector.load %arg3[%c0_2, %c0_3] : memref<1x32xf32, #tpu.memory_space<vmem>>, vector<1x32xf32>
    %3 = arith.mulf %1, %1 : vector<8x32xf32>
    %cst = arith.constant dense<0.000000e+00> : vector<8xf32>
    %4 = vector.multi_reduction <add>, %3, %cst [1] : vector<8x32xf32> to vector<8xf32>
    %5 = vector.shape_cast %4 : vector<8xf32> to vector<8x1xf32>
    %cst_4 = arith.constant 3.200000e+01 : f32
    %6 = vector.broadcast %cst_4 : f32 to vector<8x1xf32>
    %7 = arith.divf %5, %6 : vector<8x1xf32>
    %cst_5 = arith.constant 9.99999997E-7 : f32
    %8 = vector.broadcast %cst_5 : f32 to vector<8x1xf32>
    %9 = arith.addf %7, %8 : vector<8x1xf32>
    %10 = math.rsqrt %9 : vector<8x1xf32>
    %11 = vector.broadcast %10 : vector<8x1xf32> to vector<8x32xf32>
    %12 = arith.mulf %1, %11 : vector<8x32xf32>
    %13 = vector.broadcast %2 : vector<1x32xf32> to vector<8x32xf32>
    %14 = arith.mulf %12, %13 : vector<8x32xf32>
    %15 = arith.truncf %14 : vector<8x32xf32> to vector<8x32xbf16>
    %c0_6 = arith.constant 0 : index
    %c0_7 = arith.constant 0 : index
    %16 = vector.load %arg5[%c0_6, %c0_7] : memref<32x96xbf16, #tpu.memory_space<vmem>>, vector<32x96xbf16>
    %cst_8 = arith.constant dense<0.000000e+00> : vector<8x96xf32>
    %17 = tpu.matmul %15, %16, %cst_8 {dimension_numbers = #tpu.dot_dimension_numbers<[1], [0], [0], [1], [0, 0, 1, 1], [], []>} : vector<8x32xbf16>, vector<32x96xbf16>, vector<8x96xf32> -> vector<8x96xf32>
    %c0_9 = arith.constant 0 : index
    %c0_10 = arith.constant 0 : index
    %18 = vector.load %arg6[%c0_9, %c0_10] : memref<1x96xf32, #tpu.memory_space<vmem>>, vector<1x96xf32>
    %19 = vector.broadcast %18 : vector<1x96xf32> to vector<8x96xf32>
    %20 = arith.addf %17, %19 : vector<8x96xf32>
    %21 = arith.truncf %20 : vector<8x96xf32> to vector<8x96xbf16>
    %22 = arith.index_cast %arg1 : i32 to index
    %c0_11 = arith.constant 0 : index
    %c0_12 = arith.constant 0 : index
    %23 = vector.load %arg12[%22, %c0_11, %c0_12] : memref<1x8x96xbf16, #tpu.memory_space<vmem>>, vector<1x8x96xbf16>
    %24 = vector.shape_cast %23 : vector<1x8x96xbf16> to vector<8x96xbf16>
    %25 = vector.shape_cast %21 : vector<8x96xbf16> to vector<1x8x96xbf16>
    tpu.vector_store %arg12[%22, %c0_11, %c0_12], %25 {strides = array<i32>} : memref<1x8x96xbf16, #tpu.memory_space<vmem>>, vector<1x8x96xbf16>,
    %c8_i32 = arith.constant 8 : i32
    %26 = arith.muli %arg1, %c8_i32 : i32
    %27 = tpu.assume_multiple %26, 8 : i32
    %28 = tpu.iota {dimensions = array<i32: 0>} : vector<8x8xi32>
    %29 = vector.broadcast %27 : i32 to vector<8x8xi32>
    %30 = arith.addi %29, %28 : vector<8x8xi32>
    %31 = tpu.iota {dimensions = array<i32: 1>} : vector<8x8xi32>
    %cst_13 = arith.constant 0.000000e+00 : f32
    %32 = vector.broadcast %cst_13 : f32 to vector<8x32xf32>
    %33 = arith.index_cast %arg1 : i32 to index
    %c0_14 = arith.constant 0 : index
    %c0_15 = arith.constant 0 : index
    %34 = vector.load %arg12[%33, %c0_14, %c0_15] : memref<1x8x96xbf16, #tpu.memory_space<vmem>>, vector<1x8x8xbf16>
    %35 = vector.shape_cast %34 : vector<1x8x8xbf16> to vector<8x8xbf16>
    %cst_16 = arith.constant 0xFF800000 : f32
    %36 = vector.broadcast %cst_16 : f32 to vector<8x1xf32>
    %cst_17 = arith.constant 0.000000e+00 : f32
    %37 = vector.broadcast %cst_17 : f32 to vector<8x1xf32>
    %cst_18 = arith.constant 0.000000e+00 : f32
    %38 = vector.broadcast %cst_18 : f32 to vector<8x8xf32>
    %c1_i32 = arith.constant 1 : i32
    %39 = arith.addi %arg1, %c1_i32 : i32
    %c0_i32 = arith.constant 0 : i32
    %40 = arith.subi %39, %c0_i32 : i32
    %41 = arith.addi %c0_i32, %40 : i32
    %c1_i32_19 = arith.constant 1 : i32
    %42:3 = scf.for %arg13 = %c0_i32 to %41 step %c1_i32_19 iter_args(%arg14 = %36, %arg15 = %37, %arg16 = %38) -> (vector<8x1xf32>, vector<8x1xf32>, vector<8x8xf32>)  : i32 {
      %c8_i32_70 = arith.constant 8 : i32
      %137 = arith.muli %arg13, %c8_i32_70 : i32
      %138 = tpu.assume_multiple %137, 8 : i32
      %139 = arith.index_cast %arg13 : i32 to index
      %c0_71 = arith.constant 0 : index
      %c32 = arith.constant 32 : index
      %140 = vector.load %arg12[%139, %c0_71, %c32] : memref<1x8x96xbf16, #tpu.memory_space<vmem>>, vector<1x8x8xbf16>
      %141 = vector.shape_cast %140 : vector<1x8x8xbf16> to vector<8x8xbf16>
      %142 = arith.index_cast %arg13 : i32 to index
      %c0_72 = arith.constant 0 : index
      %c64 = arith.constant 64 : index
      %143 = vector.load %arg12[%142, %c0_72, %c64] : memref<1x8x96xbf16, #tpu.memory_space<vmem>>, vector<1x8x8xbf16>
      %144 = vector.shape_cast %143 : vector<1x8x8xbf16> to vector<8x8xbf16>
      %cst_73 = arith.constant dense<0.000000e+00> : vector<8x8xf32>
      %145 = tpu.matmul %35, %141, %cst_73 {dimension_numbers = #tpu.dot_dimension_numbers<[1], [1], [0], [0], [0, 0, 1, 0], [], []>} : vector<8x8xbf16>, vector<8x8xbf16>, vector<8x8xf32> -> vector<8x8xf32>
      %146 = vector.broadcast %138 : i32 to vector<8x8xi32>
      %147 = arith.addi %146, %31 : vector<8x8xi32>
      %148 = arith.cmpi sge, %30, %147 : vector<8x8xi32>
      %cst_74 = arith.constant -1.000000e+30 : f32
      %149 = vector.broadcast %cst_74 : f32 to vector<8x8xf32>
      %150 = arith.select %148, %145, %149 : vector<8x8xi1>, vector<8x8xf32>
      %cst_75 = arith.constant dense<0xFF800000> : vector<8xf32>
      %151 = vector.multi_reduction <maximumf>, %150, %cst_75 [1] : vector<8x8xf32> to vector<8xf32>
      %152 = vector.shape_cast %151 : vector<8xf32> to vector<8x1xf32>
      %153 = arith.maximumf %arg14, %152 : vector<8x1xf32>
      %154 = arith.subf %arg14, %153 : vector<8x1xf32>
      %155 = math.exp %154 : vector<8x1xf32>
      %156 = vector.broadcast %153 : vector<8x1xf32> to vector<8x8xf32>
      %157 = arith.subf %150, %156 : vector<8x8xf32>
      %158 = arith.truncf %157 : vector<8x8xf32> to vector<8x8xbf16>
      %159 = math.exp %158 : vector<8x8xbf16>
      %160 = arith.mulf %155, %arg15 : vector<8x1xf32>
      %161 = arith.extf %159 : vector<8x8xbf16> to vector<8x8xf32>
      %cst_76 = arith.constant dense<0.000000e+00> : vector<8xf32>
      %162 = vector.multi_reduction <add>, %161, %cst_76 [1] : vector<8x8xf32> to vector<8xf32>
      %163 = vector.shape_cast %162 : vector<8xf32> to vector<8x1xf32>
      %164 = arith.addf %160, %163 : vector<8x1xf32>
      %165 = vector.broadcast %155 : vector<8x1xf32> to vector<8x8xf32>
      %166 = arith.mulf %165, %arg16 : vector<8x8xf32>
      %cst_77 = arith.constant dense<0.000000e+00> : vector<8x8xf32>
      %167 = tpu.matmul %159, %144, %cst_77 {dimension_numbers = #tpu.dot_dimension_numbers<[1], [0], [0], [1], [0, 0, 1, 1], [], []>} : vector<8x8xbf16>, vector<8x8xbf16>, vector<8x8xf32> -> vector<8x8xf32>
      %168 = arith.addf %166, %167 : vector<8x8xf32>
      scf.yield %153, %164, %168 : vector<8x1xf32>, vector<8x1xf32>, vector<8x8xf32>
    }
    %43 = tpu.reciprocal %42#1 {approx = true} : vector<8x1xf32> -> vector<8x1xf32>
    %44 = vector.broadcast %43 : vector<8x1xf32> to vector<8x8xf32>
    %45 = arith.mulf %42#2, %44 : vector<8x8xf32>
    %46 = arith.truncf %45 : vector<8x8xf32> to vector<8x8xbf16>
    %c0_20 = arith.constant 0 : index
    %c0_21 = arith.constant 0 : index
    %47 = vector.load %arg7[%c0_20, %c0_21] : memref<32x32xbf16, #tpu.memory_space<vmem>>, vector<8x32xbf16>
    %cst_22 = arith.constant dense<0.000000e+00> : vector<8x32xf32>
    %48 = tpu.matmul %46, %47, %cst_22 {dimension_numbers = #tpu.dot_dimension_numbers<[1], [0], [0], [1], [0, 0, 1, 1], [], []>} : vector<8x8xbf16>, vector<8x32xbf16>, vector<8x32xf32> -> vector<8x32xf32>
    %49 = arith.addf %32, %48 : vector<8x32xf32>
    %50 = arith.index_cast %arg1 : i32 to index
    %c0_23 = arith.constant 0 : index
    %c8 = arith.constant 8 : index
    %51 = vector.load %arg12[%50, %c0_23, %c8] : memref<1x8x96xbf16, #tpu.memory_space<vmem>>, vector<1x8x8xbf16>
    %52 = vector.shape_cast %51 : vector<1x8x8xbf16> to vector<8x8xbf16>
    %cst_24 = arith.constant 0xFF800000 : f32
    %53 = vector.broadcast %cst_24 : f32 to vector<8x1xf32>
    %cst_25 = arith.constant 0.000000e+00 : f32
    %54 = vector.broadcast %cst_25 : f32 to vector<8x1xf32>
    %cst_26 = arith.constant 0.000000e+00 : f32
    %55 = vector.broadcast %cst_26 : f32 to vector<8x8xf32>
    %c1_i32_27 = arith.constant 1 : i32
    %56 = arith.addi %arg1, %c1_i32_27 : i32
    %c0_i32_28 = arith.constant 0 : i32
    %57 = arith.subi %56, %c0_i32_28 : i32
    %58 = arith.addi %c0_i32_28, %57 : i32
    %c1_i32_29 = arith.constant 1 : i32
    %59:3 = scf.for %arg13 = %c0_i32_28 to %58 step %c1_i32_29 iter_args(%arg14 = %53, %arg15 = %54, %arg16 = %55) -> (vector<8x1xf32>, vector<8x1xf32>, vector<8x8xf32>)  : i32 {
      %c8_i32_70 = arith.constant 8 : i32
      %137 = arith.muli %arg13, %c8_i32_70 : i32
      %138 = tpu.assume_multiple %137, 8 : i32
      %139 = arith.index_cast %arg13 : i32 to index
      %c0_71 = arith.constant 0 : index
      %c40 = arith.constant 40 : index
      %140 = vector.load %arg12[%139, %c0_71, %c40] : memref<1x8x96xbf16, #tpu.memory_space<vmem>>, vector<1x8x8xbf16>
      %141 = vector.shape_cast %140 : vector<1x8x8xbf16> to vector<8x8xbf16>
      %142 = arith.index_cast %arg13 : i32 to index
      %c0_72 = arith.constant 0 : index
      %c72 = arith.constant 72 : index
      %143 = vector.load %arg12[%142, %c0_72, %c72] : memref<1x8x96xbf16, #tpu.memory_space<vmem>>, vector<1x8x8xbf16>
      %144 = vector.shape_cast %143 : vector<1x8x8xbf16> to vector<8x8xbf16>
      %cst_73 = arith.constant dense<0.000000e+00> : vector<8x8xf32>
      %145 = tpu.matmul %52, %141, %cst_73 {dimension_numbers = #tpu.dot_dimension_numbers<[1], [1], [0], [0], [0, 0, 1, 0], [], []>} : vector<8x8xbf16>, vector<8x8xbf16>, vector<8x8xf32> -> vector<8x8xf32>
      %146 = vector.broadcast %138 : i32 to vector<8x8xi32>
      %147 = arith.addi %146, %31 : vector<8x8xi32>
      %148 = arith.cmpi sge, %30, %147 : vector<8x8xi32>
      %cst_74 = arith.constant -1.000000e+30 : f32
      %149 = vector.broadcast %cst_74 : f32 to vector<8x8xf32>
      %150 = arith.select %148, %145, %149 : vector<8x8xi1>, vector<8x8xf32>
      %cst_75 = arith.constant dense<0xFF800000> : vector<8xf32>
      %151 = vector.multi_reduction <maximumf>, %150, %cst_75 [1] : vector<8x8xf32> to vector<8xf32>
      %152 = vector.shape_cast %151 : vector<8xf32> to vector<8x1xf32>
      %153 = arith.maximumf %arg14, %152 : vector<8x1xf32>
      %154 = arith.subf %arg14, %153 : vector<8x1xf32>
      %155 = math.exp %154 : vector<8x1xf32>
      %156 = vector.broadcast %153 : vector<8x1xf32> to vector<8x8xf32>
      %157 = arith.subf %150, %156 : vector<8x8xf32>
      %158 = arith.truncf %157 : vector<8x8xf32> to vector<8x8xbf16>
      %159 = math.exp %158 : vector<8x8xbf16>
      %160 = arith.mulf %155, %arg15 : vector<8x1xf32>
      %161 = arith.extf %159 : vector<8x8xbf16> to vector<8x8xf32>
      %cst_76 = arith.constant dense<0.000000e+00> : vector<8xf32>
      %162 = vector.multi_reduction <add>, %161, %cst_76 [1] : vector<8x8xf32> to vector<8xf32>
      %163 = vector.shape_cast %162 : vector<8xf32> to vector<8x1xf32>
      %164 = arith.addf %160, %163 : vector<8x1xf32>
      %165 = vector.broadcast %155 : vector<8x1xf32> to vector<8x8xf32>
      %166 = arith.mulf %165, %arg16 : vector<8x8xf32>
      %cst_77 = arith.constant dense<0.000000e+00> : vector<8x8xf32>
      %167 = tpu.matmul %159, %144, %cst_77 {dimension_numbers = #tpu.dot_dimension_numbers<[1], [0], [0], [1], [0, 0, 1, 1], [], []>} : vector<8x8xbf16>, vector<8x8xbf16>, vector<8x8xf32> -> vector<8x8xf32>
      %168 = arith.addf %166, %167 : vector<8x8xf32>
      scf.yield %153, %164, %168 : vector<8x1xf32>, vector<8x1xf32>, vector<8x8xf32>
    }
    %60 = tpu.reciprocal %59#1 {approx = true} : vector<8x1xf32> -> vector<8x1xf32>
    %61 = vector.broadcast %60 : vector<8x1xf32> to vector<8x8xf32>
    %62 = arith.mulf %59#2, %61 : vector<8x8xf32>
    %63 = arith.truncf %62 : vector<8x8xf32> to vector<8x8xbf16>
    %c8_30 = arith.constant 8 : index
    %c0_31 = arith.constant 0 : index
    %64 = vector.load %arg7[%c8_30, %c0_31] : memref<32x32xbf16, #tpu.memory_space<vmem>>, vector<8x32xbf16>
    %cst_32 = arith.constant dense<0.000000e+00> : vector<8x32xf32>
    %65 = tpu.matmul %63, %64, %cst_32 {dimension_numbers = #tpu.dot_dimension_numbers<[1], [0], [0], [1], [0, 0, 1, 1], [], []>} : vector<8x8xbf16>, vector<8x32xbf16>, vector<8x32xf32> -> vector<8x32xf32>
    %66 = arith.addf %49, %65 : vector<8x32xf32>
    %67 = arith.index_cast %arg1 : i32 to index
    %c0_33 = arith.constant 0 : index
    %c16 = arith.constant 16 : index
    %68 = vector.load %arg12[%67, %c0_33, %c16] : memref<1x8x96xbf16, #tpu.memory_space<vmem>>, vector<1x8x8xbf16>
    %69 = vector.shape_cast %68 : vector<1x8x8xbf16> to vector<8x8xbf16>
    %cst_34 = arith.constant 0xFF800000 : f32
    %70 = vector.broadcast %cst_34 : f32 to vector<8x1xf32>
    %cst_35 = arith.constant 0.000000e+00 : f32
    %71 = vector.broadcast %cst_35 : f32 to vector<8x1xf32>
    %cst_36 = arith.constant 0.000000e+00 : f32
    %72 = vector.broadcast %cst_36 : f32 to vector<8x8xf32>
    %c1_i32_37 = arith.constant 1 : i32
    %73 = arith.addi %arg1, %c1_i32_37 : i32
    %c0_i32_38 = arith.constant 0 : i32
    %74 = arith.subi %73, %c0_i32_38 : i32
    %75 = arith.addi %c0_i32_38, %74 : i32
    %c1_i32_39 = arith.constant 1 : i32
    %76:3 = scf.for %arg13 = %c0_i32_38 to %75 step %c1_i32_39 iter_args(%arg14 = %70, %arg15 = %71, %arg16 = %72) -> (vector<8x1xf32>, vector<8x1xf32>, vector<8x8xf32>)  : i32 {
      %c8_i32_70 = arith.constant 8 : i32
      %137 = arith.muli %arg13, %c8_i32_70 : i32
      %138 = tpu.assume_multiple %137, 8 : i32
      %139 = arith.index_cast %arg13 : i32 to index
      %c0_71 = arith.constant 0 : index
      %c48 = arith.constant 48 : index
      %140 = vector.load %arg12[%139, %c0_71, %c48] : memref<1x8x96xbf16, #tpu.memory_space<vmem>>, vector<1x8x8xbf16>
      %141 = vector.shape_cast %140 : vector<1x8x8xbf16> to vector<8x8xbf16>
      %142 = arith.index_cast %arg13 : i32 to index
      %c0_72 = arith.constant 0 : index
      %c80 = arith.constant 80 : index
      %143 = vector.load %arg12[%142, %c0_72, %c80] : memref<1x8x96xbf16, #tpu.memory_space<vmem>>, vector<1x8x8xbf16>
      %144 = vector.shape_cast %143 : vector<1x8x8xbf16> to vector<8x8xbf16>
      %cst_73 = arith.constant dense<0.000000e+00> : vector<8x8xf32>
      %145 = tpu.matmul %69, %141, %cst_73 {dimension_numbers = #tpu.dot_dimension_numbers<[1], [1], [0], [0], [0, 0, 1, 0], [], []>} : vector<8x8xbf16>, vector<8x8xbf16>, vector<8x8xf32> -> vector<8x8xf32>
      %146 = vector.broadcast %138 : i32 to vector<8x8xi32>
      %147 = arith.addi %146, %31 : vector<8x8xi32>
      %148 = arith.cmpi sge, %30, %147 : vector<8x8xi32>
      %cst_74 = arith.constant -1.000000e+30 : f32
      %149 = vector.broadcast %cst_74 : f32 to vector<8x8xf32>
      %150 = arith.select %148, %145, %149 : vector<8x8xi1>, vector<8x8xf32>
      %cst_75 = arith.constant dense<0xFF800000> : vector<8xf32>
      %151 = vector.multi_reduction <maximumf>, %150, %cst_75 [1] : vector<8x8xf32> to vector<8xf32>
      %152 = vector.shape_cast %151 : vector<8xf32> to vector<8x1xf32>
      %153 = arith.maximumf %arg14, %152 : vector<8x1xf32>
      %154 = arith.subf %arg14, %153 : vector<8x1xf32>
      %155 = math.exp %154 : vector<8x1xf32>
      %156 = vector.broadcast %153 : vector<8x1xf32> to vector<8x8xf32>
      %157 = arith.subf %150, %156 : vector<8x8xf32>
      %158 = arith.truncf %157 : vector<8x8xf32> to vector<8x8xbf16>
      %159 = math.exp %158 : vector<8x8xbf16>
      %160 = arith.mulf %155, %arg15 : vector<8x1xf32>
      %161 = arith.extf %159 : vector<8x8xbf16> to vector<8x8xf32>
      %cst_76 = arith.constant dense<0.000000e+00> : vector<8xf32>
      %162 = vector.multi_reduction <add>, %161, %cst_76 [1] : vector<8x8xf32> to vector<8xf32>
      %163 = vector.shape_cast %162 : vector<8xf32> to vector<8x1xf32>
      %164 = arith.addf %160, %163 : vector<8x1xf32>
      %165 = vector.broadcast %155 : vector<8x1xf32> to vector<8x8xf32>
      %166 = arith.mulf %165, %arg16 : vector<8x8xf32>
      %cst_77 = arith.constant dense<0.000000e+00> : vector<8x8xf32>
      %167 = tpu.matmul %159, %144, %cst_77 {dimension_numbers = #tpu.dot_dimension_numbers<[1], [0], [0], [1], [0, 0, 1, 1], [], []>} : vector<8x8xbf16>, vector<8x8xbf16>, vector<8x8xf32> -> vector<8x8xf32>
      %168 = arith.addf %166, %167 : vector<8x8xf32>
      scf.yield %153, %164, %168 : vector<8x1xf32>, vector<8x1xf32>, vector<8x8xf32>
    }
    %77 = tpu.reciprocal %76#1 {approx = true} : vector<8x1xf32> -> vector<8x1xf32>
    %78 = vector.broadcast %77 : vector<8x1xf32> to vector<8x8xf32>
    %79 = arith.mulf %76#2, %78 : vector<8x8xf32>
    %80 = arith.truncf %79 : vector<8x8xf32> to vector<8x8xbf16>
    %c16_40 = arith.constant 16 : index
    %c0_41 = arith.constant 0 : index
    %81 = vector.load %arg7[%c16_40, %c0_41] : memref<32x32xbf16, #tpu.memory_space<vmem>>, vector<8x32xbf16>
    %cst_42 = arith.constant dense<0.000000e+00> : vector<8x32xf32>
    %82 = tpu.matmul %80, %81, %cst_42 {dimension_numbers = #tpu.dot_dimension_numbers<[1], [0], [0], [1], [0, 0, 1, 1], [], []>} : vector<8x8xbf16>, vector<8x32xbf16>, vector<8x32xf32> -> vector<8x32xf32>
    %83 = arith.addf %66, %82 : vector<8x32xf32>
    %84 = arith.index_cast %arg1 : i32 to index
    %c0_43 = arith.constant 0 : index
    %c24 = arith.constant 24 : index
    %85 = vector.load %arg12[%84, %c0_43, %c24] : memref<1x8x96xbf16, #tpu.memory_space<vmem>>, vector<1x8x8xbf16>
    %86 = vector.shape_cast %85 : vector<1x8x8xbf16> to vector<8x8xbf16>
    %cst_44 = arith.constant 0xFF800000 : f32
    %87 = vector.broadcast %cst_44 : f32 to vector<8x1xf32>
    %cst_45 = arith.constant 0.000000e+00 : f32
    %88 = vector.broadcast %cst_45 : f32 to vector<8x1xf32>
    %cst_46 = arith.constant 0.000000e+00 : f32
    %89 = vector.broadcast %cst_46 : f32 to vector<8x8xf32>
    %c1_i32_47 = arith.constant 1 : i32
    %90 = arith.addi %arg1, %c1_i32_47 : i32
    %c0_i32_48 = arith.constant 0 : i32
    %91 = arith.subi %90, %c0_i32_48 : i32
    %92 = arith.addi %c0_i32_48, %91 : i32
    %c1_i32_49 = arith.constant 1 : i32
    %93:3 = scf.for %arg13 = %c0_i32_48 to %92 step %c1_i32_49 iter_args(%arg14 = %87, %arg15 = %88, %arg16 = %89) -> (vector<8x1xf32>, vector<8x1xf32>, vector<8x8xf32>)  : i32 {
      %c8_i32_70 = arith.constant 8 : i32
      %137 = arith.muli %arg13, %c8_i32_70 : i32
      %138 = tpu.assume_multiple %137, 8 : i32
      %139 = arith.index_cast %arg13 : i32 to index
      %c0_71 = arith.constant 0 : index
      %c56 = arith.constant 56 : index
      %140 = vector.load %arg12[%139, %c0_71, %c56] : memref<1x8x96xbf16, #tpu.memory_space<vmem>>, vector<1x8x8xbf16>
      %141 = vector.shape_cast %140 : vector<1x8x8xbf16> to vector<8x8xbf16>
      %142 = arith.index_cast %arg13 : i32 to index
      %c0_72 = arith.constant 0 : index
      %c88 = arith.constant 88 : index
      %143 = vector.load %arg12[%142, %c0_72, %c88] : memref<1x8x96xbf16, #tpu.memory_space<vmem>>, vector<1x8x8xbf16>
      %144 = vector.shape_cast %143 : vector<1x8x8xbf16> to vector<8x8xbf16>
      %cst_73 = arith.constant dense<0.000000e+00> : vector<8x8xf32>
      %145 = tpu.matmul %86, %141, %cst_73 {dimension_numbers = #tpu.dot_dimension_numbers<[1], [1], [0], [0], [0, 0, 1, 0], [], []>} : vector<8x8xbf16>, vector<8x8xbf16>, vector<8x8xf32> -> vector<8x8xf32>
      %146 = vector.broadcast %138 : i32 to vector<8x8xi32>
      %147 = arith.addi %146, %31 : vector<8x8xi32>
      %148 = arith.cmpi sge, %30, %147 : vector<8x8xi32>
      %cst_74 = arith.constant -1.000000e+30 : f32
      %149 = vector.broadcast %cst_74 : f32 to vector<8x8xf32>
      %150 = arith.select %148, %145, %149 : vector<8x8xi1>, vector<8x8xf32>
      %cst_75 = arith.constant dense<0xFF800000> : vector<8xf32>
      %151 = vector.multi_reduction <maximumf>, %150, %cst_75 [1] : vector<8x8xf32> to vector<8xf32>
      %152 = vector.shape_cast %151 : vector<8xf32> to vector<8x1xf32>
      %153 = arith.maximumf %arg14, %152 : vector<8x1xf32>
      %154 = arith.subf %arg14, %153 : vector<8x1xf32>
      %155 = math.exp %154 : vector<8x1xf32>
      %156 = vector.broadcast %153 : vector<8x1xf32> to vector<8x8xf32>
      %157 = arith.subf %150, %156 : vector<8x8xf32>
      %158 = arith.truncf %157 : vector<8x8xf32> to vector<8x8xbf16>
      %159 = math.exp %158 : vector<8x8xbf16>
      %160 = arith.mulf %155, %arg15 : vector<8x1xf32>
      %161 = arith.extf %159 : vector<8x8xbf16> to vector<8x8xf32>
      %cst_76 = arith.constant dense<0.000000e+00> : vector<8xf32>
      %162 = vector.multi_reduction <add>, %161, %cst_76 [1] : vector<8x8xf32> to vector<8xf32>
      %163 = vector.shape_cast %162 : vector<8xf32> to vector<8x1xf32>
      %164 = arith.addf %160, %163 : vector<8x1xf32>
      %165 = vector.broadcast %155 : vector<8x1xf32> to vector<8x8xf32>
      %166 = arith.mulf %165, %arg16 : vector<8x8xf32>
      %cst_77 = arith.constant dense<0.000000e+00> : vector<8x8xf32>
      %167 = tpu.matmul %159, %144, %cst_77 {dimension_numbers = #tpu.dot_dimension_numbers<[1], [0], [0], [1], [0, 0, 1, 1], [], []>} : vector<8x8xbf16>, vector<8x8xbf16>, vector<8x8xf32> -> vector<8x8xf32>
      %168 = arith.addf %166, %167 : vector<8x8xf32>
      scf.yield %153, %164, %168 : vector<8x1xf32>, vector<8x1xf32>, vector<8x8xf32>
    }
    %94 = tpu.reciprocal %93#1 {approx = true} : vector<8x1xf32> -> vector<8x1xf32>
    %95 = vector.broadcast %94 : vector<8x1xf32> to vector<8x8xf32>
    %96 = arith.mulf %93#2, %95 : vector<8x8xf32>
    %97 = arith.truncf %96 : vector<8x8xf32> to vector<8x8xbf16>
    %c24_50 = arith.constant 24 : index
    %c0_51 = arith.constant 0 : index
    %98 = vector.load %arg7[%c24_50, %c0_51] : memref<32x32xbf16, #tpu.memory_space<vmem>>, vector<8x32xbf16>
    %cst_52 = arith.constant dense<0.000000e+00> : vector<8x32xf32>
    %99 = tpu.matmul %97, %98, %cst_52 {dimension_numbers = #tpu.dot_dimension_numbers<[1], [0], [0], [1], [0, 0, 1, 1], [], []>} : vector<8x8xbf16>, vector<8x32xbf16>, vector<8x32xf32> -> vector<8x32xf32>
    %100 = arith.addf %83, %99 : vector<8x32xf32>
    %c0_53 = arith.constant 0 : index
    %c0_54 = arith.constant 0 : index
    %101 = vector.load %arg8[%c0_53, %c0_54] : memref<1x32xf32, #tpu.memory_space<vmem>>, vector<1x32xf32>
    %102 = vector.broadcast %101 : vector<1x32xf32> to vector<8x32xf32>
    %103 = arith.addf %100, %102 : vector<8x32xf32>
    %104 = arith.addf %1, %103 : vector<8x32xf32>
    %c0_55 = arith.constant 0 : index
    %c0_56 = arith.constant 0 : index
    %105 = vector.load %arg4[%c0_55, %c0_56] : memref<1x32xf32, #tpu.memory_space<vmem>>, vector<1x32xf32>
    %106 = arith.mulf %104, %104 : vector<8x32xf32>
    %cst_57 = arith.constant dense<0.000000e+00> : vector<8xf32>
    %107 = vector.multi_reduction <add>, %106, %cst_57 [1] : vector<8x32xf32> to vector<8xf32>
    %108 = vector.shape_cast %107 : vector<8xf32> to vector<8x1xf32>
    %cst_58 = arith.constant 3.200000e+01 : f32
    %109 = vector.broadcast %cst_58 : f32 to vector<8x1xf32>
    %110 = arith.divf %108, %109 : vector<8x1xf32>
    %cst_59 = arith.constant 9.99999997E-7 : f32
    %111 = vector.broadcast %cst_59 : f32 to vector<8x1xf32>
    %112 = arith.addf %110, %111 : vector<8x1xf32>
    %113 = math.rsqrt %112 : vector<8x1xf32>
    %114 = vector.broadcast %113 : vector<8x1xf32> to vector<8x32xf32>
    %115 = arith.mulf %104, %114 : vector<8x32xf32>
    %116 = vector.broadcast %105 : vector<1x32xf32> to vector<8x32xf32>
    %117 = arith.mulf %115, %116 : vector<8x32xf32>
    %118 = arith.truncf %117 : vector<8x32xf32> to vector<8x32xbf16>
    %c0_60 = arith.constant 0 : index
    %c0_61 = arith.constant 0 : index
    %119 = vector.load %arg9[%c0_60, %c0_61] : memref<32x256xbf16, #tpu.memory_space<vmem>>, vector<32x256xbf16>
    %cst_62 = arith.constant dense<0.000000e+00> : vector<8x256xf32>
    %120 = tpu.matmul %118, %119, %cst_62 {dimension_numbers = #tpu.dot_dimension_numbers<[1], [0], [0], [1], [0, 0, 1, 1], [], []>} : vector<8x32xbf16>, vector<32x256xbf16>, vector<8x256xf32> -> vector<8x256xf32>
    %121 = vector.extract_strided_slice %120 {offsets = [0, 0], sizes = [8, 128], strides = [1, 1]} : vector<8x256xf32> to vector<8x128xf32>
    %122 = vector.extract_strided_slice %120 {offsets = [0, 128], sizes = [8, 128], strides = [1, 1]} : vector<8x256xf32> to vector<8x128xf32>
    %123 = arith.negf %121 : vector<8x128xf32>
    %124 = math.exp %123 : vector<8x128xf32>
    %cst_63 = arith.constant 1.000000e+00 : f32
    %125 = vector.broadcast %cst_63 : f32 to vector<8x128xf32>
    %126 = arith.addf %125, %124 : vector<8x128xf32>
    %127 = arith.divf %125, %126 : vector<8x128xf32>
    %128 = arith.mulf %121, %127 : vector<8x128xf32>
    %129 = arith.mulf %128, %122 : vector<8x128xf32>
    %130 = arith.truncf %129 : vector<8x128xf32> to vector<8x128xbf16>
    %c0_64 = arith.constant 0 : index
    %c0_65 = arith.constant 0 : index
    %131 = vector.load %arg10[%c0_64, %c0_65] : memref<128x32xbf16, #tpu.memory_space<vmem>>, vector<128x32xbf16>
    %cst_66 = arith.constant dense<0.000000e+00> : vector<8x32xf32>
    %132 = tpu.matmul %130, %131, %cst_66 {dimension_numbers = #tpu.dot_dimension_numbers<[1], [0], [0], [1], [0, 0, 1, 1], [], []>} : vector<8x128xbf16>, vector<128x32xbf16>, vector<8x32xf32> -> vector<8x32xf32>
    %133 = arith.addf %104, %132 : vector<8x32xf32>
    %c0_67 = arith.constant 0 : index
    %c0_68 = arith.constant 0 : index
    %c0_69 = arith.constant 0 : index
    %134 = vector.load %arg11[%c0_67, %c0_68, %c0_69] : memref<1x8x32xf32, #tpu.memory_space<vmem>>, vector<1x8x32xf32>
    %135 = vector.shape_cast %134 : vector<1x8x32xf32> to vector<8x32xf32>
    %136 = vector.shape_cast %133 : vector<8x32xf32> to vector<1x8x32xf32>
    tpu.vector_store %arg11[%c0_67, %c0_68, %c0_69], %136 {strides = array<i32>} : memref<1x8x32xf32, #tpu.memory_space<vmem>>, vector<1x8x32xf32>,
    return
  }
  func.func @transform_0(%arg0: i32, %arg1: i32) -> (i32, i32, i32) {
    %c0_i32 = arith.constant 0 : i32
    %c0_i32_0 = arith.constant 0 : i32
    return %arg0, %arg1, %c0_i32 : i32, i32, i32
  }
  func.func @transform_1(%arg0: i32, %arg1: i32) -> (i32, i32) {
    %c0_i32 = arith.constant 0 : i32
    %c0_i32_0 = arith.constant 0 : i32
    %c0_i32_1 = arith.constant 0 : i32
    return %c0_i32, %c0_i32_0 : i32, i32
  }
  func.func @transform_2(%arg0: i32, %arg1: i32) -> (i32, i32) {
    %c0_i32 = arith.constant 0 : i32
    %c0_i32_0 = arith.constant 0 : i32
    %c0_i32_1 = arith.constant 0 : i32
    return %c0_i32, %c0_i32_0 : i32, i32
  }
  func.func @transform_3(%arg0: i32, %arg1: i32) -> (i32, i32) {
    %c0_i32 = arith.constant 0 : i32
    %c0_i32_0 = arith.constant 0 : i32
    %c0_i32_1 = arith.constant 0 : i32
    return %c0_i32, %c0_i32_0 : i32, i32
  }
  func.func @transform_4(%arg0: i32, %arg1: i32) -> (i32, i32) {
    %c0_i32 = arith.constant 0 : i32
    %c0_i32_0 = arith.constant 0 : i32
    %c0_i32_1 = arith.constant 0 : i32
    return %c0_i32, %c0_i32_0 : i32, i32
  }
  func.func @transform_5(%arg0: i32, %arg1: i32) -> (i32, i32) {
    %c0_i32 = arith.constant 0 : i32
    %c0_i32_0 = arith.constant 0 : i32
    %c0_i32_1 = arith.constant 0 : i32
    return %c0_i32, %c0_i32_0 : i32, i32
  }
  func.func @transform_6(%arg0: i32, %arg1: i32) -> (i32, i32) {
    %c0_i32 = arith.constant 0 : i32
    %c0_i32_0 = arith.constant 0 : i32
    %c0_i32_1 = arith.constant 0 : i32
    return %c0_i32, %c0_i32_0 : i32, i32
  }
  func.func @transform_7(%arg0: i32, %arg1: i32) -> (i32, i32) {
    %c0_i32 = arith.constant 0 : i32
    %c0_i32_0 = arith.constant 0 : i32
    %c0_i32_1 = arith.constant 0 : i32
    return %c0_i32, %c0_i32_0 : i32, i32
  }
  func.func @transform_8(%arg0: i32, %arg1: i32) -> (i32, i32) {
    %c0_i32 = arith.constant 0 : i32
    %c0_i32_0 = arith.constant 0 : i32
    %c0_i32_1 = arith.constant 0 : i32
    return %c0_i32, %c0_i32_0 : i32, i32
  }
  func.func @transform_9(%arg0: i32, %arg1: i32) -> (i32, i32, i32) {
    %c0_i32 = arith.constant 0 : i32
    %c0_i32_0 = arith.constant 0 : i32
    return %arg0, %arg1, %c0_i32 : i32, i32, i32
  }
}

</mosaic_0001>

<llo_original>
// kernel: tpu_custom_call.1
$region0: #{tpu_custom_call.1}
  #allocation0 [shape = 'u32[]', space=smem, size = 0x4, offset = 0x4, fixed_abs, tag = 'smem constant byte address 0x4 - core index']
  #allocation1 [shape = 'u32[144,128]{1,0:T(1,128)}', space=vmem, size = 0x12000, scoped, tag = 'internal scratch']
  #allocation2 [shape = 'bf16[1,8,96]{2,1,0:T(8,128)(2,1)}', space=vmem, size = 0x800, scoped, tag = 'scratch operand']
  %s0 = inlined_call_operand.vmem [shape: f32[2,8,32], index: 0, kind: input, shape index: {}]
  %s1 = inlined_call_operand.vmem [shape: f32[1,32], index: 1, kind: input, shape index: {}]
  %s2 = inlined_call_operand.vmem [shape: f32[1,32], index: 2, kind: input, shape index: {}]
  %s3 = inlined_call_operand.vmem [shape: bf16[32,96], index: 3, kind: input, shape index: {}]
  %s4 = inlined_call_operand.vmem [shape: f32[1,96], index: 4, kind: input, shape index: {}]
  %s5 = inlined_call_operand.vmem [shape: bf16[32,32], index: 5, kind: input, shape index: {}]
  %s6 = inlined_call_operand.vmem [shape: f32[1,32], index: 6, kind: input, shape index: {}]
  %s7 = inlined_call_operand.vmem [shape: bf16[32,256], index: 7, kind: input, shape index: {}]
  %s8 = inlined_call_operand.vmem [shape: bf16[128,32], index: 8, kind: input, shape index: {}]
  %s9 = inlined_call_operand.hbm [shape: f32[2,8,32], index: 9, kind: output, shape index: {}]
  %s10 = sld [smem:[#allocation0]]
  $region97: #{tpu_custom_call.1} parent=0
    _
  %s12 = ssub.s32 1, %s10
  %s13 = scalar_select 0, %s12, %s10
  $region1: #{tpu_custom_call.1} parent=0
    #allocation3 [shape = 'u8[8192]{0}', space=vmem, size = 0x2000, scoped, tag = 'output window, operand 0']
    #allocation4 [shape = 's32[2]{0}', space=sflag, size = 0x8, scoped, tag = 'scoped memory for tpu_custom_call.1']
    %14 = vsyncpa [#allocation4], 0
    %s15 = scalar_lea.sflag [#allocation4], 1
    %16 = vsyncpa %s15, 0
    loop: start=0, step=1, limit=4
    $region2: #{tpu_custom_call.1} parent=1 // loop_pre_header
      _
    $region3: #{tpu_custom_call.1} parent=1 // loop_header
      %s18 = sphi 0, %s22
      %p19 = scmp.ge.s32.totalorder %s18, 4
      %s25 = sphi 0, %s37
      %s26 = sphi 0, %s33
      %s27 = sphi 0, %s25
      %s28 = sphi 0, %s26
      %s29 = sphi 0, %s27
      %s30 = sphi 0, %s28
      %s42 = sphi 0, %s44
      %s45 = sphi 0, %s42
      %s46 = sphi 0, %s45
      %s62 = sphi 0, %s46
      %s66 = sphi 0, %s66
      %s68 = sphi 0, %s66
      %s69 = sphi 0, %s68
      %s83 = sphi 0, %s69
      %s87 = sphi 0, %s87
      %s89 = sphi 0, %s87
      %s90 = sphi 0, %s89
      %s104 = sphi 0, %s90
      %s108 = sphi 0, %s108
      %s110 = sphi 0, %s108
      %s111 = sphi 0, %s110
      %s125 = sphi 0, %s111
      %s129 = sphi 0, %s129
      %s131 = sphi 0, %s129
      %s132 = sphi 0, %s131
      %s146 = sphi 0, %s132
      %s150 = sphi 0, %s150
      %s152 = sphi 0, %s150
      %s153 = sphi 0, %s152
      %s167 = sphi 0, %s153
      %s171 = sphi 0, %s171
      %s173 = sphi 0, %s171
      %s174 = sphi 0, %s173
      %s188 = sphi 0, %s174
      %s192 = sphi 0, %s192
      %s194 = sphi 0, %s192
      %s195 = sphi 0, %s194
      %s209 = sphi 0, %s195
      %s213 = sphi 0, %s213
      %s215 = sphi 0, %s213
      %s216 = sphi 0, %s215
      %s230 = sphi 0, %s216
      %s238 = sphi 0, %s240
      %s241 = sphi 0, %s238
      %s242 = sphi 0, %s241
      %s258 = sphi 0, %s242
    $region4: #{tpu_custom_call.1} parent=1 // loop_header_branch
      %21 = sbr.rel (%p19) target = $region8
    $region5: #{tpu_custom_call.1} parent=1 // loop_body
      %s23 = ssub.s32 %s18, 1
      %s24 = ssub.s32 %s18, 2
      %s31 = sadd.s32 1, %s26
      %p32 = scmp.ge.s32.totalorder %s31, 1
      %s33 = scalar_select %p32, 0, %s31
      %s34 = sadd.s32 1, %s25
      %s35 = scalar_select %p32, %s34, %s25
      %p36 = scmp.ge.s32.totalorder %s35, 2
      %s37 = scalar_select %p36, 0, %s35
      %s38 = ssub.s32 %s25, %s37
      %s39 = ssub.s32 %s26, %s33
      %s40 = sor.u32 %s38, %s39
      %p41 = scmp.eq.s32.totalorder %s40, 0
      %s43 = sadd.s32 %s42, 1
      %s44 = scalar_select %p41, %s42, %s43
      %p47 = pneg %p41
      %p48 = scmp.eq.s32.totalorder %s18, 1
      %p49 = por %p47, %p48
      %p50 = scmp.ne.s32.totalorder %s42, %s45
      %p51 = scmp.eq.s32.totalorder %s18, 0
      %p52 = por %p50, %p51
      %p53 = scmp.ne.s32.totalorder %s42, %s45
      %p54 = scmp.eq.s32.totalorder %s23, 1
      %p55 = por %p53, %p54
      %p56 = scmp.ne.s32.totalorder %s45, %s46
      %p57 = scmp.eq.s32.totalorder %s23, 0
      %p58 = por %p56, %p57
      %p59 = scmp.ne.s32.totalorder %s45, %s46
      %p60 = scmp.eq.s32.totalorder %s24, 1
      %p61 = por %p59, %p60
      %p63 = scmp.ne.s32.totalorder %s46, %s62
      %p64 = scmp.eq.s32.totalorder %s24, 0
      %p65 = por %p63, %p64
      %s67 = sadd.s32 %s66, 1
      %p70 = scmp.eq.s32.totalorder %s18, 1
      %p71 = scmp.ne.s32.totalorder %s66, %s68
      %p72 = scmp.eq.s32.totalorder %s18, 0
      %p73 = por %p71, %p72
      %p74 = scmp.ne.s32.totalorder %s66, %s68
      %p75 = scmp.eq.s32.totalorder %s23, 1
      %p76 = por %p74, %p75
      %p77 = scmp.ne.s32.totalorder %s68, %s69
      %p78 = scmp.eq.s32.totalorder %s23, 0
      %p79 = por %p77, %p78
      %p80 = scmp.ne.s32.totalorder %s68, %s69
      %p81 = scmp.eq.s32.totalorder %s24, 1
      %p82 = por %p80, %p81
      %p84 = scmp.ne.s32.totalorder %s69, %s83
      %p85 = scmp.eq.s32.totalorder %s24, 0
      %p86 = por %p84, %p85
      %s88 = sadd.s32 %s87, 1
      %p91 = scmp.eq.s32.totalorder %s18, 1
      %p92 = scmp.ne.s32.totalorder %s87, %s89
      %p93 = scmp.eq.s32.totalorder %s18, 0
      %p94 = por %p92, %p93
      %p95 = scmp.ne.s32.totalorder %s87, %s89
      %p96 = scmp.eq.s32.totalorder %s23, 1
      %p97 = por %p95, %p96
      %p98 = scmp.ne.s32.totalorder %s89, %s90
      %p99 = scmp.eq.s32.totalorder %s23, 0
      %p100 = por %p98, %p99
      %p101 = scmp.ne.s32.totalorder %s89, %s90
      %p102 = scmp.eq.s32.totalorder %s24, 1
      %p103 = por %p101, %p102
      %p105 = scmp.ne.s32.totalorder %s90, %s104
      %p106 = scmp.eq.s32.totalorder %s24, 0
      %p107 = por %p105, %p106
      %s109 = sadd.s32 %s108, 1
      %p112 = scmp.eq.s32.totalorder %s18, 1
      %p113 = scmp.ne.s32.totalorder %s108, %s110
      %p114 = scmp.eq.s32.totalorder %s18, 0
      %p115 = por %p113, %p114
      %p116 = scmp.ne.s32.totalorder %s108, %s110
      %p117 = scmp.eq.s32.totalorder %s23, 1
      %p118 = por %p116, %p117
      %p119 = scmp.ne.s32.totalorder %s110, %s111
      %p120 = scmp.eq.s32.totalorder %s23, 0
      %p121 = por %p119, %p120
      %p122 = scmp.ne.s32.totalorder %s110, %s111
      %p123 = scmp.eq.s32.totalorder %s24, 1
      %p124 = por %p122, %p123
      %p126 = scmp.ne.s32.totalorder %s111, %s125
      %p127 = scmp.eq.s32.totalorder %s24, 0
      %p128 = por %p126, %p127
      %s130 = sadd.s32 %s129, 1
      %p133 = scmp.eq.s32.totalorder %s18, 1
      %p134 = scmp.ne.s32.totalorder %s129, %s131
      %p135 = scmp.eq.s32.totalorder %s18, 0
      %p136 = por %p134, %p135
      %p137 = scmp.ne.s32.totalorder %s129, %s131
      %p138 = scmp.eq.s32.totalorder %s23, 1
      %p139 = por %p137, %p138
      %p140 = scmp.ne.s32.totalorder %s131, %s132
      %p141 = scmp.eq.s32.totalorder %s23, 0
      %p142 = por %p140, %p141
      %p143 = scmp.ne.s32.totalorder %s131, %s132
      %p144 = scmp.eq.s32.totalorder %s24, 1
      %p145 = por %p143, %p144
      %p147 = scmp.ne.s32.totalorder %s132, %s146
      %p148 = scmp.eq.s32.totalorder %s24, 0
      %p149 = por %p147, %p148
      %s151 = sadd.s32 %s150, 1
      %p154 = scmp.eq.s32.totalorder %s18, 1
      %p155 = scmp.ne.s32.totalorder %s150, %s152
      %p156 = scmp.eq.s32.totalorder %s18, 0
      %p157 = por %p155, %p156
      %p158 = scmp.ne.s32.totalorder %s150, %s152
      %p159 = scmp.eq.s32.totalorder %s23, 1
      %p160 = por %p158, %p159
      %p161 = scmp.ne.s32.totalorder %s152, %s153
      %p162 = scmp.eq.s32.totalorder %s23, 0
      %p163 = por %p161, %p162
      %p164 = scmp.ne.s32.totalorder %s152, %s153
      %p165 = scmp.eq.s32.totalorder %s24, 1
      %p166 = por %p164, %p165
      %p168 = scmp.ne.s32.totalorder %s153, %s167
      %p169 = scmp.eq.s32.totalorder %s24, 0
      %p170 = por %p168, %p169
      %s172 = sadd.s32 %s171, 1
      %p175 = scmp.eq.s32.totalorder %s18, 1
      %p176 = scmp.ne.s32.totalorder %s171, %s173
      %p177 = scmp.eq.s32.totalorder %s18, 0
      %p178 = por %p176, %p177
      %p179 = scmp.ne.s32.totalorder %s171, %s173
      %p180 = scmp.eq.s32.totalorder %s23, 1
      %p181 = por %p179, %p180
      %p182 = scmp.ne.s32.totalorder %s173, %s174
      %p183 = scmp.eq.s32.totalorder %s23, 0
      %p184 = por %p182, %p183
      %p185 = scmp.ne.s32.totalorder %s173, %s174
      %p186 = scmp.eq.s32.totalorder %s24, 1
      %p187 = por %p185, %p186
      %p189 = scmp.ne.s32.totalorder %s174, %s188
      %p190 = scmp.eq.s32.totalorder %s24, 0
      %p191 = por %p189, %p190
      %s193 = sadd.s32 %s192, 1
      %p196 = scmp.eq.s32.totalorder %s18, 1
      %p197 = scmp.ne.s32.totalorder %s192, %s194
      %p198 = scmp.eq.s32.totalorder %s18, 0
      %p199 = por %p197, %p198
      %p200 = scmp.ne.s32.totalorder %s192, %s194
      %p201 = scmp.eq.s32.totalorder %s23, 1
      %p202 = por %p200, %p201
      %p203 = scmp.ne.s32.totalorder %s194, %s195
      %p204 = scmp.eq.s32.totalorder %s23, 0
      %p205 = por %p203, %p204
      %p206 = scmp.ne.s32.totalorder %s194, %s195
      %p207 = scmp.eq.s32.totalorder %s24, 1
      %p208 = por %p206, %p207
      %p210 = scmp.ne.s32.totalorder %s195, %s209
      %p211 = scmp.eq.s32.totalorder %s24, 0
      %p212 = por %p210, %p211
      %s214 = sadd.s32 %s213, 1
      %p217 = scmp.eq.s32.totalorder %s18, 1
      %p218 = scmp.ne.s32.totalorder %s213, %s215
      %p219 = scmp.eq.s32.totalorder %s18, 0
      %p220 = por %p218, %p219
      %p221 = scmp.ne.s32.totalorder %s213, %s215
      %p222 = scmp.eq.s32.totalorder %s23, 1
      %p223 = por %p221, %p222
      %p224 = scmp.ne.s32.totalorder %s215, %s216
      %p225 = scmp.eq.s32.totalorder %s23, 0
      %p226 = por %p224, %p225
      %p227 = scmp.ne.s32.totalorder %s215, %s216
      %p228 = scmp.eq.s32.totalorder %s24, 1
      %p229 = por %p227, %p228
      %p231 = scmp.ne.s32.totalorder %s216, %s230
      %p232 = scmp.eq.s32.totalorder %s24, 0
      %p233 = por %p231, %p232
      %s234 = ssub.s32 %s25, %s37
      %s235 = ssub.s32 %s26, %s33
      %s236 = sor.u32 %s234, %s235
      %p237 = scmp.eq.s32.totalorder %s236, 0
      %s239 = sadd.s32 %s238, 1
      %s240 = scalar_select %p237, %s238, %s239
      %p243 = pneg %p237
      %p244 = scmp.eq.s32.totalorder %s18, 1
      %p245 = por %p243, %p244
      %p246 = scmp.ne.s32.totalorder %s238, %s241
      %p247 = scmp.eq.s32.totalorder %s18, 0
      %p248 = por %p246, %p247
      %p249 = scmp.ne.s32.totalorder %s238, %s241
      %p250 = scmp.eq.s32.totalorder %s23, 1
      %p251 = por %p249, %p250
      %p252 = scmp.ne.s32.totalorder %s241, %s242
      %p253 = scmp.eq.s32.totalorder %s23, 0
      %p254 = por %p252, %p253
      %p255 = scmp.ne.s32.totalorder %s241, %s242
      %p256 = scmp.eq.s32.totalorder %s24, 1
      %p257 = por %p255, %p256
      %p259 = scmp.ne.s32.totalorder %s242, %s258
      %p260 = scmp.eq.s32.totalorder %s24, 0
      %p261 = por %p259, %p260
      %p262 = scmp.le.s32.totalorder 1, %s18
      %p263 = scmp.lt.s32.totalorder %s18, 3
      %p264 = pnand %p262, %p263
      %p265 = pneg %p264
      // Predicated region
      $region9: #{tpu_custom_call.1} parent=5 // pred_check
        _
      $region10: #{tpu_custom_call.1} parent=5 // pred_check_branch
        %267 = sbr.rel (%p264) target = $region12
      $region11: #{tpu_custom_call.1} parent=5 // pred_region
        %s268 = ssub.s32 %s18, 1
        // Predicated region
        $region13: #{tpu_custom_call.1} parent=11 // pred_check
          %p269 = pneg %p79
        $region14: #{tpu_custom_call.1} parent=11 // pred_check_branch
          %271 = sbr.rel (%p269) target = $region16
        $region15: #{tpu_custom_call.1} parent=11 // pred_region
          _
        $region16: #{tpu_custom_call.1} parent=11 // pred_fallthru
          _
        // Predicated region
        $region17: #{tpu_custom_call.1} parent=11 // pred_check
          %p272 = pneg %p100
        $region18: #{tpu_custom_call.1} parent=11 // pred_check_branch
          %274 = sbr.rel (%p272) target = $region20
        $region19: #{tpu_custom_call.1} parent=11 // pred_region
          _
        $region20: #{tpu_custom_call.1} parent=11 // pred_fallthru
          _
        // Predicated region
        $region21: #{tpu_custom_call.1} parent=11 // pred_check
          %p275 = pneg %p121
        $region22: #{tpu_custom_call.1} parent=11 // pred_check_branch
          %277 = sbr.rel (%p275) target = $region24
        $region23: #{tpu_custom_call.1} parent=11 // pred_region
          _
        $region24: #{tpu_custom_call.1} parent=11 // pred_fallthru
          _
        // Predicated region
        $region25: #{tpu_custom_call.1} parent=11 // pred_check
          %p278 = pneg %p142
        $region26: #{tpu_custom_call.1} parent=11 // pred_check_branch
          %280 = sbr.rel (%p278) target = $region28
        $region27: #{tpu_custom_call.1} parent=11 // pred_region
          _
        $region28: #{tpu_custom_call.1} parent=11 // pred_fallthru
          _
        // Predicated region
        $region29: #{tpu_custom_call.1} parent=11 // pred_check
          %p281 = pneg %p163
        $region30: #{tpu_custom_call.1} parent=11 // pred_check_branch
          %283 = sbr.rel (%p281) target = $region32
        $region31: #{tpu_custom_call.1} parent=11 // pred_region
          _
        $region32: #{tpu_custom_call.1} parent=11 // pred_fallthru
          _
        // Predicated region
        $region33: #{tpu_custom_call.1} parent=11 // pred_check
          %p284 = pneg %p184
        $region34: #{tpu_custom_call.1} parent=11 // pred_check_branch
          %286 = sbr.rel (%p284) target = $region36
        $region35: #{tpu_custom_call.1} parent=11 // pred_region
          _
        $region36: #{tpu_custom_call.1} parent=11 // pred_fallthru
          _
        // Predicated region
        $region37: #{tpu_custom_call.1} parent=11 // pred_check
          %p287 = pneg %p205
        $region38: #{tpu_custom_call.1} parent=11 // pred_check_branch
          %289 = sbr.rel (%p287) target = $region40
        $region39: #{tpu_custom_call.1} parent=11 // pred_region
          _
        $region40: #{tpu_custom_call.1} parent=11 // pred_fallthru
          _
        // Predicated region
        $region41: #{tpu_custom_call.1} parent=11 // pred_check
          %p290 = pneg %p226
        $region42: #{tpu_custom_call.1} parent=11 // pred_check_branch
          %292 = sbr.rel (%p290) target = $region44
        $region43: #{tpu_custom_call.1} parent=11 // pred_region
          _
        $region44: #{tpu_custom_call.1} parent=11 // pred_fallthru
          _
      $region12: #{tpu_custom_call.1} parent=5 // pred_fallthru
        _
      %p293 = scmp.lt.s32.totalorder %s18, 2
      // Predicated region
      $region45: #{tpu_custom_call.1} parent=5 // pred_check
        %p294 = pneg %p293
      $region46: #{tpu_custom_call.1} parent=5 // pred_check_branch
        %296 = sbr.rel (%p294) target = $region48
      $region47: #{tpu_custom_call.1} parent=5 // pred_region
        // Predicated region
        $region49: #{tpu_custom_call.1} parent=47 // pred_check
          %p297 = pneg %p52
        $region50: #{tpu_custom_call.1} parent=47 // pred_check_branch
          %299 = sbr.rel (%p297) target = $region52
        $region51: #{tpu_custom_call.1} parent=47 // pred_region
          %p300 = scmp.lt.s32.totalorder %s25, 1
          %s301 = scalar_select %p300, %s25, 1
          %p302 = scmp.lt.s32.totalorder %s26, 0
          %s303 = scalar_select %p302, %s26, 0
          %s304 = sadd.s32 %s303, %s301
          %s305 = smul.addr %s304, 8
          %s306 = scalar_lea.vmem %s0, %s305
        $region52: #{tpu_custom_call.1} parent=47 // pred_fallthru
          _
      $region48: #{tpu_custom_call.1} parent=5 // pred_fallthru
        _
      %p307 = scmp.le.s32.totalorder 1, %s18
      %p308 = scmp.lt.s32.totalorder %s18, 3
      %p309 = pnand %p307, %p308
      %p310 = pneg %p309
      // Predicated region
      $region53: #{tpu_custom_call.1} parent=5 // pred_check
        _
      $region54: #{tpu_custom_call.1} parent=5 // pred_check_branch
        %312 = sbr.rel (%p309) target = $region56
      $region55: #{tpu_custom_call.1} parent=5 // pred_region
        %s313 = ssub.s32 %s18, 1
        %p314 = scmp.lt.s32.totalorder %s27, 1
        %s315 = scalar_select %p314, %s27, 1
        %p316 = scmp.lt.s32.totalorder %s28, 0
        %s317 = scalar_select %p316, %s28, 0
        %s318 = sadd.s32 %s317, %s315
        %s319 = smul.addr %s318, 8
        %s320 = scalar_lea.vmem %s0, %s319
        %p321 = pneg %p58
        %p322 = pneg %p55
        %p323 = pneg %p79
        %p324 = pneg %p76
        %p325 = pneg %p100
        %p326 = pneg %p97
        %p327 = pneg %p121
        %p328 = pneg %p118
        %p329 = pneg %p142
        %p330 = pneg %p139
        %p331 = pneg %p163
        %p332 = pneg %p160
        %p333 = pneg %p184
        %p334 = pneg %p181
        %p335 = pneg %p205
        %p336 = pneg %p202
        %p337 = pneg %p226
        %p338 = pneg %p223
        %p339 = pneg %p254
        %p340 = pneg %p251
        %s341 = sand.u32 %s241, 1
        %s342 = scalar_lea.sflag [#allocation4], %s341
        %s343 = sand.u32 %s241, 1
        %s344 = smul.addr %s343, 8
        %s345 = scalar_lea.vmem [#allocation3], %s344
        %p346 = scmp.lt.s32.totalorder %s27, 1
        %s347 = scalar_select %p346, %s27, 1
        %p348 = scmp.lt.s32.totalorder %s28, 0
        %s349 = scalar_select %p348, %s28, 0
        %s350 = sadd.s32 %s349, %s347
        %s351 = smul.addr %s350, 8
        %s352 = scalar_lea.vmem %s0, %s351
        %v354 = vld [vmem:[%s352] sm:$0xff]
        %v355 = vld [vmem:[%s1] sm:$0x1]
        %v356 = vmul.f32 %v354, %v354
        %vm357 = vcmask 261120
        %v358 = vsel %vm357, %v356, 0.0
        %359 = vadd.xlane.f32.xlu0 %v358
        %v360 = vpop.xlane.xlu0 %359
        %v361 = vrcp.pop 32.0
        %v362 = vmul.f32 %v360, %v361
        %v363 = vadd.f32 %v362, 1e-06
        %v364 = vrsqrt.pop %v363
        %v365 = vmul.f32 %v354, %v364
        %v367 = vlaneseq
        %v368 = vshrl.u32 %v367, 7
        %v369 = vsub.s32 0, %v368
        %v370 = vrot.slane %v355, %v369
        %v372 = vmul.f32 %v365, %v370
        %v373 = vpack.c.bf16 %v372, %v372
        %v374 = vld [vmem:[%s3] sm:$0xf]
        %v375 = vld [vmem:[%s3 + $0x4] sm:$0xf]
        %v376 = vld [vmem:[%s3 + $0x8] sm:$0xf]
        %v377 = vld [vmem:[%s3 + $0xc] sm:$0xf]
        %v378 = vld [vmem:[%s4] sm:$0x1]
        %v380 = vlaneseq
        %v381 = vshrl.u32 %v380, 7
        %v382 = vsub.s32 0, %v381
        %v383 = vrot.slane %v378, %v382
        %v389 = vunpack.c.l.b16 %v374
        %v390 = vunpack.c.l.b16 %v375
        %v391 = vunpack.c.l.b16 %v376
        %v392 = vunpack.c.l.b16 %v377
        %v393 = vpack.c.b16 %v390, %v389
        %v394 = vpack.c.b16 %v392, %v391
        %v398 = vsel %vm357, %v373, 0
        %400 = vmatprep.subr.bf16.mxu0 0
        %401 = vmatpush1.bf16.msra.mxu0 %v393
        %402 = vmatprep.subr.bf16.mxu0 0
        %403 = vmatpush1.bf16.msra.mxu0 %v394
        %404 = vmatprep.subr.bf16.mxu0 0
        %405 = vmatpush1.bf16.msra.mxu0 0
        %406 = vmatprep.subr.bf16.mxu0 0
        %407 = vmatpush1.bf16.msra.mxu0 0
        %408 = vmatprep.subr.bf16.mxu0 0
        %409 = vmatpush1.bf16.msra.mxu0 0
        %410 = vmatprep.subr.bf16.mxu0 0
        %411 = vmatpush1.bf16.msra.mxu0 0
        %412 = vmatprep.subr.bf16.mxu0 0
        %413 = vmatpush1.bf16.msra.mxu0 0
        %414 = vmatprep.subr.bf16.mxu0 0
        %415 = vmatpush1.bf16.msra.mxu0 0
        %416 = vmatprep.subr.bf16.mxu0 0
        %417 = vmatpush1.bf16.msra.mxu0 0
        %418 = vmatprep.subr.bf16.mxu0 0
        %419 = vmatpush1.bf16.msra.mxu0 0
        %420 = vmatprep.subr.bf16.mxu0 0
        %421 = vmatpush1.bf16.msra.mxu0 0
        %422 = vmatprep.subr.bf16.mxu0 0
        %423 = vmatpush1.bf16.msra.mxu0 0
        %424 = vmatprep.subr.bf16.mxu0 0
        %425 = vmatpush1.bf16.msra.mxu0 0
        %426 = vmatprep.subr.bf16.mxu0 0
        %427 = vmatpush1.bf16.msra.mxu0 0
        %428 = vmatprep.subr.bf16.mxu0 0
        %429 = vmatpush1.bf16.msra.mxu0 0
        %430 = vmatprep.subr.bf16.mxu0 0
        %431 = vmatpush1.bf16.msra.mxu0 0
        %432 = vmatprep.mubr.bf16.mxu0 0
        %433 = vmatmul.mubr.bf16.gmra.mrb[0].mxu0 %v398
        %v434 = vpop.f32.mrb[0].mxu0
        %v435 = vadd.f32 %v383, %v434
        %v436 = vpop.f32.mrb[0].mxu0
        %v437 = vpop.f32.mrb[0].mxu0
        %v438 = vpop.f32.mrb[0].mxu0
        %439 = vdwg.mxu0
        %v440 = vpack.c.bf16 %v435, %v435
        %s441 = smul.addr %s28, 4
        %s442 = scalar_lea.vmem [#allocation2], %s441
        %vm443 = vcmask 781312
        %444 = vst.msk [vmem:[%s442] sm:$0xf] %vm443, %v440
        %s445 = smul.u32 %s28, 8
        %v446 = vlaneseq
        %v447 = vshrl.u32 %v446, 7
        %v448 = vstv %s445
        %v449 = vadd.s32 %v448, %v447
        %v450 = vlaneseq
        %v451 = vand.u32 %v450, 127
        %v452 = vld [vmem:[%s442] sm:$0xf]
        %s453 = sadd.s32 %s28, 1
        // While loop
        $region57: #{tpu_custom_call.1} parent=55 // loop_pre_header
          _
        $region58: #{tpu_custom_call.1} parent=55 // loop_header
          %s455 = sphi 0, %s457
          %p456 = scmp.ge.s32.totalorder %s455, %s453
          %v460 = vphi -inf, %v526
          %v461 = vphi 0.0, %v540
          %v462 = vphi 0.0, %v591
        $region59: #{tpu_custom_call.1} parent=55 // loop_header_branch
          %459 = sbr.rel (%p456) target = $region63
        $region60: #{tpu_custom_call.1} parent=55 // loop_body
          %s463 = smul.u32 %s455, 8
          %s464 = smul.addr %s455, 4
          %s465 = scalar_lea.vmem [#allocation2], %s464
          %v466 = vld [vmem:[%s465] sm:$0xf]
          %v468 = vunpack.c.l.b16 %v466
          %v469 = vpack.c.b16 %v468, %v468
          %470 = vrot.lane.b32.xlu0 %v469, 96
          %v471 = vpop.permute.xlu0 %470
          %vm472 = vcmask 64512
          %v474 = vsel %vm472, %v452, 0
          %v477 = vsel %vm472, %v471, 0
          %479 = vmatprep.subr.bf16.mxu0 0
          %480 = vmatpush1.bf16.xpose.msra.mxu0 %v477
          %481 = vmatprep.subr.bf16.mxu0 0
          %482 = vmatpush1.bf16.xpose.msra.mxu0 0
          %483 = vmatprep.subr.bf16.mxu0 0
          %484 = vmatpush1.bf16.xpose.msra.mxu0 0
          %485 = vmatprep.subr.bf16.mxu0 0
          %486 = vmatpush1.bf16.xpose.msra.mxu0 0
          %487 = vmatprep.subr.bf16.mxu0 0
          %488 = vmatpush1.bf16.xpose.msra.mxu0 0
          %489 = vmatprep.subr.bf16.mxu0 0
          %490 = vmatpush1.bf16.xpose.msra.mxu0 0
          %491 = vmatprep.subr.bf16.mxu0 0
          %492 = vmatpush1.bf16.xpose.msra.mxu0 0
          %493 = vmatprep.subr.bf16.mxu0 0
          %494 = vmatpush1.bf16.xpose.msra.mxu0 0
          %495 = vmatprep.subr.bf16.mxu0 0
          %496 = vmatpush1.bf16.xpose.msra.mxu0 0
          %497 = vmatprep.subr.bf16.mxu0 0
          %498 = vmatpush1.bf16.xpose.msra.mxu0 0
          %499 = vmatprep.subr.bf16.mxu0 0
          %500 = vmatpush1.bf16.xpose.msra.mxu0 0
          %501 = vmatprep.subr.bf16.mxu0 0
          %502 = vmatpush1.bf16.xpose.msra.mxu0 0
          %503 = vmatprep.subr.bf16.mxu0 0
          %504 = vmatpush1.bf16.xpose.msra.mxu0 0
          %505 = vmatprep.subr.bf16.mxu0 0
          %506 = vmatpush1.bf16.xpose.msra.mxu0 0
          %507 = vmatprep.subr.bf16.mxu0 0
          %508 = vmatpush1.bf16.xpose.msra.mxu0 0
          %509 = vmatprep.subr.bf16.mxu0 0
          %510 = vmatpush1.bf16.xpose.msra.mxu0 0
          %511 = vmatprep.mubr.bf16.mxu0 0
          %512 = vmatmul.mubr.bf16.gmra.mrb[0].mxu0 %v474
          %v513 = vpop.f32.mrb[0].mxu0
          %v514 = vadd.f32 0.0, %v513
          %v515 = vpop.f32.mrb[0].mxu0
          %v516 = vpop.f32.mrb[0].mxu0
          %v517 = vpop.f32.mrb[0].mxu0
          %518 = vdwg.mxu0
          %v519 = vstv %s463
          %v520 = vadd.s32 %v519, %v451
          %vm521 = vcmp.ge.s32.totalorder %v449, %v520
          %v522 = vsel %vm521, %v514, -1e+30
          %v523 = vsel %vm472, %v522, -inf
          %524 = vmax.xlane.f32.xlu0 %v523
          %v525 = vpop.xlane.xlu0 %524
          %v526 = vmax.f32 %v460, %v525
          %v527 = vsub.f32 %v460, %v526
          %v528 = vmul.f32 %v527, 1.442695
          %v529 = vpow.pop %v528
          %v530 = vsub.f32 %v522, %v526
          %v531 = vpack.c.bf16 %v530, %v530
          %v533 = vmul.bf16 %v531, 1069105081
          %v534 = vpow.bf16.pop %v533
          %v535 = vmul.f32 %v529, %v461
          %v536 = vunpack.c.l.bf16 %v534
          %v537 = vsel %vm472, %v536, 0.0
          %538 = vadd.xlane.f32.xlu0 %v537
          %v539 = vpop.xlane.xlu0 %538
          %v540 = vadd.f32 %v535, %v539
          %v541 = vmul.f32 %v529, %v462
          %542 = vrot.lane.b32.xlu0 %v469, 64
          %v543 = vpop.permute.xlu0 %542
          %v545 = vsel %vm472, %v534, 0
          %vm547 = vcmask 1043456
          %v549 = vsel %vm547, %v543, 0
          %551 = vmatprep.subr.bf16.mxu0 0
          %552 = vmatpush1.bf16.msra.mxu0 %v549
          %553 = vmatprep.subr.bf16.mxu0 0
          %554 = vmatpush1.bf16.msra.mxu0 0
          %555 = vmatprep.subr.bf16.mxu0 0
          %556 = vmatpush1.bf16.msra.mxu0 0
          %557 = vmatprep.subr.bf16.mxu0 0
          %558 = vmatpush1.bf16.msra.mxu0 0
          %559 = vmatprep.subr.bf16.mxu0 0
          %560 = vmatpush1.bf16.msra.mxu0 0
          %561 = vmatprep.subr.bf16.mxu0 0
          %562 = vmatpush1.bf16.msra.mxu0 0
          %563 = vmatprep.subr.bf16.mxu0 0
          %564 = vmatpush1.bf16.msra.mxu0 0
          %565 = vmatprep.subr.bf16.mxu0 0
          %566 = vmatpush1.bf16.msra.mxu0 0
          %567 = vmatprep.subr.bf16.mxu0 0
          %568 = vmatpush1.bf16.msra.mxu0 0
          %569 = vmatprep.subr.bf16.mxu0 0
          %570 = vmatpush1.bf16.msra.mxu0 0
          %571 = vmatprep.subr.bf16.mxu0 0
          %572 = vmatpush1.bf16.msra.mxu0 0
          %573 = vmatprep.subr.bf16.mxu0 0
          %574 = vmatpush1.bf16.msra.mxu0 0
          %575 = vmatprep.subr.bf16.mxu0 0
          %576 = vmatpush1.bf16.msra.mxu0 0
          %577 = vmatprep.subr.bf16.mxu0 0
          %578 = vmatpush1.bf16.msra.mxu0 0
          %579 = vmatprep.subr.bf16.mxu0 0
          %580 = vmatpush1.bf16.msra.mxu0 0
          %581 = vmatprep.subr.bf16.mxu0 0
          %582 = vmatpush1.bf16.msra.mxu0 0
          %583 = vmatprep.mubr.bf16.mxu0 0
          %584 = vmatmul.mubr.bf16.gmra.mrb[0].mxu0 %v545
          %v585 = vpop.f32.mrb[0].mxu0
          %v586 = vadd.f32 0.0, %v585
          %v587 = vpop.f32.mrb[0].mxu0
          %v588 = vpop.f32.mrb[0].mxu0
          %v589 = vpop.f32.mrb[0].mxu0
          %590 = vdwg.mxu0
          %v591 = vadd.f32 %v541, %v586
        $region61: #{tpu_custom_call.1} parent=55 // loop_footer
          %s457 = sadd.s32 %s455, 1
        $region62: #{tpu_custom_call.1} parent=55 // loop_footer_branch
          %454 = sbr.rel target = $region58
        $region63: #{tpu_custom_call.1} parent=55 // loop_exit
          _
        %v592 = vrcp.pop %v461
        %v593 = vmul.f32 %v462, %v592
        %v594 = vpack.c.bf16 %v593, %v593
        %v595 = vld [vmem:[%s5] sm:$0xf]
        // While loop
        $region64: #{tpu_custom_call.1} parent=55 // loop_pre_header
          _
        $region65: #{tpu_custom_call.1} parent=55 // loop_header
          %s597 = sphi 0, %s599
          %p598 = scmp.ge.s32.totalorder %s597, %s453
          %v602 = vphi -inf, %v673
          %v603 = vphi 0.0, %v687
          %v604 = vphi 0.0, %v738
        $region66: #{tpu_custom_call.1} parent=55 // loop_header_branch
          %601 = sbr.rel (%p598) target = $region70
        $region67: #{tpu_custom_call.1} parent=55 // loop_body
          %s605 = smul.u32 %s597, 8
          %s606 = smul.addr %s597, 4
          %s607 = scalar_lea.vmem [#allocation2], %s606
          %v608 = vld [vmem:[%s607] sm:$0xf]
          %v610 = vunpack.c.l.b16 %v452
          %v611 = vpack.c.b16 %v610, %v610
          %612 = vrot.lane.b32.xlu0 %v611, 120
          %v613 = vpop.permute.xlu0 %612
          %v615 = vunpack.c.l.b16 %v608
          %v616 = vpack.c.b16 %v615, %v615
          %617 = vrot.lane.b32.xlu0 %v616, 88
          %v618 = vpop.permute.xlu0 %617
          %vm619 = vcmask 64512
          %v621 = vsel %vm619, %v613, 0
          %v624 = vsel %vm619, %v618, 0
          %626 = vmatprep.subr.bf16.mxu0 0
          %627 = vmatpush1.bf16.xpose.msra.mxu0 %v624
          %628 = vmatprep.subr.bf16.mxu0 0
          %629 = vmatpush1.bf16.xpose.msra.mxu0 0
          %630 = vmatprep.subr.bf16.mxu0 0
          %631 = vmatpush1.bf16.xpose.msra.mxu0 0
          %632 = vmatprep.subr.bf16.mxu0 0
          %633 = vmatpush1.bf16.xpose.msra.mxu0 0
          %634 = vmatprep.subr.bf16.mxu0 0
          %635 = vmatpush1.bf16.xpose.msra.mxu0 0
          %636 = vmatprep.subr.bf16.mxu0 0
          %637 = vmatpush1.bf16.xpose.msra.mxu0 0
          %638 = vmatprep.subr.bf16.mxu0 0
          %639 = vmatpush1.bf16.xpose.msra.mxu0 0
          %640 = vmatprep.subr.bf16.mxu0 0
          %641 = vmatpush1.bf16.xpose.msra.mxu0 0
          %642 = vmatprep.subr.bf16.mxu0 0
          %643 = vmatpush1.bf16.xpose.msra.mxu0 0
          %644 = vmatprep.subr.bf16.mxu0 0
          %645 = vmatpush1.bf16.xpose.msra.mxu0 0
          %646 = vmatprep.subr.bf16.mxu0 0
          %647 = vmatpush1.bf16.xpose.msra.mxu0 0
          %648 = vmatprep.subr.bf16.mxu0 0
          %649 = vmatpush1.bf16.xpose.msra.mxu0 0
          %650 = vmatprep.subr.bf16.mxu0 0
          %651 = vmatpush1.bf16.xpose.msra.mxu0 0
          %652 = vmatprep.subr.bf16.mxu0 0
          %653 = vmatpush1.bf16.xpose.msra.mxu0 0
          %654 = vmatprep.subr.bf16.mxu0 0
          %655 = vmatpush1.bf16.xpose.msra.mxu0 0
          %656 = vmatprep.subr.bf16.mxu0 0
          %657 = vmatpush1.bf16.xpose.msra.mxu0 0
          %658 = vmatprep.mubr.bf16.mxu0 0
          %659 = vmatmul.mubr.bf16.gmra.mrb[0].mxu0 %v621
          %v660 = vpop.f32.mrb[0].mxu0
          %v661 = vadd.f32 0.0, %v660
          %v662 = vpop.f32.mrb[0].mxu0
          %v663 = vpop.f32.mrb[0].mxu0
          %v664 = vpop.f32.mrb[0].mxu0
          %665 = vdwg.mxu0
          %v666 = vstv %s605
          %v667 = vadd.s32 %v666, %v451
          %vm668 = vcmp.ge.s32.totalorder %v449, %v667
          %v669 = vsel %vm668, %v661, -1e+30
          %v670 = vsel %vm619, %v669, -inf
          %671 = vmax.xlane.f32.xlu0 %v670
          %v672 = vpop.xlane.xlu0 %671
          %v673 = vmax.f32 %v602, %v672
          %v674 = vsub.f32 %v602, %v673
          %v675 = vmul.f32 %v674, 1.442695
          %v676 = vpow.pop %v675
          %v677 = vsub.f32 %v669, %v673
          %v678 = vpack.c.bf16 %v677, %v677
          %v680 = vmul.bf16 %v678, 1069105081
          %v681 = vpow.bf16.pop %v680
          %v682 = vmul.f32 %v676, %v603
          %v683 = vunpack.c.l.bf16 %v681
          %v684 = vsel %vm619, %v683, 0.0
          %685 = vadd.xlane.f32.xlu0 %v684
          %v686 = vpop.xlane.xlu0 %685
          %v687 = vadd.f32 %v682, %v686
          %v688 = vmul.f32 %v676, %v604
          %689 = vrot.lane.b32.xlu0 %v616, 56
          %v690 = vpop.permute.xlu0 %689
          %v692 = vsel %vm619, %v681, 0
          %vm694 = vcmask 1043456
          %v696 = vsel %vm694, %v690, 0
          %698 = vmatprep.subr.bf16.mxu0 0
          %699 = vmatpush1.bf16.msra.mxu0 %v696
          %700 = vmatprep.subr.bf16.mxu0 0
          %701 = vmatpush1.bf16.msra.mxu0 0
          %702 = vmatprep.subr.bf16.mxu0 0
          %703 = vmatpush1.bf16.msra.mxu0 0
          %704 = vmatprep.subr.bf16.mxu0 0
          %705 = vmatpush1.bf16.msra.mxu0 0
          %706 = vmatprep.subr.bf16.mxu0 0
          %707 = vmatpush1.bf16.msra.mxu0 0
          %708 = vmatprep.subr.bf16.mxu0 0
          %709 = vmatpush1.bf16.msra.mxu0 0
          %710 = vmatprep.subr.bf16.mxu0 0
          %711 = vmatpush1.bf16.msra.mxu0 0
          %712 = vmatprep.subr.bf16.mxu0 0
          %713 = vmatpush1.bf16.msra.mxu0 0
          %714 = vmatprep.subr.bf16.mxu0 0
          %715 = vmatpush1.bf16.msra.mxu0 0
          %716 = vmatprep.subr.bf16.mxu0 0
          %717 = vmatpush1.bf16.msra.mxu0 0
          %718 = vmatprep.subr.bf16.mxu0 0
          %719 = vmatpush1.bf16.msra.mxu0 0
          %720 = vmatprep.subr.bf16.mxu0 0
          %721 = vmatpush1.bf16.msra.mxu0 0
          %722 = vmatprep.subr.bf16.mxu0 0
          %723 = vmatpush1.bf16.msra.mxu0 0
          %724 = vmatprep.subr.bf16.mxu0 0
          %725 = vmatpush1.bf16.msra.mxu0 0
          %726 = vmatprep.subr.bf16.mxu0 0
          %727 = vmatpush1.bf16.msra.mxu0 0
          %728 = vmatprep.subr.bf16.mxu0 0
          %729 = vmatpush1.bf16.msra.mxu0 0
          %730 = vmatprep.mubr.bf16.mxu0 0
          %731 = vmatmul.mubr.bf16.gmra.mrb[0].mxu0 %v692
          %v732 = vpop.f32.mrb[0].mxu0
          %v733 = vadd.f32 0.0, %v732
          %v734 = vpop.f32.mrb[0].mxu0
          %v735 = vpop.f32.mrb[0].mxu0
          %v736 = vpop.f32.mrb[0].mxu0
          %737 = vdwg.mxu0
          %v738 = vadd.f32 %v688, %v733
        $region68: #{tpu_custom_call.1} parent=55 // loop_footer
          %s599 = sadd.s32 %s597, 1
        $region69: #{tpu_custom_call.1} parent=55 // loop_footer_branch
          %596 = sbr.rel target = $region65
        $region70: #{tpu_custom_call.1} parent=55 // loop_exit
          _
        %v739 = vrcp.pop %v603
        %v740 = vmul.f32 %v604, %v739
        %v741 = vpack.c.bf16 %v740, %v740
        %v742 = vld [vmem:[%s5 + $0x4] sm:$0xf]
        %vm743 = vcmask 64512
        %v745 = vsel %vm743, %v741, 0
        %vm747 = vcmask 1043456
        %v749 = vsel %vm747, %v742, 0
        %751 = vmatprep.subr.bf16.mxu0 0
        %752 = vmatpush1.bf16.msra.mxu0 %v749
        %753 = vmatprep.subr.bf16.mxu0 0
        %754 = vmatpush1.bf16.msra.mxu0 0
        %755 = vmatprep.subr.bf16.mxu0 0
        %756 = vmatpush1.bf16.msra.mxu0 0
        %757 = vmatprep.subr.bf16.mxu0 0
        %758 = vmatpush1.bf16.msra.mxu0 0
        %759 = vmatprep.subr.bf16.mxu0 0
        %760 = vmatpush1.bf16.msra.mxu0 0
        %761 = vmatprep.subr.bf16.mxu0 0
        %762 = vmatpush1.bf16.msra.mxu0 0
        %763 = vmatprep.subr.bf16.mxu0 0
        %764 = vmatpush1.bf16.msra.mxu0 0
        %765 = vmatprep.subr.bf16.mxu0 0
        %766 = vmatpush1.bf16.msra.mxu0 0
        %767 = vmatprep.subr.bf16.mxu0 0
        %768 = vmatpush1.bf16.msra.mxu0 0
        %769 = vmatprep.subr.bf16.mxu0 0
        %770 = vmatpush1.bf16.msra.mxu0 0
        %771 = vmatprep.subr.bf16.mxu0 0
        %772 = vmatpush1.bf16.msra.mxu0 0
        %773 = vmatprep.subr.bf16.mxu0 0
        %774 = vmatpush1.bf16.msra.mxu0 0
        %775 = vmatprep.subr.bf16.mxu0 0
        %776 = vmatpush1.bf16.msra.mxu0 0
        %777 = vmatprep.subr.bf16.mxu0 0
        %778 = vmatpush1.bf16.msra.mxu0 0
        %779 = vmatprep.subr.bf16.mxu0 0
        %780 = vmatpush1.bf16.msra.mxu0 0
        %781 = vmatprep.subr.bf16.mxu0 0
        %782 = vmatpush1.bf16.msra.mxu0 0
        %783 = vmatprep.mubr.bf16.mxu0 0
        %784 = vmatmul.mubr.bf16.gmra.mrb[0].mxu0 %v745
        %v785 = vpop.f32.mrb[0].mxu0
        %v786 = vadd.f32 0.0, %v785
        %v787 = vpop.f32.mrb[0].mxu0
        %v788 = vpop.f32.mrb[0].mxu0
        %v789 = vpop.f32.mrb[0].mxu0
        %790 = vdwg.mxu0
        %v792 = vsel %vm743, %v594, 0
        %v795 = vsel %vm747, %v595, 0
        %797 = vmatprep.subr.bf16.mxu0 0
        %798 = vmatpush1.bf16.msra.mxu0 %v795
        %799 = vmatprep.subr.bf16.mxu0 0
        %800 = vmatpush1.bf16.msra.mxu0 0
        %801 = vmatprep.subr.bf16.mxu0 0
        %802 = vmatpush1.bf16.msra.mxu0 0
        %803 = vmatprep.subr.bf16.mxu0 0
        %804 = vmatpush1.bf16.msra.mxu0 0
        %805 = vmatprep.subr.bf16.mxu0 0
        %806 = vmatpush1.bf16.msra.mxu0 0
        %807 = vmatprep.subr.bf16.mxu0 0
        %808 = vmatpush1.bf16.msra.mxu0 0
        %809 = vmatprep.subr.bf16.mxu0 0
        %810 = vmatpush1.bf16.msra.mxu0 0
        %811 = vmatprep.subr.bf16.mxu0 0
        %812 = vmatpush1.bf16.msra.mxu0 0
        %813 = vmatprep.subr.bf16.mxu0 0
        %814 = vmatpush1.bf16.msra.mxu0 0
        %815 = vmatprep.subr.bf16.mxu0 0
        %816 = vmatpush1.bf16.msra.mxu0 0
        %817 = vmatprep.subr.bf16.mxu0 0
        %818 = vmatpush1.bf16.msra.mxu0 0
        %819 = vmatprep.subr.bf16.mxu0 0
        %820 = vmatpush1.bf16.msra.mxu0 0
        %821 = vmatprep.subr.bf16.mxu0 0
        %822 = vmatpush1.bf16.msra.mxu0 0
        %823 = vmatprep.subr.bf16.mxu0 0
        %824 = vmatpush1.bf16.msra.mxu0 0
        %825 = vmatprep.subr.bf16.mxu0 0
        %826 = vmatpush1.bf16.msra.mxu0 0
        %827 = vmatprep.subr.bf16.mxu0 0
        %828 = vmatpush1.bf16.msra.mxu0 0
        %829 = vmatprep.mubr.bf16.mxu0 0
        %830 = vmatmul.mubr.bf16.gmra.mrb[0].mxu0 %v792
        %v831 = vpop.f32.mrb[0].mxu0
        %v832 = vadd.f32 %v786, %v831
        %v833 = vpop.f32.mrb[0].mxu0
        %v834 = vpop.f32.mrb[0].mxu0
        %v835 = vpop.f32.mrb[0].mxu0
        %836 = vdwg.mxu0
        // While loop
        $region71: #{tpu_custom_call.1} parent=55 // loop_pre_header
          _
        $region72: #{tpu_custom_call.1} parent=55 // loop_header
          %s838 = sphi 0, %s840
          %p839 = scmp.ge.s32.totalorder %s838, %s453
          %v843 = vphi -inf, %v913
          %v844 = vphi 0.0, %v927
          %v845 = vphi 0.0, %v977
        $region73: #{tpu_custom_call.1} parent=55 // loop_header_branch
          %842 = sbr.rel (%p839) target = $region77
        $region74: #{tpu_custom_call.1} parent=55 // loop_body
          %s846 = smul.u32 %s838, 8
          %s847 = smul.addr %s838, 4
          %s848 = scalar_lea.vmem [#allocation2], %s847
          %v849 = vld [vmem:[%s848] sm:$0xf]
          %v851 = vunpack.c.l.b16 %v452
          %v852 = vpack.c.b16 %v851, %v851
          %853 = vrot.lane.b32.xlu0 %v852, 112
          %v854 = vpop.permute.xlu0 %853
          %v856 = vunpack.c.l.b16 %v849
          %v857 = vpack.c.b16 %v856, %v856
          %858 = vrot.lane.b32.xlu0 %v857, 80
          %v859 = vpop.permute.xlu0 %858
          %v861 = vsel %vm743, %v854, 0
          %v864 = vsel %vm743, %v859, 0
          %866 = vmatprep.subr.bf16.mxu0 0
          %867 = vmatpush1.bf16.xpose.msra.mxu0 %v864
          %868 = vmatprep.subr.bf16.mxu0 0
          %869 = vmatpush1.bf16.xpose.msra.mxu0 0
          %870 = vmatprep.subr.bf16.mxu0 0
          %871 = vmatpush1.bf16.xpose.msra.mxu0 0
          %872 = vmatprep.subr.bf16.mxu0 0
          %873 = vmatpush1.bf16.xpose.msra.mxu0 0
          %874 = vmatprep.subr.bf16.mxu0 0
          %875 = vmatpush1.bf16.xpose.msra.mxu0 0
          %876 = vmatprep.subr.bf16.mxu0 0
          %877 = vmatpush1.bf16.xpose.msra.mxu0 0
          %878 = vmatprep.subr.bf16.mxu0 0
          %879 = vmatpush1.bf16.xpose.msra.mxu0 0
          %880 = vmatprep.subr.bf16.mxu0 0
          %881 = vmatpush1.bf16.xpose.msra.mxu0 0
          %882 = vmatprep.subr.bf16.mxu0 0
          %883 = vmatpush1.bf16.xpose.msra.mxu0 0
          %884 = vmatprep.subr.bf16.mxu0 0
          %885 = vmatpush1.bf16.xpose.msra.mxu0 0
          %886 = vmatprep.subr.bf16.mxu0 0
          %887 = vmatpush1.bf16.xpose.msra.mxu0 0
          %888 = vmatprep.subr.bf16.mxu0 0
          %889 = vmatpush1.bf16.xpose.msra.mxu0 0
          %890 = vmatprep.subr.bf16.mxu0 0
          %891 = vmatpush1.bf16.xpose.msra.mxu0 0
          %892 = vmatprep.subr.bf16.mxu0 0
          %893 = vmatpush1.bf16.xpose.msra.mxu0 0
          %894 = vmatprep.subr.bf16.mxu0 0
          %895 = vmatpush1.bf16.xpose.msra.mxu0 0
          %896 = vmatprep.subr.bf16.mxu0 0
          %897 = vmatpush1.bf16.xpose.msra.mxu0 0
          %898 = vmatprep.mubr.bf16.mxu0 0
          %899 = vmatmul.mubr.bf16.gmra.mrb[0].mxu0 %v861
          %v900 = vpop.f32.mrb[0].mxu0
          %v901 = vadd.f32 0.0, %v900
          %v902 = vpop.f32.mrb[0].mxu0
          %v903 = vpop.f32.mrb[0].mxu0
          %v904 = vpop.f32.mrb[0].mxu0
          %905 = vdwg.mxu0
          %v906 = vstv %s846
          %v907 = vadd.s32 %v906, %v451
          %vm908 = vcmp.ge.s32.totalorder %v449, %v907
          %v909 = vsel %vm908, %v901, -1e+30
          %v910 = vsel %vm743, %v909, -inf
          %911 = vmax.xlane.f32.xlu0 %v910
          %v912 = vpop.xlane.xlu0 %911
          %v913 = vmax.f32 %v843, %v912
          %v914 = vsub.f32 %v843, %v913
          %v915 = vmul.f32 %v914, 1.442695
          %v916 = vpow.pop %v915
          %v917 = vsub.f32 %v909, %v913
          %v918 = vpack.c.bf16 %v917, %v917
          %v920 = vmul.bf16 %v918, 1069105081
          %v921 = vpow.bf16.pop %v920
          %v922 = vmul.f32 %v916, %v844
          %v923 = vunpack.c.l.bf16 %v921
          %v924 = vsel %vm743, %v923, 0.0
          %925 = vadd.xlane.f32.xlu0 %v924
          %v926 = vpop.xlane.xlu0 %925
          %v927 = vadd.f32 %v922, %v926
          %v928 = vmul.f32 %v916, %v845
          %929 = vrot.lane.b32.xlu0 %v857, 48
          %v930 = vpop.permute.xlu0 %929
          %v932 = vsel %vm743, %v921, 0
          %v935 = vsel %vm747, %v930, 0
          %937 = vmatprep.subr.bf16.mxu0 0
          %938 = vmatpush1.bf16.msra.mxu0 %v935
          %939 = vmatprep.subr.bf16.mxu0 0
          %940 = vmatpush1.bf16.msra.mxu0 0
          %941 = vmatprep.subr.bf16.mxu0 0
          %942 = vmatpush1.bf16.msra.mxu0 0
          %943 = vmatprep.subr.bf16.mxu0 0
          %944 = vmatpush1.bf16.msra.mxu0 0
          %945 = vmatprep.subr.bf16.mxu0 0
          %946 = vmatpush1.bf16.msra.mxu0 0
          %947 = vmatprep.subr.bf16.mxu0 0
          %948 = vmatpush1.bf16.msra.mxu0 0
          %949 = vmatprep.subr.bf16.mxu0 0
          %950 = vmatpush1.bf16.msra.mxu0 0
          %951 = vmatprep.subr.bf16.mxu0 0
          %952 = vmatpush1.bf16.msra.mxu0 0
          %953 = vmatprep.subr.bf16.mxu0 0
          %954 = vmatpush1.bf16.msra.mxu0 0
          %955 = vmatprep.subr.bf16.mxu0 0
          %956 = vmatpush1.bf16.msra.mxu0 0
          %957 = vmatprep.subr.bf16.mxu0 0
          %958 = vmatpush1.bf16.msra.mxu0 0
          %959 = vmatprep.subr.bf16.mxu0 0
          %960 = vmatpush1.bf16.msra.mxu0 0
          %961 = vmatprep.subr.bf16.mxu0 0
          %962 = vmatpush1.bf16.msra.mxu0 0
          %963 = vmatprep.subr.bf16.mxu0 0
          %964 = vmatpush1.bf16.msra.mxu0 0
          %965 = vmatprep.subr.bf16.mxu0 0
          %966 = vmatpush1.bf16.msra.mxu0 0
          %967 = vmatprep.subr.bf16.mxu0 0
          %968 = vmatpush1.bf16.msra.mxu0 0
          %969 = vmatprep.mubr.bf16.mxu0 0
          %970 = vmatmul.mubr.bf16.gmra.mrb[0].mxu0 %v932
          %v971 = vpop.f32.mrb[0].mxu0
          %v972 = vadd.f32 0.0, %v971
          %v973 = vpop.f32.mrb[0].mxu0
          %v974 = vpop.f32.mrb[0].mxu0
          %v975 = vpop.f32.mrb[0].mxu0
          %976 = vdwg.mxu0
          %v977 = vadd.f32 %v928, %v972
        $region75: #{tpu_custom_call.1} parent=55 // loop_footer
          %s840 = sadd.s32 %s838, 1
        $region76: #{tpu_custom_call.1} parent=55 // loop_footer_branch
          %837 = sbr.rel target = $region72
        $region77: #{tpu_custom_call.1} parent=55 // loop_exit
          _
        %v978 = vrcp.pop %v844
        %v979 = vmul.f32 %v845, %v978
        %v980 = vpack.c.bf16 %v979, %v979
        %v981 = vld [vmem:[%s5 + $0x8] sm:$0xf]
        %v983 = vsel %vm743, %v980, 0
        %v986 = vsel %vm747, %v981, 0
        %988 = vmatprep.subr.bf16.mxu0 0
        %989 = vmatpush1.bf16.msra.mxu0 %v986
        %990 = vmatprep.subr.bf16.mxu0 0
        %991 = vmatpush1.bf16.msra.mxu0 0
        %992 = vmatprep.subr.bf16.mxu0 0
        %993 = vmatpush1.bf16.msra.mxu0 0
        %994 = vmatprep.subr.bf16.mxu0 0
        %995 = vmatpush1.bf16.msra.mxu0 0
        %996 = vmatprep.subr.bf16.mxu0 0
        %997 = vmatpush1.bf16.msra.mxu0 0
        %998 = vmatprep.subr.bf16.mxu0 0
        %999 = vmatpush1.bf16.msra.mxu0 0
        %1000 = vmatprep.subr.bf16.mxu0 0
        %1001 = vmatpush1.bf16.msra.mxu0 0
        %1002 = vmatprep.subr.bf16.mxu0 0
        %1003 = vmatpush1.bf16.msra.mxu0 0
        %1004 = vmatprep.subr.bf16.mxu0 0
        %1005 = vmatpush1.bf16.msra.mxu0 0
        %1006 = vmatprep.subr.bf16.mxu0 0
        %1007 = vmatpush1.bf16.msra.mxu0 0
        %1008 = vmatprep.subr.bf16.mxu0 0
        %1009 = vmatpush1.bf16.msra.mxu0 0
        %1010 = vmatprep.subr.bf16.mxu0 0
        %1011 = vmatpush1.bf16.msra.mxu0 0
        %1012 = vmatprep.subr.bf16.mxu0 0
        %1013 = vmatpush1.bf16.msra.mxu0 0
        %1014 = vmatprep.subr.bf16.mxu0 0
        %1015 = vmatpush1.bf16.msra.mxu0 0
        %1016 = vmatprep.subr.bf16.mxu0 0
        %1017 = vmatpush1.bf16.msra.mxu0 0
        %1018 = vmatprep.subr.bf16.mxu0 0
        %1019 = vmatpush1.bf16.msra.mxu0 0
        %1020 = vmatprep.mubr.bf16.mxu0 0
        %1021 = vmatmul.mubr.bf16.gmra.mrb[0].mxu0 %v983
        %v1022 = vpop.f32.mrb[0].mxu0
        %v1023 = vadd.f32 0.0, %v1022
        %v1024 = vpop.f32.mrb[0].mxu0
        %v1025 = vpop.f32.mrb[0].mxu0
        %v1026 = vpop.f32.mrb[0].mxu0
        %1027 = vdwg.mxu0
        %v1028 = vadd.f32 %v832, %v1023
        // While loop
        $region78: #{tpu_custom_call.1} parent=55 // loop_pre_header
          _
        $region79: #{tpu_custom_call.1} parent=55 // loop_header
          %s1030 = sphi 0, %s1032
          %p1031 = scmp.ge.s32.totalorder %s1030, %s453
          %v1035 = vphi -inf, %v1105
          %v1036 = vphi 0.0, %v1119
          %v1037 = vphi 0.0, %v1169
        $region80: #{tpu_custom_call.1} parent=55 // loop_header_branch
          %1034 = sbr.rel (%p1031) target = $region84
        $region81: #{tpu_custom_call.1} parent=55 // loop_body
          %s1038 = smul.u32 %s1030, 8
          %s1039 = smul.addr %s1030, 4
          %s1040 = scalar_lea.vmem [#allocation2], %s1039
          %v1041 = vld [vmem:[%s1040] sm:$0xf]
          %v1043 = vunpack.c.l.b16 %v452
          %v1044 = vpack.c.b16 %v1043, %v1043
          %1045 = vrot.lane.b32.xlu0 %v1044, 104
          %v1046 = vpop.permute.xlu0 %1045
          %v1048 = vunpack.c.l.b16 %v1041
          %v1049 = vpack.c.b16 %v1048, %v1048
          %1050 = vrot.lane.b32.xlu0 %v1049, 72
          %v1051 = vpop.permute.xlu0 %1050
          %v1053 = vsel %vm743, %v1046, 0
          %v1056 = vsel %vm743, %v1051, 0
          %1058 = vmatprep.subr.bf16.mxu0 0
          %1059 = vmatpush1.bf16.xpose.msra.mxu0 %v1056
          %1060 = vmatprep.subr.bf16.mxu0 0
          %1061 = vmatpush1.bf16.xpose.msra.mxu0 0
          %1062 = vmatprep.subr.bf16.mxu0 0
          %1063 = vmatpush1.bf16.xpose.msra.mxu0 0
          %1064 = vmatprep.subr.bf16.mxu0 0
          %1065 = vmatpush1.bf16.xpose.msra.mxu0 0
          %1066 = vmatprep.subr.bf16.mxu0 0
          %1067 = vmatpush1.bf16.xpose.msra.mxu0 0
          %1068 = vmatprep.subr.bf16.mxu0 0
          %1069 = vmatpush1.bf16.xpose.msra.mxu0 0
          %1070 = vmatprep.subr.bf16.mxu0 0
          %1071 = vmatpush1.bf16.xpose.msra.mxu0 0
          %1072 = vmatprep.subr.bf16.mxu0 0
          %1073 = vmatpush1.bf16.xpose.msra.mxu0 0
          %1074 = vmatprep.subr.bf16.mxu0 0
          %1075 = vmatpush1.bf16.xpose.msra.mxu0 0
          %1076 = vmatprep.subr.bf16.mxu0 0
          %1077 = vmatpush1.bf16.xpose.msra.mxu0 0
          %1078 = vmatprep.subr.bf16.mxu0 0
          %1079 = vmatpush1.bf16.xpose.msra.mxu0 0
          %1080 = vmatprep.subr.bf16.mxu0 0
          %1081 = vmatpush1.bf16.xpose.msra.mxu0 0
          %1082 = vmatprep.subr.bf16.mxu0 0
          %1083 = vmatpush1.bf16.xpose.msra.mxu0 0
          %1084 = vmatprep.subr.bf16.mxu0 0
          %1085 = vmatpush1.bf16.xpose.msra.mxu0 0
          %1086 = vmatprep.subr.bf16.mxu0 0
          %1087 = vmatpush1.bf16.xpose.msra.mxu0 0
          %1088 = vmatprep.subr.bf16.mxu0 0
          %1089 = vmatpush1.bf16.xpose.msra.mxu0 0
          %1090 = vmatprep.mubr.bf16.mxu0 0
          %1091 = vmatmul.mubr.bf16.gmra.mrb[0].mxu0 %v1053
          %v1092 = vpop.f32.mrb[0].mxu0
          %v1093 = vadd.f32 0.0, %v1092
          %v1094 = vpop.f32.mrb[0].mxu0
          %v1095 = vpop.f32.mrb[0].mxu0
          %v1096 = vpop.f32.mrb[0].mxu0
          %1097 = vdwg.mxu0
          %v1098 = vstv %s1038
          %v1099 = vadd.s32 %v1098, %v451
          %vm1100 = vcmp.ge.s32.totalorder %v449, %v1099
          %v1101 = vsel %vm1100, %v1093, -1e+30
          %v1102 = vsel %vm743, %v1101, -inf
          %1103 = vmax.xlane.f32.xlu0 %v1102
          %v1104 = vpop.xlane.xlu0 %1103
          %v1105 = vmax.f32 %v1035, %v1104
          %v1106 = vsub.f32 %v1035, %v1105
          %v1107 = vmul.f32 %v1106, 1.442695
          %v1108 = vpow.pop %v1107
          %v1109 = vsub.f32 %v1101, %v1105
          %v1110 = vpack.c.bf16 %v1109, %v1109
          %v1112 = vmul.bf16 %v1110, 1069105081
          %v1113 = vpow.bf16.pop %v1112
          %v1114 = vmul.f32 %v1108, %v1036
          %v1115 = vunpack.c.l.bf16 %v1113
          %v1116 = vsel %vm743, %v1115, 0.0
          %1117 = vadd.xlane.f32.xlu0 %v1116
          %v1118 = vpop.xlane.xlu0 %1117
          %v1119 = vadd.f32 %v1114, %v1118
          %v1120 = vmul.f32 %v1108, %v1037
          %1121 = vrot.lane.b32.xlu0 %v1049, 40
          %v1122 = vpop.permute.xlu0 %1121
          %v1124 = vsel %vm743, %v1113, 0
          %v1127 = vsel %vm747, %v1122, 0
          %1129 = vmatprep.subr.bf16.mxu0 0
          %1130 = vmatpush1.bf16.msra.mxu0 %v1127
          %1131 = vmatprep.subr.bf16.mxu0 0
          %1132 = vmatpush1.bf16.msra.mxu0 0
          %1133 = vmatprep.subr.bf16.mxu0 0
          %1134 = vmatpush1.bf16.msra.mxu0 0
          %1135 = vmatprep.subr.bf16.mxu0 0
          %1136 = vmatpush1.bf16.msra.mxu0 0
          %1137 = vmatprep.subr.bf16.mxu0 0
          %1138 = vmatpush1.bf16.msra.mxu0 0
          %1139 = vmatprep.subr.bf16.mxu0 0
          %1140 = vmatpush1.bf16.msra.mxu0 0
          %1141 = vmatprep.subr.bf16.mxu0 0
          %1142 = vmatpush1.bf16.msra.mxu0 0
          %1143 = vmatprep.subr.bf16.mxu0 0
          %1144 = vmatpush1.bf16.msra.mxu0 0
          %1145 = vmatprep.subr.bf16.mxu0 0
          %1146 = vmatpush1.bf16.msra.mxu0 0
          %1147 = vmatprep.subr.bf16.mxu0 0
          %1148 = vmatpush1.bf16.msra.mxu0 0
          %1149 = vmatprep.subr.bf16.mxu0 0
          %1150 = vmatpush1.bf16.msra.mxu0 0
          %1151 = vmatprep.subr.bf16.mxu0 0
          %1152 = vmatpush1.bf16.msra.mxu0 0
          %1153 = vmatprep.subr.bf16.mxu0 0
          %1154 = vmatpush1.bf16.msra.mxu0 0
          %1155 = vmatprep.subr.bf16.mxu0 0
          %1156 = vmatpush1.bf16.msra.mxu0 0
          %1157 = vmatprep.subr.bf16.mxu0 0
          %1158 = vmatpush1.bf16.msra.mxu0 0
          %1159 = vmatprep.subr.bf16.mxu0 0
          %1160 = vmatpush1.bf16.msra.mxu0 0
          %1161 = vmatprep.mubr.bf16.mxu0 0
          %1162 = vmatmul.mubr.bf16.gmra.mrb[0].mxu0 %v1124
          %v1163 = vpop.f32.mrb[0].mxu0
          %v1164 = vadd.f32 0.0, %v1163
          %v1165 = vpop.f32.mrb[0].mxu0
          %v1166 = vpop.f32.mrb[0].mxu0
          %v1167 = vpop.f32.mrb[0].mxu0
          %1168 = vdwg.mxu0
          %v1169 = vadd.f32 %v1120, %v1164
        $region82: #{tpu_custom_call.1} parent=55 // loop_footer
          %s1032 = sadd.s32 %s1030, 1
        $region83: #{tpu_custom_call.1} parent=55 // loop_footer_branch
          %1029 = sbr.rel target = $region79
        $region84: #{tpu_custom_call.1} parent=55 // loop_exit
          _
        %v1170 = vrcp.pop %v1036
        %v1171 = vmul.f32 %v1037, %v1170
        %v1172 = vpack.c.bf16 %v1171, %v1171
        %v1173 = vld [vmem:[%s5 + $0xc] sm:$0xf]
        %v1175 = vsel %vm743, %v1172, 0
        %v1178 = vsel %vm747, %v1173, 0
        %1180 = vmatprep.subr.bf16.mxu0 0
        %1181 = vmatpush1.bf16.msra.mxu0 %v1178
        %1182 = vmatprep.subr.bf16.mxu0 0
        %1183 = vmatpush1.bf16.msra.mxu0 0
        %1184 = vmatprep.subr.bf16.mxu0 0
        %1185 = vmatpush1.bf16.msra.mxu0 0
        %1186 = vmatprep.subr.bf16.mxu0 0
        %1187 = vmatpush1.bf16.msra.mxu0 0
        %1188 = vmatprep.subr.bf16.mxu0 0
        %1189 = vmatpush1.bf16.msra.mxu0 0
        %1190 = vmatprep.subr.bf16.mxu0 0
        %1191 = vmatpush1.bf16.msra.mxu0 0
        %1192 = vmatprep.subr.bf16.mxu0 0
        %1193 = vmatpush1.bf16.msra.mxu0 0
        %1194 = vmatprep.subr.bf16.mxu0 0
        %1195 = vmatpush1.bf16.msra.mxu0 0
        %1196 = vmatprep.subr.bf16.mxu0 0
        %1197 = vmatpush1.bf16.msra.mxu0 0
        %1198 = vmatprep.subr.bf16.mxu0 0
        %1199 = vmatpush1.bf16.msra.mxu0 0
        %1200 = vmatprep.subr.bf16.mxu0 0
        %1201 = vmatpush1.bf16.msra.mxu0 0
        %1202 = vmatprep.subr.bf16.mxu0 0
        %1203 = vmatpush1.bf16.msra.mxu0 0
        %1204 = vmatprep.subr.bf16.mxu0 0
        %1205 = vmatpush1.bf16.msra.mxu0 0
        %1206 = vmatprep.subr.bf16.mxu0 0
        %1207 = vmatpush1.bf16.msra.mxu0 0
        %1208 = vmatprep.subr.bf16.mxu0 0
        %1209 = vmatpush1.bf16.msra.mxu0 0
        %1210 = vmatprep.subr.bf16.mxu0 0
        %1211 = vmatpush1.bf16.msra.mxu0 0
        %1212 = vmatprep.mubr.bf16.mxu0 0
        %1213 = vmatmul.mubr.bf16.gmra.mrb[0].mxu0 %v1175
        %v1214 = vpop.f32.mrb[0].mxu0
        %v1215 = vadd.f32 0.0, %v1214
        %v1216 = vpop.f32.mrb[0].mxu0
        %v1217 = vpop.f32.mrb[0].mxu0
        %v1218 = vpop.f32.mrb[0].mxu0
        %1219 = vdwg.mxu0
        %v1220 = vadd.f32 %v1028, %v1215
        %v1221 = vld [vmem:[%s6] sm:$0x1]
        %v1223 = vlaneseq
        %v1224 = vshrl.u32 %v1223, 7
        %v1225 = vsub.s32 0, %v1224
        %v1226 = vrot.slane %v1221, %v1225
        %v1228 = vadd.f32 %v1220, %v1226
        %v1229 = vadd.f32 %v354, %v1228
        %v1230 = vld [vmem:[%s2] sm:$0x1]
        %v1231 = vmul.f32 %v1229, %v1229
        %v1232 = vsel %vm357, %v1231, 0.0
        %1233 = vadd.xlane.f32.xlu0 %v1232
        %v1234 = vpop.xlane.xlu0 %1233
        %v1235 = vmul.f32 %v1234, %v361
        %v1236 = vadd.f32 %v1235, 1e-06
        %v1237 = vrsqrt.pop %v1236
        %v1238 = vmul.f32 %v1229, %v1237
        %v1240 = vlaneseq
        %v1241 = vshrl.u32 %v1240, 7
        %v1242 = vsub.s32 0, %v1241
        %v1243 = vrot.slane %v1230, %v1242
        %v1245 = vmul.f32 %v1238, %v1243
        %v1246 = vpack.c.bf16 %v1245, %v1245
        %v1247 = vld [vmem:[%s7] sm:$0xff]
        %v1248 = vld [vmem:[%s7 + $0x8] sm:$0xff]
        %v1249 = vld [vmem:[%s7 + $0x10] sm:$0xff]
        %v1250 = vld [vmem:[%s7 + $0x18] sm:$0xff]
        %v1255 = vunpack.c.l.b16 %v1247
        %v1256 = vunpack.c.h.b16 %v1247
        %v1257 = vunpack.c.l.b16 %v1248
        %v1258 = vunpack.c.h.b16 %v1248
        %v1259 = vunpack.c.l.b16 %v1249
        %v1260 = vunpack.c.h.b16 %v1249
        %v1261 = vunpack.c.l.b16 %v1250
        %v1262 = vunpack.c.h.b16 %v1250
        %v1263 = vpack.c.b16 %v1257, %v1255
        %v1264 = vpack.c.b16 %v1258, %v1256
        %v1265 = vpack.c.b16 %v1261, %v1259
        %v1266 = vpack.c.b16 %v1262, %v1260
        %v1272 = vsel %vm357, %v1246, 0
        %1274 = vmatprep.subr.bf16.mxu0 %v1264
        %1275 = vmatpush1.bf16.msra.mxu0 %v1263
        %1276 = vmatprep.subr.bf16.mxu0 %v1266
        %1277 = vmatpush1.bf16.msra.mxu0 %v1265
        %1278 = vmatprep.subr.bf16.mxu0 0
        %1279 = vmatpush1.bf16.msra.mxu0 0
        %1280 = vmatprep.subr.bf16.mxu0 0
        %1281 = vmatpush1.bf16.msra.mxu0 0
        %1282 = vmatprep.subr.bf16.mxu0 0
        %1283 = vmatpush1.bf16.msra.mxu0 0
        %1284 = vmatprep.subr.bf16.mxu0 0
        %1285 = vmatpush1.bf16.msra.mxu0 0
        %1286 = vmatprep.subr.bf16.mxu0 0
        %1287 = vmatpush1.bf16.msra.mxu0 0
        %1288 = vmatprep.subr.bf16.mxu0 0
        %1289 = vmatpush1.bf16.msra.mxu0 0
        %1290 = vmatprep.subr.bf16.mxu0 0
        %1291 = vmatpush1.bf16.msra.mxu0 0
        %1292 = vmatprep.subr.bf16.mxu0 0
        %1293 = vmatpush1.bf16.msra.mxu0 0
        %1294 = vmatprep.subr.bf16.mxu0 0
        %1295 = vmatpush1.bf16.msra.mxu0 0
        %1296 = vmatprep.subr.bf16.mxu0 0
        %1297 = vmatpush1.bf16.msra.mxu0 0
        %1298 = vmatprep.subr.bf16.mxu0 0
        %1299 = vmatpush1.bf16.msra.mxu0 0
        %1300 = vmatprep.subr.bf16.mxu0 0
        %1301 = vmatpush1.bf16.msra.mxu0 0
        %1302 = vmatprep.subr.bf16.mxu0 0
        %1303 = vmatpush1.bf16.msra.mxu0 0
        %1304 = vmatprep.subr.bf16.mxu0 0
        %1305 = vmatpush1.bf16.msra.mxu0 0
        %1306 = vmatprep.mubr.bf16.mxu0 0
        %1307 = vmatmul.mubr.bf16.gmra.mrb[0].mxu0 %v1272
        %v1308 = vpop.f32.mrb[0].mxu0
        %v1309 = vadd.f32 0.0, %v1308
        %v1310 = vpop.f32.mrb[0].mxu0
        %v1311 = vadd.f32 0.0, %v1310
        %v1312 = vpop.f32.mrb[0].mxu0
        %v1313 = vpop.f32.mrb[0].mxu0
        %1314 = vdwg.mxu0
        %v1315 = vxor.u32 %v1309, 2147483648
        %v1316 = vmul.f32 %v1315, 1.442695
        %v1317 = vpow.pop %v1316
        %v1318 = vadd.f32 %v1317, 1.0
        %v1319 = vrcp.pop %v1318
        %v1320 = vmul.f32 1.0, %v1319
        %v1321 = vmul.f32 %v1309, %v1320
        %v1322 = vmul.f32 %v1321, %v1311
        %v1323 = vpack.c.bf16 %v1322, %v1322
        %v1324 = vld [vmem:[%s8] sm:$0xf]
        %v1325 = vld [vmem:[%s8 + $0x4] sm:$0xf]
        %v1326 = vld [vmem:[%s8 + $0x8] sm:$0xf]
        %v1327 = vld [vmem:[%s8 + $0xc] sm:$0xf]
        %v1328 = vld [vmem:[%s8 + $0x10] sm:$0xf]
        %v1329 = vld [vmem:[%s8 + $0x14] sm:$0xf]
        %v1330 = vld [vmem:[%s8 + $0x18] sm:$0xf]
        %v1331 = vld [vmem:[%s8 + $0x1c] sm:$0xf]
        %v1332 = vld [vmem:[%s8 + $0x20] sm:$0xf]
        %v1333 = vld [vmem:[%s8 + $0x24] sm:$0xf]
        %v1334 = vld [vmem:[%s8 + $0x28] sm:$0xf]
        %v1335 = vld [vmem:[%s8 + $0x2c] sm:$0xf]
        %v1336 = vld [vmem:[%s8 + $0x30] sm:$0xf]
        %v1337 = vld [vmem:[%s8 + $0x34] sm:$0xf]
        %v1338 = vld [vmem:[%s8 + $0x38] sm:$0xf]
        %v1339 = vld [vmem:[%s8 + $0x3c] sm:$0xf]
        %v1356 = vunpack.c.l.b16 %v1324
        %v1357 = vunpack.c.l.b16 %v1325
        %v1358 = vunpack.c.l.b16 %v1326
        %v1359 = vunpack.c.l.b16 %v1327
        %v1360 = vunpack.c.l.b16 %v1328
        %v1361 = vunpack.c.l.b16 %v1329
        %v1362 = vunpack.c.l.b16 %v1330
        %v1363 = vunpack.c.l.b16 %v1331
        %v1364 = vunpack.c.l.b16 %v1332
        %v1365 = vunpack.c.l.b16 %v1333
        %v1366 = vunpack.c.l.b16 %v1334
        %v1367 = vunpack.c.l.b16 %v1335
        %v1368 = vunpack.c.l.b16 %v1336
        %v1369 = vunpack.c.l.b16 %v1337
        %v1370 = vunpack.c.l.b16 %v1338
        %v1371 = vunpack.c.l.b16 %v1339
        %v1372 = vpack.c.b16 %v1357, %v1356
        %v1373 = vpack.c.b16 %v1359, %v1358
        %v1374 = vpack.c.b16 %v1361, %v1360
        %v1375 = vpack.c.b16 %v1363, %v1362
        %v1376 = vpack.c.b16 %v1365, %v1364
        %v1377 = vpack.c.b16 %v1367, %v1366
        %v1378 = vpack.c.b16 %v1369, %v1368
        %v1379 = vpack.c.b16 %v1371, %v1370
        %1388 = vmatprep.subr.bf16.mxu0 0
        %1389 = vmatpush1.bf16.msra.mxu0 %v1372
        %1390 = vmatprep.subr.bf16.mxu0 0
        %1391 = vmatpush1.bf16.msra.mxu0 %v1373
        %1392 = vmatprep.subr.bf16.mxu0 0
        %1393 = vmatpush1.bf16.msra.mxu0 %v1374
        %1394 = vmatprep.subr.bf16.mxu0 0
        %1395 = vmatpush1.bf16.msra.mxu0 %v1375
        %1396 = vmatprep.subr.bf16.mxu0 0
        %1397 = vmatpush1.bf16.msra.mxu0 %v1376
        %1398 = vmatprep.subr.bf16.mxu0 0
        %1399 = vmatpush1.bf16.msra.mxu0 %v1377
        %1400 = vmatprep.subr.bf16.mxu0 0
        %1401 = vmatpush1.bf16.msra.mxu0 %v1378
        %1402 = vmatprep.subr.bf16.mxu0 0
        %1403 = vmatpush1.bf16.msra.mxu0 %v1379
        %1404 = vmatprep.subr.bf16.mxu0 0
        %1405 = vmatpush1.bf16.msra.mxu0 0
        %1406 = vmatprep.subr.bf16.mxu0 0
        %1407 = vmatpush1.bf16.msra.mxu0 0
        %1408 = vmatprep.subr.bf16.mxu0 0
        %1409 = vmatpush1.bf16.msra.mxu0 0
        %1410 = vmatprep.subr.bf16.mxu0 0
        %1411 = vmatpush1.bf16.msra.mxu0 0
        %1412 = vmatprep.subr.bf16.mxu0 0
        %1413 = vmatpush1.bf16.msra.mxu0 0
        %1414 = vmatprep.subr.bf16.mxu0 0
        %1415 = vmatpush1.bf16.msra.mxu0 0
        %1416 = vmatprep.subr.bf16.mxu0 0
        %1417 = vmatpush1.bf16.msra.mxu0 0
        %1418 = vmatprep.subr.bf16.mxu0 0
        %1419 = vmatpush1.bf16.msra.mxu0 0
        %1420 = vmatprep.mubr.bf16.mxu0 0
        %1421 = vmatmul.mubr.bf16.gmra.mrb[0].mxu0 %v1323
        %v1422 = vpop.f32.mrb[0].mxu0
        %v1423 = vadd.f32 0.0, %v1422
        %v1424 = vpop.f32.mrb[0].mxu0
        %v1425 = vpop.f32.mrb[0].mxu0
        %v1426 = vpop.f32.mrb[0].mxu0
        %1427 = vdwg.mxu0
        %v1428 = vadd.f32 %v1229, %v1423
        %1429 = vst.msk [vmem:[%s345] sm:$0xff] %vm357, %v1428
        %s1430 = sand.u32 %s241, 1
        %s1431 = scalar_lea.sflag [#allocation4], %s1430
        %s1432 = sand.u32 %s241, 1
        %s1433 = smul.addr %s1432, 8
        %s1434 = scalar_lea.vmem [#allocation3], %s1433
        // Predicated region
        $region85: #{tpu_custom_call.1} parent=55 // pred_check
          %p1435 = pneg %p251
        $region86: #{tpu_custom_call.1} parent=55 // pred_check_branch
          %1437 = sbr.rel (%p1435) target = $region88
        $region87: #{tpu_custom_call.1} parent=55 // pred_region
          %s1439 = ssub.s32 128, 128
          %1440 = vsyncadd %s1431, %s1439
          %s1441 = sadd.s32 %s28, %s27
          %s1442 = smul.addr %s1441, 128
          %s1443 = scalar_lea.hbm %s9, %s1442
          %s1445 = sshll.u32 %s1434, 4
          %s1446 = int_to_ptr.vmem [resolvable:$true] %s1445
          %1448 = dma.vmem_to_hbm [thread:$0]  %s1446, 128, %s1443, %s1431
        $region88: #{tpu_custom_call.1} parent=55 // pred_fallthru
          _
      $region56: #{tpu_custom_call.1} parent=5 // pred_fallthru
        _
      %p1449 = scmp.le.s32.totalorder 2, %s18
      // Predicated region
      $region89: #{tpu_custom_call.1} parent=5 // pred_check
        %p1450 = pneg %p1449
      $region90: #{tpu_custom_call.1} parent=5 // pred_check_branch
        %1452 = sbr.rel (%p1450) target = $region92
      $region91: #{tpu_custom_call.1} parent=5 // pred_region
        %s1453 = ssub.s32 %s18, 2
        // Predicated region
        $region93: #{tpu_custom_call.1} parent=91 // pred_check
          %p1454 = pneg %p257
        $region94: #{tpu_custom_call.1} parent=91 // pred_check_branch
          %1456 = sbr.rel (%p1454) target = $region96
        $region95: #{tpu_custom_call.1} parent=91 // pred_region
          %s1457 = sand.u32 %s242, 1
          %s1458 = scalar_lea.sflag [#allocation4], %s1457
          %s1459 = sand.u32 %s242, 1
          %s1460 = smul.addr %s1459, 8
          %s1461 = scalar_lea.vmem [#allocation3], %s1460
          %1462 = dma.done %s1458, 128
        $region96: #{tpu_custom_call.1} parent=91 // pred_fallthru
          _
      $region92: #{tpu_custom_call.1} parent=5 // pred_fallthru
        _
    $region6: #{tpu_custom_call.1} parent=1 // loop_footer
      %s22 = sadd.s32 1, %s18
    $region7: #{tpu_custom_call.1} parent=1 // loop_footer_branch
      %17 = sbr.rel target = $region3
    $region8: #{tpu_custom_call.1} parent=1 // loop_exit
      _
    %1463 = vsyncpa [#allocation4], 1
    %s1464 = scalar_lea.sflag [#allocation4], 1
    %1465 = vsyncpa %s1464, 1

// kernel: tpu_custom_call.1
$region0: #{tpu_custom_call.1}
  #allocation0 [shape = 'u32[]', space=smem, size = 0x4, offset = 0x4, fixed_abs, tag = 'smem constant byte address 0x4 - core index']
  #allocation1 [shape = 'u32[144,128]{1,0:T(1,128)}', space=vmem, size = 0x12000, scoped, tag = 'internal scratch']
  #allocation2 [shape = 'bf16[1,8,96]{2,1,0:T(8,128)(2,1)}', space=vmem, size = 0x800, scoped, tag = 'scratch operand']
  %s0 = inlined_call_operand.vmem [shape: f32[2,8,32], index: 0, kind: input, shape index: {}]
  %s1 = inlined_call_operand.vmem [shape: f32[1,32], index: 1, kind: input, shape index: {}]
  %s2 = inlined_call_operand.vmem [shape: f32[1,32], index: 2, kind: input, shape index: {}]
  %s3 = inlined_call_operand.vmem [shape: bf16[32,96], index: 3, kind: input, shape index: {}]
  %s4 = inlined_call_operand.vmem [shape: f32[1,96], index: 4, kind: input, shape index: {}]
  %s5 = inlined_call_operand.vmem [shape: bf16[32,32], index: 5, kind: input, shape index: {}]
  %s6 = inlined_call_operand.vmem [shape: f32[1,32], index: 6, kind: input, shape index: {}]
  %s7 = inlined_call_operand.vmem [shape: bf16[32,256], index: 7, kind: input, shape index: {}]
  %s8 = inlined_call_operand.vmem [shape: bf16[128,32], index: 8, kind: input, shape index: {}]
  %s9 = inlined_call_operand.hbm [shape: f32[2,8,32], index: 9, kind: output, shape index: {}]
  %s10 = sld [smem:[#allocation0]]
  $region97: #{tpu_custom_call.1} parent=0
    _
  %s12 = ssub.s32 1, %s10
  %s13 = scalar_select 0, %s12, %s10
  $region1: #{tpu_custom_call.1} parent=0
    #allocation3 [shape = 'u8[8192]{0}', space=vmem, size = 0x2000, scoped, tag = 'output window, operand 0']
    #allocation4 [shape = 's32[2]{0}', space=sflag, size = 0x8, scoped, tag = 'scoped memory for tpu_custom_call.1']
    %14 = vsyncpa [#allocation4], 0
    %s15 = scalar_lea.sflag [#allocation4], 1
    %16 = vsyncpa %s15, 0
    loop: start=0, step=1, limit=4
    $region2: #{tpu_custom_call.1} parent=1 // loop_pre_header
      _
    $region3: #{tpu_custom_call.1} parent=1 // loop_header
      %s18 = sphi 0, %s22
      %p19 = scmp.ge.s32.totalorder %s18, 4
      %s25 = sphi 0, %s37
      %s26 = sphi 0, %s33
      %s27 = sphi 0, %s25
      %s28 = sphi 0, %s26
      %s29 = sphi 0, %s27
      %s30 = sphi 0, %s28
      %s42 = sphi 0, %s44
      %s45 = sphi 0, %s42
      %s46 = sphi 0, %s45
      %s62 = sphi 0, %s46
      %s66 = sphi 0, %s66
      %s68 = sphi 0, %s66
      %s69 = sphi 0, %s68
      %s83 = sphi 0, %s69
      %s87 = sphi 0, %s87
      %s89 = sphi 0, %s87
      %s90 = sphi 0, %s89
      %s104 = sphi 0, %s90
      %s108 = sphi 0, %s108
      %s110 = sphi 0, %s108
      %s111 = sphi 0, %s110
      %s125 = sphi 0, %s111
      %s129 = sphi 0, %s129
      %s131 = sphi 0, %s129
      %s132 = sphi 0, %s131
      %s146 = sphi 0, %s132
      %s150 = sphi 0, %s150
      %s152 = sphi 0, %s150
      %s153 = sphi 0, %s152
      %s167 = sphi 0, %s153
      %s171 = sphi 0, %s171
      %s173 = sphi 0, %s171
      %s174 = sphi 0, %s173
      %s188 = sphi 0, %s174
      %s192 = sphi 0, %s192
      %s194 = sphi 0, %s192
      %s195 = sphi 0, %s194
      %s209 = sphi 0, %s195
      %s213 = sphi 0, %s213
      %s215 = sphi 0, %s213
      %s216 = sphi 0, %s215
      %s230 = sphi 0, %s216
      %s238 = sphi 0, %s240
      %s241 = sphi 0, %s238
      %s242 = sphi 0, %s241
      %s258 = sphi 0, %s242
    $region4: #{tpu_custom_call.1} parent=1 // loop_header_branch
      %21 = sbr.rel (%p19) target = $region8
    $region5: #{tpu_custom_call.1} parent=1 // loop_body
      %s23 = ssub.s32 %s18, 1
      %s24 = ssub.s32 %s18, 2
      %s31 = sadd.s32 1, %s26
      %p32 = scmp.ge.s32.totalorder %s31, 1
      %s33 = scalar_select %p32, 0, %s31
      %s34 = sadd.s32 1, %s25
      %s35 = scalar_select %p32, %s34, %s25
      %p36 = scmp.ge.s32.totalorder %s35, 2
      %s37 = scalar_select %p36, 0, %s35
      %s38 = ssub.s32 %s25, %s37
      %s39 = ssub.s32 %s26, %s33
      %s40 = sor.u32 %s38, %s39
      %p41 = scmp.eq.s32.totalorder %s40, 0
      %s43 = sadd.s32 %s42, 1
      %s44 = scalar_select %p41, %s42, %s43
      %p47 = pneg %p41
      %p48 = scmp.eq.s32.totalorder %s18, 1
      %p49 = por %p47, %p48
      %p50 = scmp.ne.s32.totalorder %s42, %s45
      %p51 = scmp.eq.s32.totalorder %s18, 0
      %p52 = por %p50, %p51
      %p53 = scmp.ne.s32.totalorder %s42, %s45
      %p54 = scmp.eq.s32.totalorder %s23, 1
      %p55 = por %p53, %p54
      %p56 = scmp.ne.s32.totalorder %s45, %s46
      %p57 = scmp.eq.s32.totalorder %s23, 0
      %p58 = por %p56, %p57
      %p59 = scmp.ne.s32.totalorder %s45, %s46
      %p60 = scmp.eq.s32.totalorder %s24, 1
      %p61 = por %p59, %p60
      %p63 = scmp.ne.s32.totalorder %s46, %s62
      %p64 = scmp.eq.s32.totalorder %s24, 0
      %p65 = por %p63, %p64
      %s67 = sadd.s32 %s66, 1
      %p70 = scmp.eq.s32.totalorder %s18, 1
      %p71 = scmp.ne.s32.totalorder %s66, %s68
      %p72 = scmp.eq.s32.totalorder %s18, 0
      %p73 = por %p71, %p72
      %p74 = scmp.ne.s32.totalorder %s66, %s68
      %p75 = scmp.eq.s32.totalorder %s23, 1
      %p76 = por %p74, %p75
      %p77 = scmp.ne.s32.totalorder %s68, %s69
      %p78 = scmp.eq.s32.totalorder %s23, 0
      %p79 = por %p77, %p78
      %p80 = scmp.ne.s32.totalorder %s68, %s69
      %p81 = scmp.eq.s32.totalorder %s24, 1
      %p82 = por %p80, %p81
      %p84 = scmp.ne.s32.totalorder %s69, %s83
      %p85 = scmp.eq.s32.totalorder %s24, 0
      %p86 = por %p84, %p85
      %s88 = sadd.s32 %s87, 1
      %p91 = scmp.eq.s32.totalorder %s18, 1
      %p92 = scmp.ne.s32.totalorder %s87, %s89
      %p93 = scmp.eq.s32.totalorder %s18, 0
      %p94 = por %p92, %p93
      %p95 = scmp.ne.s32.totalorder %s87, %s89
      %p96 = scmp.eq.s32.totalorder %s23, 1
      %p97 = por %p95, %p96
      %p98 = scmp.ne.s32.totalorder %s89, %s90
      %p99 = scmp.eq.s32.totalorder %s23, 0
      %p100 = por %p98, %p99
      %p101 = scmp.ne.s32.totalorder %s89, %s90
      %p102 = scmp.eq.s32.totalorder %s24, 1
      %p103 = por %p101, %p102
      %p105 = scmp.ne.s32.totalorder %s90, %s104
      %p106 = scmp.eq.s32.totalorder %s24, 0
      %p107 = por %p105, %p106
      %s109 = sadd.s32 %s108, 1
      %p112 = scmp.eq.s32.totalorder %s18, 1
      %p113 = scmp.ne.s32.totalorder %s108, %s110
      %p114 = scmp.eq.s32.totalorder %s18, 0
      %p115 = por %p113, %p114
      %p116 = scmp.ne.s32.totalorder %s108, %s110
      %p117 = scmp.eq.s32.totalorder %s23, 1
      %p118 = por %p116, %p117
      %p119 = scmp.ne.s32.totalorder %s110, %s111
      %p120 = scmp.eq.s32.totalorder %s23, 0
      %p121 = por %p119, %p120
      %p122 = scmp.ne.s32.totalorder %s110, %s111
      %p123 = scmp.eq.s32.totalorder %s24, 1
      %p124 = por %p122, %p123
      %p126 = scmp.ne.s32.totalorder %s111, %s125
      %p127 = scmp.eq.s32.totalorder %s24, 0
      %p128 = por %p126, %p127
      %s130 = sadd.s32 %s129, 1
      %p133 = scmp.eq.s32.totalorder %s18, 1
      %p134 = scmp.ne.s32.totalorder %s129, %s131
      %p135 = scmp.eq.s32.totalorder %s18, 0
      %p136 = por %p134, %p135
      %p137 = scmp.ne.s32.totalorder %s129, %s131
      %p138 = scmp.eq.s32.totalorder %s23, 1
      %p139 = por %p137, %p138
      %p140 = scmp.ne.s32.totalorder %s131, %s132
      %p141 = scmp.eq.s32.totalorder %s23, 0
      %p142 = por %p140, %p141
      %p143 = scmp.ne.s32.totalorder %s131, %s132
      %p144 = scmp.eq.s32.totalorder %s24, 1
      %p145 = por %p143, %p144
      %p147 = scmp.ne.s32.totalorder %s132, %s146
      %p148 = scmp.eq.s32.totalorder %s24, 0
      %p149 = por %p147, %p148
      %s151 = sadd.s32 %s150, 1
      %p154 = scmp.eq.s32.totalorder %s18, 1
      %p155 = scmp.ne.s32.totalorder %s150, %s152
      %p156 = scmp.eq.s32.totalorder %s18, 0
      %p157 = por %p155, %p156
      %p158 = scmp.ne.s32.totalorder %s150, %s152
      %p159 = scmp.eq.s32.totalorder %s23, 1
      %p160 = por %p158, %p159
      %p161 = scmp.ne.s32.totalorder %s152, %s153
      %p162 = scmp.eq.s32.totalorder %s23, 0
      %p163 = por %p161, %p162
      %p164 = scmp.ne.s32.totalorder %s152, %s153
      %p165 = scmp.eq.s32.totalorder %s24, 1
      %p166 = por %p164, %p165
      %p168 = scmp.ne.s32.totalorder %s153, %s167
      %p169 = scmp.eq.s32.totalorder %s24, 0
      %p170 = por %p168, %p169
      %s172 = sadd.s32 %s171, 1
      %p175 = scmp.eq.s32.totalorder %s18, 1
      %p176 = scmp.ne.s32.totalorder %s171, %s173
      %p177 = scmp.eq.s32.totalorder %s18, 0
      %p178 = por %p176, %p177
      %p179 = scmp.ne.s32.totalorder %s171, %s173
      %p180 = scmp.eq.s32.totalorder %s23, 1
      %p181 = por %p179, %p180
      %p182 = scmp.ne.s32.totalorder %s173, %s174
      %p183 = scmp.eq.s32.totalorder %s23, 0
      %p184 = por %p182, %p183
      %p185 = scmp.ne.s32.totalorder %s173, %s174
      %p186 = scmp.eq.s32.totalorder %s24, 1
      %p187 = por %p185, %p186
      %p189 = scmp.ne.s32.totalorder %s174, %s188
      %p190 = scmp.eq.s32.totalorder %s24, 0
      %p191 = por %p189, %p190
      %s193 = sadd.s32 %s192, 1
      %p196 = scmp.eq.s32.totalorder %s18, 1
      %p197 = scmp.ne.s32.totalorder %s192, %s194
      %p198 = scmp.eq.s32.totalorder %s18, 0
      %p199 = por %p197, %p198
      %p200 = scmp.ne.s32.totalorder %s192, %s194
      %p201 = scmp.eq.s32.totalorder %s23, 1
      %p202 = por %p200, %p201
      %p203 = scmp.ne.s32.totalorder %s194, %s195
      %p204 = scmp.eq.s32.totalorder %s23, 0
      %p205 = por %p203, %p204
      %p206 = scmp.ne.s32.totalorder %s194, %s195
      %p207 = scmp.eq.s32.totalorder %s24, 1
      %p208 = por %p206, %p207
      %p210 = scmp.ne.s32.totalorder %s195, %s209
      %p211 = scmp.eq.s32.totalorder %s24, 0
      %p212 = por %p210, %p211
      %s214 = sadd.s32 %s213, 1
      %p217 = scmp.eq.s32.totalorder %s18, 1
      %p218 = scmp.ne.s32.totalorder %s213, %s215
      %p219 = scmp.eq.s32.totalorder %s18, 0
      %p220 = por %p218, %p219
      %p221 = scmp.ne.s32.totalorder %s213, %s215
      %p222 = scmp.eq.s32.totalorder %s23, 1
      %p223 = por %p221, %p222
      %p224 = scmp.ne.s32.totalorder %s215, %s216
      %p225 = scmp.eq.s32.totalorder %s23, 0
      %p226 = por %p224, %p225
      %p227 = scmp.ne.s32.totalorder %s215, %s216
      %p228 = scmp.eq.s32.totalorder %s24, 1
      %p229 = por %p227, %p228
      %p231 = scmp.ne.s32.totalorder %s216, %s230
      %p232 = scmp.eq.s32.totalorder %s24, 0
      %p233 = por %p231, %p232
      %s234 = ssub.s32 %s25, %s37
      %s235 = ssub.s32 %s26, %s33
      %s236 = sor.u32 %s234, %s235
      %p237 = scmp.eq.s32.totalorder %s236, 0
      %s239 = sadd.s32 %s238, 1
      %s240 = scalar_select %p237, %s238, %s239
      %p243 = pneg %p237
      %p244 = scmp.eq.s32.totalorder %s18, 1
      %p245 = por %p243, %p244
      %p246 = scmp.ne.s32.totalorder %s238, %s241
      %p247 = scmp.eq.s32.totalorder %s18, 0
      %p248 = por %p246, %p247
      %p249 = scmp.ne.s32.totalorder %s238, %s241
      %p250 = scmp.eq.s32.totalorder %s23, 1
      %p251 = por %p249, %p250
      %p252 = scmp.ne.s32.totalorder %s241, %s242
      %p253 = scmp.eq.s32.totalorder %s23, 0
      %p254 = por %p252, %p253
      %p255 = scmp.ne.s32.totalorder %s241, %s242
      %p256 = scmp.eq.s32.totalorder %s24, 1
      %p257 = por %p255, %p256
      %p259 = scmp.ne.s32.totalorder %s242, %s258
      %p260 = scmp.eq.s32.totalorder %s24, 0
      %p261 = por %p259, %p260
      %p262 = scmp.le.s32.totalorder 1, %s18
      %p263 = scmp.lt.s32.totalorder %s18, 3
      %p264 = pnand %p262, %p263
      %p265 = pneg %p264
      // Predicated region
      $region9: #{tpu_custom_call.1} parent=5 // pred_check
        _
      $region10: #{tpu_custom_call.1} parent=5 // pred_check_branch
        %267 = sbr.rel (%p264) target = $region12
      $region11: #{tpu_custom_call.1} parent=5 // pred_region
        %s268 = ssub.s32 %s18, 1
        // Predicated region
        $region13: #{tpu_custom_call.1} parent=11 // pred_check
          %p269 = pneg %p79
        $region14: #{tpu_custom_call.1} parent=11 // pred_check_branch
          %271 = sbr.rel (%p269) target = $region16
        $region15: #{tpu_custom_call.1} parent=11 // pred_region
          _
        $region16: #{tpu_custom_call.1} parent=11 // pred_fallthru
          _
        // Predicated region
        $region17: #{tpu_custom_call.1} parent=11 // pred_check
          %p272 = pneg %p100
        $region18: #{tpu_custom_call.1} parent=11 // pred_check_branch
          %274 = sbr.rel (%p272) target = $region20
        $region19: #{tpu_custom_call.1} parent=11 // pred_region
          _
        $region20: #{tpu_custom_call.1} parent=11 // pred_fallthru
          _
        // Predicated region
        $region21: #{tpu_custom_call.1} parent=11 // pred_check
          %p275 = pneg %p121
        $region22: #{tpu_custom_call.1} parent=11 // pred_check_branch
          %277 = sbr.rel (%p275) target = $region24
        $region23: #{tpu_custom_call.1} parent=11 // pred_region
          _
        $region24: #{tpu_custom_call.1} parent=11 // pred_fallthru
          _
        // Predicated region
        $region25: #{tpu_custom_call.1} parent=11 // pred_check
          %p278 = pneg %p142
        $region26: #{tpu_custom_call.1} parent=11 // pred_check_branch
          %280 = sbr.rel (%p278) target = $region28
        $region27: #{tpu_custom_call.1} parent=11 // pred_region
          _
        $region28: #{tpu_custom_call.1} parent=11 // pred_fallthru
          _
        // Predicated region
        $region29: #{tpu_custom_call.1} parent=11 // pred_check
          %p281 = pneg %p163
        $region30: #{tpu_custom_call.1} parent=11 // pred_check_branch
          %283 = sbr.rel (%p281) target = $region32
        $region31: #{tpu_custom_call.1} parent=11 // pred_region
          _
        $region32: #{tpu_custom_call.1} parent=11 // pred_fallthru
          _
        // Predicated region
        $region33: #{tpu_custom_call.1} parent=11 // pred_check
          %p284 = pneg %p184
        $region34: #{tpu_custom_call.1} parent=11 // pred_check_branch
          %286 = sbr.rel (%p284) target = $region36
        $region35: #{tpu_custom_call.1} parent=11 // pred_region
          _
        $region36: #{tpu_custom_call.1} parent=11 // pred_fallthru
          _
        // Predicated region
        $region37: #{tpu_custom_call.1} parent=11 // pred_check
          %p287 = pneg %p205
        $region38: #{tpu_custom_call.1} parent=11 // pred_check_branch
          %289 = sbr.rel (%p287) target = $region40
        $region39: #{tpu_custom_call.1} parent=11 // pred_region
          _
        $region40: #{tpu_custom_call.1} parent=11 // pred_fallthru
          _
        // Predicated region
        $region41: #{tpu_custom_call.1} parent=11 // pred_check
          %p290 = pneg %p226
        $region42: #{tpu_custom_call.1} parent=11 // pred_check_branch
          %292 = sbr.rel (%p290) target = $region44
        $region43: #{tpu_custom_call.1} parent=11 // pred_region
          _
        $region44: #{tpu_custom_call.1} parent=11 // pred_fallthru
          _
      $region12: #{tpu_custom_call.1} parent=5 // pred_fallthru
        _
      %p293 = scmp.lt.s32.totalorder %s18, 2
      // Predicated region
      $region45: #{tpu_custom_call.1} parent=5 // pred_check
        %p294 = pneg %p293
      $region46: #{tpu_custom_call.1} parent=5 // pred_check_branch
        %296 = sbr.rel (%p294) target = $region48
      $region47: #{tpu_custom_call.1} parent=5 // pred_region
        // Predicated region
        $region49: #{tpu_custom_call.1} parent=47 // pred_check
          %p297 = pneg %p52
        $region50: #{tpu_custom_call.1} parent=47 // pred_check_branch
          %299 = sbr.rel (%p297) target = $region52
        $region51: #{tpu_custom_call.1} parent=47 // pred_region
          %p300 = scmp.lt.s32.totalorder %s25, 1
          %s301 = scalar_select %p300, %s25, 1
          %p302 = scmp.lt.s32.totalorder %s26, 0
          %s303 = scalar_select %p302, %s26, 0
          %s304 = sadd.s32 %s303, %s301
          %s305 = smul.addr %s304, 8
          %s306 = scalar_lea.vmem %s0, %s305
        $region52: #{tpu_custom_call.1} parent=47 // pred_fallthru
          _
      $region48: #{tpu_custom_call.1} parent=5 // pred_fallthru
        _
      %p307 = scmp.le.s32.totalorder 1, %s18
      %p308 = scmp.lt.s32.totalorder %s18, 3
      %p309 = pnand %p307, %p308
      %p310 = pneg %p309
      // Predicated region
      $region53: #{tpu_custom_call.1} parent=5 // pred_check
        _
      $region54: #{tpu_custom_call.1} parent=5 // pred_check_branch
        %312 = sbr.rel (%p309) target = $region56
      $region55: #{tpu_custom_call.1} parent=5 // pred_region
        %s313 = ssub.s32 %s18, 1
        %p314 = scmp.lt.s32.totalorder %s27, 1
        %s315 = scalar_select %p314, %s27, 1
        %p316 = scmp.lt.s32.totalorder %s28, 0
        %s317 = scalar_select %p316, %s28, 0
        %s318 = sadd.s32 %s317, %s315
        %s319 = smul.addr %s318, 8
        %s320 = scalar_lea.vmem %s0, %s319
        %p321 = pneg %p58
        %p322 = pneg %p55
        %p323 = pneg %p79
        %p324 = pneg %p76
        %p325 = pneg %p100
        %p326 = pneg %p97
        %p327 = pneg %p121
        %p328 = pneg %p118
        %p329 = pneg %p142
        %p330 = pneg %p139
        %p331 = pneg %p163
        %p332 = pneg %p160
        %p333 = pneg %p184
        %p334 = pneg %p181
        %p335 = pneg %p205
        %p336 = pneg %p202
        %p337 = pneg %p226
        %p338 = pneg %p223
        %p339 = pneg %p254
        %p340 = pneg %p251
        %s341 = sand.u32 %s241, 1
        %s342 = scalar_lea.sflag [#allocation4], %s341
        %s343 = sand.u32 %s241, 1
        %s344 = smul.addr %s343, 8
        %s345 = scalar_lea.vmem [#allocation3], %s344
        %p346 = scmp.lt.s32.totalorder %s27, 1
        %s347 = scalar_select %p346, %s27, 1
        %p348 = scmp.lt.s32.totalorder %s28, 0
        %s349 = scalar_select %p348, %s28, 0
        %s350 = sadd.s32 %s349, %s347
        %s351 = smul.addr %s350, 8
        %s352 = scalar_lea.vmem %s0, %s351
        %v354 = vld [vmem:[%s352] sm:$0xff]
        %v355 = vld [vmem:[%s1] sm:$0x1]
        %v356 = vmul.f32 %v354, %v354
        %vm357 = vcmask 261120
        %v358 = vsel %vm357, %v356, 0.0
        %359 = vadd.xlane.f32.xlu0 %v358
        %v360 = vpop.xlane.xlu0 %359
        %v361 = vrcp.pop 32.0
        %v362 = vmul.f32 %v360, %v361
        %v363 = vadd.f32 %v362, 1e-06
        %v364 = vrsqrt.pop %v363
        %v365 = vmul.f32 %v354, %v364
        %v367 = vlaneseq
        %v368 = vshrl.u32 %v367, 7
        %v369 = vsub.s32 0, %v368
        %v370 = vrot.slane %v355, %v369
        %v372 = vmul.f32 %v365, %v370
        %v373 = vpack.c.bf16 %v372, %v372
        %v374 = vld [vmem:[%s3] sm:$0xf]
        %v375 = vld [vmem:[%s3 + $0x4] sm:$0xf]
        %v376 = vld [vmem:[%s3 + $0x8] sm:$0xf]
        %v377 = vld [vmem:[%s3 + $0xc] sm:$0xf]
        %v378 = vld [vmem:[%s4] sm:$0x1]
        %v380 = vlaneseq
        %v381 = vshrl.u32 %v380, 7
        %v382 = vsub.s32 0, %v381
        %v383 = vrot.slane %v378, %v382
        %v389 = vunpack.c.l.b16 %v374
        %v390 = vunpack.c.l.b16 %v375
        %v391 = vunpack.c.l.b16 %v376
        %v392 = vunpack.c.l.b16 %v377
        %v393 = vpack.c.b16 %v390, %v389
        %v394 = vpack.c.b16 %v392, %v391
        %v398 = vsel %vm357, %v373, 0
        %400 = vmatprep.subr.bf16.mxu0 0
        %401 = vmatpush1.bf16.msra.mxu0 %v393
        %402 = vmatprep.subr.bf16.mxu0 0
        %403 = vmatpush1.bf16.msra.mxu0 %v394
        %404 = vmatprep.subr.bf16.mxu0 0
        %405 = vmatpush1.bf16.msra.mxu0 0
        %406 = vmatprep.subr.bf16.mxu0 0
        %407 = vmatpush1.bf16.msra.mxu0 0
        %408 = vmatprep.subr.bf16.mxu0 0
        %409 = vmatpush1.bf16.msra.mxu0 0
        %410 = vmatprep.subr.bf16.mxu0 0
        %411 = vmatpush1.bf16.msra.mxu0 0
        %412 = vmatprep.subr.bf16.mxu0 0
        %413 = vmatpush1.bf16.msra.mxu0 0
        %414 = vmatprep.subr.bf16.mxu0 0
        %415 = vmatpush1.bf16.msra.mxu0 0
        %416 = vmatprep.subr.bf16.mxu0 0
        %417 = vmatpush1.bf16.msra.mxu0 0
        %418 = vmatprep.subr.bf16.mxu0 0
        %419 = vmatpush1.bf16.msra.mxu0 0
        %420 = vmatprep.subr.bf16.mxu0 0
        %421 = vmatpush1.bf16.msra.mxu0 0
        %422 = vmatprep.subr.bf16.mxu0 0
        %423 = vmatpush1.bf16.msra.mxu0 0
        %424 = vmatprep.subr.bf16.mxu0 0
        %425 = vmatpush1.bf16.msra.mxu0 0
        %426 = vmatprep.subr.bf16.mxu0 0
        %427 = vmatpush1.bf16.msra.mxu0 0
        %428 = vmatprep.subr.bf16.mxu0 0
        %429 = vmatpush1.bf16.msra.mxu0 0
        %430 = vmatprep.subr.bf16.mxu0 0
        %431 = vmatpush1.bf16.msra.mxu0 0
        %432 = vmatprep.mubr.bf16.mxu0 0
        %433 = vmatmul.mubr.bf16.gmra.mrb[0].mxu0 %v398
        %v434 = vpop.f32.mrb[0].mxu0
        %v435 = vadd.f32 %v383, %v434
        %v436 = vpop.f32.mrb[0].mxu0
        %v437 = vpop.f32.mrb[0].mxu0
        %v438 = vpop.f32.mrb[0].mxu0
        %439 = vdwg.mxu0
        %v440 = vpack.c.bf16 %v435, %v435
        %s441 = smul.addr %s28, 4
        %s442 = scalar_lea.vmem [#allocation2], %s441
        %vm443 = vcmask 781312
        %444 = vst.msk [vmem:[%s442] sm:$0xf] %vm443, %v440
        %s445 = smul.u32 %s28, 8
        %v446 = vlaneseq
        %v447 = vshrl.u32 %v446, 7
        %v448 = vstv %s445
        %v449 = vadd.s32 %v448, %v447
        %v450 = vlaneseq
        %v451 = vand.u32 %v450, 127
        %v452 = vld [vmem:[%s442] sm:$0xf]
        %s453 = sadd.s32 %s28, 1
        // While loop
        $region57: #{tpu_custom_call.1} parent=55 // loop_pre_header
          _
        $region58: #{tpu_custom_call.1} parent=55 // loop_header
          %s455 = sphi 0, %s457
          %p456 = scmp.ge.s32.totalorder %s455, %s453
          %v460 = vphi -inf, %v526
          %v461 = vphi 0.0, %v540
          %v462 = vphi 0.0, %v591
        $region59: #{tpu_custom_call.1} parent=55 // loop_header_branch
          %459 = sbr.rel (%p456) target = $region63
        $region60: #{tpu_custom_call.1} parent=55 // loop_body
          %s463 = smul.u32 %s455, 8
          %s464 = smul.addr %s455, 4
          %s465 = scalar_lea.vmem [#allocation2], %s464
          %v466 = vld [vmem:[%s465] sm:$0xf]
          %v468 = vunpack.c.l.b16 %v466
          %v469 = vpack.c.b16 %v468, %v468
          %470 = vrot.lane.b32.xlu0 %v469, 96
          %v471 = vpop.permute.xlu0 %470
          %vm472 = vcmask 64512
          %v474 = vsel %vm472, %v452, 0
          %v477 = vsel %vm472, %v471, 0
          %479 = vmatprep.subr.bf16.mxu0 0
          %480 = vmatpush1.bf16.xpose.msra.mxu0 %v477
          %481 = vmatprep.subr.bf16.mxu0 0
          %482 = vmatpush1.bf16.xpose.msra.mxu0 0
          %483 = vmatprep.subr.bf16.mxu0 0
          %484 = vmatpush1.bf16.xpose.msra.mxu0 0
          %485 = vmatprep.subr.bf16.mxu0 0
          %486 = vmatpush1.bf16.xpose.msra.mxu0 0
          %487 = vmatprep.subr.bf16.mxu0 0
          %488 = vmatpush1.bf16.xpose.msra.mxu0 0
          %489 = vmatprep.subr.bf16.mxu0 0
          %490 = vmatpush1.bf16.xpose.msra.mxu0 0
          %491 = vmatprep.subr.bf16.mxu0 0
          %492 = vmatpush1.bf16.xpose.msra.mxu0 0
          %493 = vmatprep.subr.bf16.mxu0 0
          %494 = vmatpush1.bf16.xpose.msra.mxu0 0
          %495 = vmatprep.subr.bf16.mxu0 0
          %496 = vmatpush1.bf16.xpose.msra.mxu0 0
          %497 = vmatprep.subr.bf16.mxu0 0
          %498 = vmatpush1.bf16.xpose.msra.mxu0 0
          %499 = vmatprep.subr.bf16.mxu0 0
          %500 = vmatpush1.bf16.xpose.msra.mxu0 0
          %501 = vmatprep.subr.bf16.mxu0 0
          %502 = vmatpush1.bf16.xpose.msra.mxu0 0
          %503 = vmatprep.subr.bf16.mxu0 0
          %504 = vmatpush1.bf16.xpose.msra.mxu0 0
          %505 = vmatprep.subr.bf16.mxu0 0
          %506 = vmatpush1.bf16.xpose.msra.mxu0 0
          %507 = vmatprep.subr.bf16.mxu0 0
          %508 = vmatpush1.bf16.xpose.msra.mxu0 0
          %509 = vmatprep.subr.bf16.mxu0 0
          %510 = vmatpush1.bf16.xpose.msra.mxu0 0
          %511 = vmatprep.mubr.bf16.mxu0 0
          %512 = vmatmul.mubr.bf16.gmra.mrb[0].mxu0 %v474
          %v513 = vpop.f32.mrb[0].mxu0
          %v514 = vadd.f32 0.0, %v513
          %v515 = vpop.f32.mrb[0].mxu0
          %v516 = vpop.f32.mrb[0].mxu0
          %v517 = vpop.f32.mrb[0].mxu0
          %518 = vdwg.mxu0
          %v519 = vstv %s463
          %v520 = vadd.s32 %v519, %v451
          %vm521 = vcmp.ge.s32.totalorder %v449, %v520
          %v522 = vsel %vm521, %v514, -1e+30
          %v523 = vsel %vm472, %v522, -inf
          %524 = vmax.xlane.f32.xlu0 %v523
          %v525 = vpop.xlane.xlu0 %524
          %v526 = vmax.f32 %v460, %v525
          %v527 = vsub.f32 %v460, %v526
          %v528 = vmul.f32 %v527, 1.442695
          %v529 = vpow.pop %v528
          %v530 = vsub.f32 %v522, %v526
          %v531 = vpack.c.bf16 %v530, %v530
          %v533 = vmul.bf16 %v531, 1069105081
          %v534 = vpow.bf16.pop %v533
          %v535 = vmul.f32 %v529, %v461
          %v536 = vunpack.c.l.bf16 %v534
          %v537 = vsel %vm472, %v536, 0.0
          %538 = vadd.xlane.f32.xlu0 %v537
          %v539 = vpop.xlane.xlu0 %538
          %v540 = vadd.f32 %v535, %v539
          %v541 = vmul.f32 %v529, %v462
          %542 = vrot.lane.b32.xlu0 %v469, 64
          %v543 = vpop.permute.xlu0 %542
          %v545 = vsel %vm472, %v534, 0
          %vm547 = vcmask 1043456
          %v549 = vsel %vm547, %v543, 0
          %551 = vmatprep.subr.bf16.mxu0 0
          %552 = vmatpush1.bf16.msra.mxu0 %v549
          %553 = vmatprep.subr.bf16.mxu0 0
          %554 = vmatpush1.bf16.msra.mxu0 0
          %555 = vmatprep.subr.bf16.mxu0 0
          %556 = vmatpush1.bf16.msra.mxu0 0
          %557 = vmatprep.subr.bf16.mxu0 0
          %558 = vmatpush1.bf16.msra.mxu0 0
          %559 = vmatprep.subr.bf16.mxu0 0
          %560 = vmatpush1.bf16.msra.mxu0 0
          %561 = vmatprep.subr.bf16.mxu0 0
          %562 = vmatpush1.bf16.msra.mxu0 0
          %563 = vmatprep.subr.bf16.mxu0 0
          %564 = vmatpush1.bf16.msra.mxu0 0
          %565 = vmatprep.subr.bf16.mxu0 0
          %566 = vmatpush1.bf16.msra.mxu0 0
          %567 = vmatprep.subr.bf16.mxu0 0
          %568 = vmatpush1.bf16.msra.mxu0 0
          %569 = vmatprep.subr.bf16.mxu0 0
          %570 = vmatpush1.bf16.msra.mxu0 0
          %571 = vmatprep.subr.bf16.mxu0 0
          %572 = vmatpush1.bf16.msra.mxu0 0
          %573 = vmatprep.subr.bf16.mxu0 0
          %574 = vmatpush1.bf16.msra.mxu0 0
          %575 = vmatprep.subr.bf16.mxu0 0
          %576 = vmatpush1.bf16.msra.mxu0 0
          %577 = vmatprep.subr.bf16.mxu0 0
          %578 = vmatpush1.bf16.msra.mxu0 0
          %579 = vmatprep.subr.bf16.mxu0 0
          %580 = vmatpush1.bf16.msra.mxu0 0
          %581 = vmatprep.subr.bf16.mxu0 0
          %582 = vmatpush1.bf16.msra.mxu0 0
          %583 = vmatprep.mubr.bf16.mxu0 0
          %584 = vmatmul.mubr.bf16.gmra.mrb[0].mxu0 %v545
          %v585 = vpop.f32.mrb[0].mxu0
          %v586 = vadd.f32 0.0, %v585
          %v587 = vpop.f32.mrb[0].mxu0
          %v588 = vpop.f32.mrb[0].mxu0
          %v589 = vpop.f32.mrb[0].mxu0
          %590 = vdwg.mxu0
          %v591 = vadd.f32 %v541, %v586
        $region61: #{tpu_custom_call.1} parent=55 // loop_footer
          %s457 = sadd.s32 %s455, 1
        $region62: #{tpu_custom_call.1} parent=55 // loop_footer_branch
          %454 = sbr.rel target = $region58
        $region63: #{tpu_custom_call.1} parent=55 // loop_exit
          _
        %v592 = vrcp.pop %v461
        %v593 = vmul.f32 %v462, %v592
        %v594 = vpack.c.bf16 %v593, %v593
        %v595 = vld [vmem:[%s5] sm:$0xf]
        // While loop
        $region64: #{tpu_custom_call.1} parent=55 // loop_pre_header
          _
        $region65: #{tpu_custom_call.1} parent=55 // loop_header
          %s597 = sphi 0, %s599
          %p598 = scmp.ge.s32.totalorder %s597, %s453
          %v602 = vphi -inf, %v673
          %v603 = vphi 0.0, %v687
          %v604 = vphi 0.0, %v738
        $region66: #{tpu_custom_call.1} parent=55 // loop_header_branch
          %601 = sbr.rel (%p598) target = $region70
        $region67: #{tpu_custom_call.1} parent=55 // loop_body
          %s605 = smul.u32 %s597, 8
          %s606 = smul.addr %s597, 4
          %s607 = scalar_lea.vmem [#allocation2], %s606
          %v608 = vld [vmem:[%s607] sm:$0xf]
          %v610 = vunpack.c.l.b16 %v452
          %v611 = vpack.c.b16 %v610, %v610
          %612 = vrot.lane.b32.xlu0 %v611, 120
          %v613 = vpop.permute.xlu0 %612
          %v615 = vunpack.c.l.b16 %v608
          %v616 = vpack.c.b16 %v615, %v615
          %617 = vrot.lane.b32.xlu0 %v616, 88
          %v618 = vpop.permute.xlu0 %617
          %vm619 = vcmask 64512
          %v621 = vsel %vm619, %v613, 0
          %v624 = vsel %vm619, %v618, 0
          %626 = vmatprep.subr.bf16.mxu0 0
          %627 = vmatpush1.bf16.xpose.msra.mxu0 %v624
          %628 = vmatprep.subr.bf16.mxu0 0
          %629 = vmatpush1.bf16.xpose.msra.mxu0 0
          %630 = vmatprep.subr.bf16.mxu0 0
          %631 = vmatpush1.bf16.xpose.msra.mxu0 0
          %632 = vmatprep.subr.bf16.mxu0 0
          %633 = vmatpush1.bf16.xpose.msra.mxu0 0
          %634 = vmatprep.subr.bf16.mxu0 0
          %635 = vmatpush1.bf16.xpose.msra.mxu0 0
          %636 = vmatprep.subr.bf16.mxu0 0
          %637 = vmatpush1.bf16.xpose.msra.mxu0 0
          %638 = vmatprep.subr.bf16.mxu0 0
          %639 = vmatpush1.bf16.xpose.msra.mxu0 0
          %640 = vmatprep.subr.bf16.mxu0 0
          %641 = vmatpush1.bf16.xpose.msra.mxu0 0
          %642 = vmatprep.subr.bf16.mxu0 0
          %643 = vmatpush1.bf16.xpose.msra.mxu0 0
          %644 = vmatprep.subr.bf16.mxu0 0
          %645 = vmatpush1.bf16.xpose.msra.mxu0 0
          %646 = vmatprep.subr.bf16.mxu0 0
          %647 = vmatpush1.bf16.xpose.msra.mxu0 0
          %648 = vmatprep.subr.bf16.mxu0 0
          %649 = vmatpush1.bf16.xpose.msra.mxu0 0
          %650 = vmatprep.subr.bf16.mxu0 0
          %651 = vmatpush1.bf16.xpose.msra.mxu0 0
          %652 = vmatprep.subr.bf16.mxu0 0
          %653 = vmatpush1.bf16.xpose.msra.mxu0 0
          %654 = vmatprep.subr.bf16.mxu0 0
          %655 = vmatpush1.bf16.xpose.msra.mxu0 0
          %656 = vmatprep.subr.bf16.mxu0 0
          %657 = vmatpush1.bf16.xpose.msra.mxu0 0
          %658 = vmatprep.mubr.bf16.mxu0 0
          %659 = vmatmul.mubr.bf16.gmra.mrb[0].mxu0 %v621
          %v660 = vpop.f32.mrb[0].mxu0
          %v661 = vadd.f32 0.0, %v660
          %v662 = vpop.f32.mrb[0].mxu0
          %v663 = vpop.f32.mrb[0].mxu0
          %v664 = vpop.f32.mrb[0].mxu0
          %665 = vdwg.mxu0
          %v666 = vstv %s605
          %v667 = vadd.s32 %v666, %v451
          %vm668 = vcmp.ge.s32.totalorder %v449, %v667
          %v669 = vsel %vm668, %v661, -1e+30
          %v670 = vsel %vm619, %v669, -inf
          %671 = vmax.xlane.f32.xlu0 %v670
          %v672 = vpop.xlane.xlu0 %671
          %v673 = vmax.f32 %v602, %v672
          %v674 = vsub.f32 %v602, %v673
          %v675 = vmul.f32 %v674, 1.442695
          %v676 = vpow.pop %v675
          %v677 = vsub.f32 %v669, %v673
          %v678 = vpack.c.bf16 %v677, %v677
          %v680 = vmul.bf16 %v678, 1069105081
          %v681 = vpow.bf16.pop %v680
          %v682 = vmul.f32 %v676, %v603
          %v683 = vunpack.c.l.bf16 %v681
          %v684 = vsel %vm619, %v683, 0.0
          %685 = vadd.xlane.f32.xlu0 %v684
          %v686 = vpop.xlane.xlu0 %685
          %v687 = vadd.f32 %v682, %v686
          %v688 = vmul.f32 %v676, %v604
          %689 = vrot.lane.b32.xlu0 %v616, 56
          %v690 = vpop.permute.xlu0 %689
          %v692 = vsel %vm619, %v681, 0
          %vm694 = vcmask 1043456
          %v696 = vsel %vm694, %v690, 0
          %698 = vmatprep.subr.bf16.mxu0 0
          %699 = vmatpush1.bf16.msra.mxu0 %v696
          %700 = vmatprep.subr.bf16.mxu0 0
          %701 = vmatpush1.bf16.msra.mxu0 0
          %702 = vmatprep.subr.bf16.mxu0 0
          %703 = vmatpush1.bf16.msra.mxu0 0
          %704 = vmatprep.subr.bf16.mxu0 0
          %705 = vmatpush1.bf16.msra.mxu0 0
          %706 = vmatprep.subr.bf16.mxu0 0
          %707 = vmatpush1.bf16.msra.mxu0 0
          %708 = vmatprep.subr.bf16.mxu0 0
          %709 = vmatpush1.bf16.msra.mxu0 0
          %710 = vmatprep.subr.bf16.mxu0 0
          %711 = vmatpush1.bf16.msra.mxu0 0
          %712 = vmatprep.subr.bf16.mxu0 0
          %713 = vmatpush1.bf16.msra.mxu0 0
          %714 = vmatprep.subr.bf16.mxu0 0
          %715 = vmatpush1.bf16.msra.mxu0 0
          %716 = vmatprep.subr.bf16.mxu0 0
          %717 = vmatpush1.bf16.msra.mxu0 0
          %718 = vmatprep.subr.bf16.mxu0 0
          %719 = vmatpush1.bf16.msra.mxu0 0
          %720 = vmatprep.subr.bf16.mxu0 0
          %721 = vmatpush1.bf16.msra.mxu0 0
          %722 = vmatprep.subr.bf16.mxu0 0
          %723 = vmatpush1.bf16.msra.mxu0 0
          %724 = vmatprep.subr.bf16.mxu0 0
          %725 = vmatpush1.bf16.msra.mxu0 0
          %726 = vmatprep.subr.bf16.mxu0 0
          %727 = vmatpush1.bf16.msra.mxu0 0
          %728 = vmatprep.subr.bf16.mxu0 0
          %729 = vmatpush1.bf16.msra.mxu0 0
          %730 = vmatprep.mubr.bf16.mxu0 0
          %731 = vmatmul.mubr.bf16.gmra.mrb[0].mxu0 %v692
          %v732 = vpop.f32.mrb[0].mxu0
          %v733 = vadd.f32 0.0, %v732
          %v734 = vpop.f32.mrb[0].mxu0
          %v735 = vpop.f32.mrb[0].mxu0
          %v736 = vpop.f32.mrb[0].mxu0
          %737 = vdwg.mxu0
          %v738 = vadd.f32 %v688, %v733
        $region68: #{tpu_custom_call.1} parent=55 // loop_footer
          %s599 = sadd.s32 %s597, 1
        $region69: #{tpu_custom_call.1} parent=55 // loop_footer_branch
          %596 = sbr.rel target = $region65
        $region70: #{tpu_custom_call.1} parent=55 // loop_exit
          _
        %v739 = vrcp.pop %v603
        %v740 = vmul.f32 %v604, %v739
        %v741 = vpack.c.bf16 %v740, %v740
        %v742 = vld [vmem:[%s5 + $0x4] sm:$0xf]
        %vm743 = vcmask 64512
        %v745 = vsel %vm743, %v741, 0
        %vm747 = vcmask 1043456
        %v749 = vsel %vm747, %v742, 0
        %751 = vmatprep.subr.bf16.mxu0 0
        %752 = vmatpush1.bf16.msra.mxu0 %v749
        %753 = vmatprep.subr.bf16.mxu0 0
        %754 = vmatpush1.bf16.msra.mxu0 0
        %755 = vmatprep.subr.bf16.mxu0 0
        %756 = vmatpush1.bf16.msra.mxu0 0
        %757 = vmatprep.subr.bf16.mxu0 0
        %758 = vmatpush1.bf16.msra.mxu0 0
        %759 = vmatprep.subr.bf16.mxu0 0
        %760 = vmatpush1.bf16.msra.mxu0 0
        %761 = vmatprep.subr.bf16.mxu0 0
        %762 = vmatpush1.bf16.msra.mxu0 0
        %763 = vmatprep.subr.bf16.mxu0 0
        %764 = vmatpush1.bf16.msra.mxu0 0
        %765 = vmatprep.subr.bf16.mxu0 0
        %766 = vmatpush1.bf16.msra.mxu0 0
        %767 = vmatprep.subr.bf16.mxu0 0
        %768 = vmatpush1.bf16.msra.mxu0 0
        %769 = vmatprep.subr.bf16.mxu0 0
        %770 = vmatpush1.bf16.msra.mxu0 0
        %771 = vmatprep.subr.bf16.mxu0 0
        %772 = vmatpush1.bf16.msra.mxu0 0
        %773 = vmatprep.subr.bf16.mxu0 0
        %774 = vmatpush1.bf16.msra.mxu0 0
        %775 = vmatprep.subr.bf16.mxu0 0
        %776 = vmatpush1.bf16.msra.mxu0 0
        %777 = vmatprep.subr.bf16.mxu0 0
        %778 = vmatpush1.bf16.msra.mxu0 0
        %779 = vmatprep.subr.bf16.mxu0 0
        %780 = vmatpush1.bf16.msra.mxu0 0
        %781 = vmatprep.subr.bf16.mxu0 0
        %782 = vmatpush1.bf16.msra.mxu0 0
        %783 = vmatprep.mubr.bf16.mxu0 0
        %784 = vmatmul.mubr.bf16.gmra.mrb[0].mxu0 %v745
        %v785 = vpop.f32.mrb[0].mxu0
        %v786 = vadd.f32 0.0, %v785
        %v787 = vpop.f32.mrb[0].mxu0
        %v788 = vpop.f32.mrb[0].mxu0
        %v789 = vpop.f32.mrb[0].mxu0
        %790 = vdwg.mxu0
        %v792 = vsel %vm743, %v594, 0
        %v795 = vsel %vm747, %v595, 0
        %797 = vmatprep.subr.bf16.mxu0 0
        %798 = vmatpush1.bf16.msra.mxu0 %v795
        %799 = vmatprep.subr.bf16.mxu0 0
        %800 = vmatpush1.bf16.msra.mxu0 0
        %801 = vmatprep.subr.bf16.mxu0 0
        %802 = vmatpush1.bf16.msra.mxu0 0
        %803 = vmatprep.subr.bf16.mxu0 0
        %804 = vmatpush1.bf16.msra.mxu0 0
        %805 = vmatprep.subr.bf16.mxu0 0
        %806 = vmatpush1.bf16.msra.mxu0 0
        %807 = vmatprep.subr.bf16.mxu0 0
        %808 = vmatpush1.bf16.msra.mxu0 0
        %809 = vmatprep.subr.bf16.mxu0 0
        %810 = vmatpush1.bf16.msra.mxu0 0
        %811 = vmatprep.subr.bf16.mxu0 0
        %812 = vmatpush1.bf16.msra.mxu0 0
        %813 = vmatprep.subr.bf16.mxu0 0
        %814 = vmatpush1.bf16.msra.mxu0 0
        %815 = vmatprep.subr.bf16.mxu0 0
        %816 = vmatpush1.bf16.msra.mxu0 0
        %817 = vmatprep.subr.bf16.mxu0 0
        %818 = vmatpush1.bf16.msra.mxu0 0
        %819 = vmatprep.subr.bf16.mxu0 0
        %820 = vmatpush1.bf16.msra.mxu0 0
        %821 = vmatprep.subr.bf16.mxu0 0
        %822 = vmatpush1.bf16.msra.mxu0 0
        %823 = vmatprep.subr.bf16.mxu0 0
        %824 = vmatpush1.bf16.msra.mxu0 0
        %825 = vmatprep.subr.bf16.mxu0 0
        %826 = vmatpush1.bf16.msra.mxu0 0
        %827 = vmatprep.subr.bf16.mxu0 0
        %828 = vmatpush1.bf16.msra.mxu0 0
        %829 = vmatprep.mubr.bf16.mxu0 0
        %830 = vmatmul.mubr.bf16.gmra.mrb[0].mxu0 %v792
        %v831 = vpop.f32.mrb[0].mxu0
        %v832 = vadd.f32 %v786, %v831
        %v833 = vpop.f32.mrb[0].mxu0
        %v834 = vpop.f32.mrb[0].mxu0
        %v835 = vpop.f32.mrb[0].mxu0
        %836 = vdwg.mxu0
        // While loop
        $region71: #{tpu_custom_call.1} parent=55 // loop_pre_header
          _
        $region72: #{tpu_custom_call.1} parent=55 // loop_header
          %s838 = sphi 0, %s840
          %p839 = scmp.ge.s32.totalorder %s838, %s453
          %v843 = vphi -inf, %v913
          %v844 = vphi 0.0, %v927
          %v845 = vphi 0.0, %v977
        $region73: #{tpu_custom_call.1} parent=55 // loop_header_branch
          %842 = sbr.rel (%p839) target = $region77
        $region74: #{tpu_custom_call.1} parent=55 // loop_body
          %s846 = smul.u32 %s838, 8
          %s847 = smul.addr %s838, 4
          %s848 = scalar_lea.vmem [#allocation2], %s847
          %v849 = vld [vmem:[%s848] sm:$0xf]
          %v851 = vunpack.c.l.b16 %v452
          %v852 = vpack.c.b16 %v851, %v851
          %853 = vrot.lane.b32.xlu0 %v852, 112
          %v854 = vpop.permute.xlu0 %853
          %v856 = vunpack.c.l.b16 %v849
          %v857 = vpack.c.b16 %v856, %v856
          %858 = vrot.lane.b32.xlu0 %v857, 80
          %v859 = vpop.permute.xlu0 %858
          %v861 = vsel %vm743, %v854, 0
          %v864 = vsel %vm743, %v859, 0
          %866 = vmatprep.subr.bf16.mxu0 0
          %867 = vmatpush1.bf16.xpose.msra.mxu0 %v864
          %868 = vmatprep.subr.bf16.mxu0 0
          %869 = vmatpush1.bf16.xpose.msra.mxu0 0
          %870 = vmatprep.subr.bf16.mxu0 0
          %871 = vmatpush1.bf16.xpose.msra.mxu0 0
          %872 = vmatprep.subr.bf16.mxu0 0
          %873 = vmatpush1.bf16.xpose.msra.mxu0 0
          %874 = vmatprep.subr.bf16.mxu0 0
          %875 = vmatpush1.bf16.xpose.msra.mxu0 0
          %876 = vmatprep.subr.bf16.mxu0 0
          %877 = vmatpush1.bf16.xpose.msra.mxu0 0
          %878 = vmatprep.subr.bf16.mxu0 0
          %879 = vmatpush1.bf16.xpose.msra.mxu0 0
          %880 = vmatprep.subr.bf16.mxu0 0
          %881 = vmatpush1.bf16.xpose.msra.mxu0 0
          %882 = vmatprep.subr.bf16.mxu0 0
          %883 = vmatpush1.bf16.xpose.msra.mxu0 0
          %884 = vmatprep.subr.bf16.mxu0 0
          %885 = vmatpush1.bf16.xpose.msra.mxu0 0
          %886 = vmatprep.subr.bf16.mxu0 0
          %887 = vmatpush1.bf16.xpose.msra.mxu0 0
          %888 = vmatprep.subr.bf16.mxu0 0
          %889 = vmatpush1.bf16.xpose.msra.mxu0 0
          %890 = vmatprep.subr.bf16.mxu0 0
          %891 = vmatpush1.bf16.xpose.msra.mxu0 0
          %892 = vmatprep.subr.bf16.mxu0 0
          %893 = vmatpush1.bf16.xpose.msra.mxu0 0
          %894 = vmatprep.subr.bf16.mxu0 0
          %895 = vmatpush1.bf16.xpose.msra.mxu0 0
          %896 = vmatprep.subr.bf16.mxu0 0
          %897 = vmatpush1.bf16.xpose.msra.mxu0 0
          %898 = vmatprep.mubr.bf16.mxu0 0
          %899 = vmatmul.mubr.bf16.gmra.mrb[0].mxu0 %v861
          %v900 = vpop.f32.mrb[0].mxu0
          %v901 = vadd.f32 0.0, %v900
          %v902 = vpop.f32.mrb[0].mxu0
          %v903 = vpop.f32.mrb[0].mxu0
          %v904 = vpop.f32.mrb[0].mxu0
          %905 = vdwg.mxu0
          %v906 = vstv %s846
          %v907 = vadd.s32 %v906, %v451
          %vm908 = vcmp.ge.s32.totalorder %v449, %v907
          %v909 = vsel %vm908, %v901, -1e+30
          %v910 = vsel %vm743, %v909, -inf
          %911 = vmax.xlane.f32.xlu0 %v910
          %v912 = vpop.xlane.xlu0 %911
          %v913 = vmax.f32 %v843, %v912
          %v914 = vsub.f32 %v843, %v913
          %v915 = vmul.f32 %v914, 1.442695
          %v916 = vpow.pop %v915
          %v917 = vsub.f32 %v909, %v913
          %v918 = vpack.c.bf16 %v917, %v917
          %v920 = vmul.bf16 %v918, 1069105081
          %v921 = vpow.bf16.pop %v920
          %v922 = vmul.f32 %v916, %v844
          %v923 = vunpack.c.l.bf16 %v921
          %v924 = vsel %vm743, %v923, 0.0
          %925 = vadd.xlane.f32.xlu0 %v924
          %v926 = vpop.xlane.xlu0 %925
          %v927 = vadd.f32 %v922, %v926
          %v928 = vmul.f32 %v916, %v845
          %929 = vrot.lane.b32.xlu0 %v857, 48
          %v930 = vpop.permute.xlu0 %929
          %v932 = vsel %vm743, %v921, 0
          %v935 = vsel %vm747, %v930, 0
          %937 = vmatprep.subr.bf16.mxu0 0
          %938 = vmatpush1.bf16.msra.mxu0 %v935
          %939 = vmatprep.subr.bf16.mxu0 0
          %940 = vmatpush1.bf16.msra.mxu0 0
          %941 = vmatprep.subr.bf16.mxu0 0
          %942 = vmatpush1.bf16.msra.mxu0 0
          %943 = vmatprep.subr.bf16.mxu0 0
          %944 = vmatpush1.bf16.msra.mxu0 0
          %945 = vmatprep.subr.bf16.mxu0 0
          %946 = vmatpush1.bf16.msra.mxu0 0
          %947 = vmatprep.subr.bf16.mxu0 0
          %948 = vmatpush1.bf16.msra.mxu0 0
          %949 = vmatprep.subr.bf16.mxu0 0
          %950 = vmatpush1.bf16.msra.mxu0 0
          %951 = vmatprep.subr.bf16.mxu0 0
          %952 = vmatpush1.bf16.msra.mxu0 0
          %953 = vmatprep.subr.bf16.mxu0 0
          %954 = vmatpush1.bf16.msra.mxu0 0
          %955 = vmatprep.subr.bf16.mxu0 0
          %956 = vmatpush1.bf16.msra.mxu0 0
          %957 = vmatprep.subr.bf16.mxu0 0
          %958 = vmatpush1.bf16.msra.mxu0 0
          %959 = vmatprep.subr.bf16.mxu0 0
          %960 = vmatpush1.bf16.msra.mxu0 0
          %961 = vmatprep.subr.bf16.mxu0 0
          %962 = vmatpush1.bf16.msra.mxu0 0
          %963 = vmatprep.subr.bf16.mxu0 0
          %964 = vmatpush1.bf16.msra.mxu0 0
          %965 = vmatprep.subr.bf16.mxu0 0
          %966 = vmatpush1.bf16.msra.mxu0 0
          %967 = vmatprep.subr.bf16.mxu0 0
          %968 = vmatpush1.bf16.msra.mxu0 0
          %969 = vmatprep.mubr.bf16.mxu0 0
          %970 = vmatmul.mubr.bf16.gmra.mrb[0].mxu0 %v932
          %v971 = vpop.f32.mrb[0].mxu0
          %v972 = vadd.f32 0.0, %v971
          %v973 = vpop.f32.mrb[0].mxu0
          %v974 = vpop.f32.mrb[0].mxu0
          %v975 = vpop.f32.mrb[0].mxu0
          %976 = vdwg.mxu0
          %v977 = vadd.f32 %v928, %v972
        $region75: #{tpu_custom_call.1} parent=55 // loop_footer
          %s840 = sadd.s32 %s838, 1
        $region76: #{tpu_custom_call.1} parent=55 // loop_footer_branch
          %837 = sbr.rel target = $region72
        $region77: #{tpu_custom_call.1} parent=55 // loop_exit
          _
        %v978 = vrcp.pop %v844
        %v979 = vmul.f32 %v845, %v978
        %v980 = vpack.c.bf16 %v979, %v979
        %v981 = vld [vmem:[%s5 + $0x8] sm:$0xf]
        %v983 = vsel %vm743, %v980, 0
        %v986 = vsel %vm747, %v981, 0
        %988 = vmatprep.subr.bf16.mxu0 0
        %989 = vmatpush1.bf16.msra.mxu0 %v986
        %990 = vmatprep.subr.bf16.mxu0 0
        %991 = vmatpush1.bf16.msra.mxu0 0
        %992 = vmatprep.subr.bf16.mxu0 0
        %993 = vmatpush1.bf16.msra.mxu0 0
        %994 = vmatprep.subr.bf16.mxu0 0
        %995 = vmatpush1.bf16.msra.mxu0 0
        %996 = vmatprep.subr.bf16.mxu0 0
        %997 = vmatpush1.bf16.msra.mxu0 0
        %998 = vmatprep.subr.bf16.mxu0 0
        %999 = vmatpush1.bf16.msra.mxu0 0
        %1000 = vmatprep.subr.bf16.mxu0 0
        %1001 = vmatpush1.bf16.msra.mxu0 0
        %1002 = vmatprep.subr.bf16.mxu0 0
        %1003 = vmatpush1.bf16.msra.mxu0 0
        %1004 = vmatprep.subr.bf16.mxu0 0
        %1005 = vmatpush1.bf16.msra.mxu0 0
        %1006 = vmatprep.subr.bf16.mxu0 0
        %1007 = vmatpush1.bf16.msra.mxu0 0
        %1008 = vmatprep.subr.bf16.mxu0 0
        %1009 = vmatpush1.bf16.msra.mxu0 0
        %1010 = vmatprep.subr.bf16.mxu0 0
        %1011 = vmatpush1.bf16.msra.mxu0 0
        %1012 = vmatprep.subr.bf16.mxu0 0
        %1013 = vmatpush1.bf16.msra.mxu0 0
        %1014 = vmatprep.subr.bf16.mxu0 0
        %1015 = vmatpush1.bf16.msra.mxu0 0
        %1016 = vmatprep.subr.bf16.mxu0 0
        %1017 = vmatpush1.bf16.msra.mxu0 0
        %1018 = vmatprep.subr.bf16.mxu0 0
        %1019 = vmatpush1.bf16.msra.mxu0 0
        %1020 = vmatprep.mubr.bf16.mxu0 0
        %1021 = vmatmul.mubr.bf16.gmra.mrb[0].mxu0 %v983
        %v1022 = vpop.f32.mrb[0].mxu0
        %v1023 = vadd.f32 0.0, %v1022
        %v1024 = vpop.f32.mrb[0].mxu0
        %v1025 = vpop.f32.mrb[0].mxu0
        %v1026 = vpop.f32.mrb[0].mxu0
        %1027 = vdwg.mxu0
        %v1028 = vadd.f32 %v832, %v1023
        // While loop
        $region78: #{tpu_custom_call.1} parent=55 // loop_pre_header
          _
        $region79: #{tpu_custom_call.1} parent=55 // loop_header
          %s1030 = sphi 0, %s1032
          %p1031 = scmp.ge.s32.totalorder %s1030, %s453
          %v1035 = vphi -inf, %v1105
          %v1036 = vphi 0.0, %v1119
          %v1037 = vphi 0.0, %v1169
        $region80: #{tpu_custom_call.1} parent=55 // loop_header_branch
          %1034 = sbr.rel (%p1031) target = $region84
        $region81: #{tpu_custom_call.1} parent=55 // loop_body
          %s1038 = smul.u32 %s1030, 8
          %s1039 = smul.addr %s1030, 4
          %s1040 = scalar_lea.vmem [#allocation2], %s1039
          %v1041 = vld [vmem:[%s1040] sm:$0xf]
          %v1043 = vunpack.c.l.b16 %v452
          %v1044 = vpack.c.b16 %v1043, %v1043
          %1045 = vrot.lane.b32.xlu0 %v1044, 104
          %v1046 = vpop.permute.xlu0 %1045
          %v1048 = vunpack.c.l.b16 %v1041
          %v1049 = vpack.c.b16 %v1048, %v1048
          %1050 = vrot.lane.b32.xlu0 %v1049, 72
          %v1051 = vpop.permute.xlu0 %1050
          %v1053 = vsel %vm743, %v1046, 0
          %v1056 = vsel %vm743, %v1051, 0
          %1058 = vmatprep.subr.bf16.mxu0 0
          %1059 = vmatpush1.bf16.xpose.msra.mxu0 %v1056
          %1060 = vmatprep.subr.bf16.mxu0 0
          %1061 = vmatpush1.bf16.xpose.msra.mxu0 0
          %1062 = vmatprep.subr.bf16.mxu0 0
          %1063 = vmatpush1.bf16.xpose.msra.mxu0 0
          %1064 = vmatprep.subr.bf16.mxu0 0
          %1065 = vmatpush1.bf16.xpose.msra.mxu0 0
          %1066 = vmatprep.subr.bf16.mxu0 0
          %1067 = vmatpush1.bf16.xpose.msra.mxu0 0
          %1068 = vmatprep.subr.bf16.mxu0 0
          %1069 = vmatpush1.bf16.xpose.msra.mxu0 0
          %1070 = vmatprep.subr.bf16.mxu0 0
          %1071 = vmatpush1.bf16.xpose.msra.mxu0 0
          %1072 = vmatprep.subr.bf16.mxu0 0
          %1073 = vmatpush1.bf16.xpose.msra.mxu0 0
          %1074 = vmatprep.subr.bf16.mxu0 0
          %1075 = vmatpush1.bf16.xpose.msra.mxu0 0
          %1076 = vmatprep.subr.bf16.mxu0 0
          %1077 = vmatpush1.bf16.xpose.msra.mxu0 0
          %1078 = vmatprep.subr.bf16.mxu0 0
          %1079 = vmatpush1.bf16.xpose.msra.mxu0 0
          %1080 = vmatprep.subr.bf16.mxu0 0
          %1081 = vmatpush1.bf16.xpose.msra.mxu0 0
          %1082 = vmatprep.subr.bf16.mxu0 0
          %1083 = vmatpush1.bf16.xpose.msra.mxu0 0
          %1084 = vmatprep.subr.bf16.mxu0 0
          %1085 = vmatpush1.bf16.xpose.msra.mxu0 0
          %1086 = vmatprep.subr.bf16.mxu0 0
          %1087 = vmatpush1.bf16.xpose.msra.mxu0 0
          %1088 = vmatprep.subr.bf16.mxu0 0
          %1089 = vmatpush1.bf16.xpose.msra.mxu0 0
          %1090 = vmatprep.mubr.bf16.mxu0 0
          %1091 = vmatmul.mubr.bf16.gmra.mrb[0].mxu0 %v1053
          %v1092 = vpop.f32.mrb[0].mxu0
          %v1093 = vadd.f32 0.0, %v1092
          %v1094 = vpop.f32.mrb[0].mxu0
          %v1095 = vpop.f32.mrb[0].mxu0
          %v1096 = vpop.f32.mrb[0].mxu0
          %1097 = vdwg.mxu0
          %v1098 = vstv %s1038
          %v1099 = vadd.s32 %v1098, %v451
          %vm1100 = vcmp.ge.s32.totalorder %v449, %v1099
          %v1101 = vsel %vm1100, %v1093, -1e+30
          %v1102 = vsel %vm743, %v1101, -inf
          %1103 = vmax.xlane.f32.xlu0 %v1102
          %v1104 = vpop.xlane.xlu0 %1103
          %v1105 = vmax.f32 %v1035, %v1104
          %v1106 = vsub.f32 %v1035, %v1105
          %v1107 = vmul.f32 %v1106, 1.442695
          %v1108 = vpow.pop %v1107
          %v1109 = vsub.f32 %v1101, %v1105
          %v1110 = vpack.c.bf16 %v1109, %v1109
          %v1112 = vmul.bf16 %v1110, 1069105081
          %v1113 = vpow.bf16.pop %v1112
          %v1114 = vmul.f32 %v1108, %v1036
          %v1115 = vunpack.c.l.bf16 %v1113
          %v1116 = vsel %vm743, %v1115, 0.0
          %1117 = vadd.xlane.f32.xlu0 %v1116
          %v1118 = vpop.xlane.xlu0 %1117
          %v1119 = vadd.f32 %v1114, %v1118
          %v1120 = vmul.f32 %v1108, %v1037
          %1121 = vrot.lane.b32.xlu0 %v1049, 40
          %v1122 = vpop.permute.xlu0 %1121
          %v1124 = vsel %vm743, %v1113, 0
          %v1127 = vsel %vm747, %v1122, 0
          %1129 = vmatprep.subr.bf16.mxu0 0
          %1130 = vmatpush1.bf16.msra.mxu0 %v1127
          %1131 = vmatprep.subr.bf16.mxu0 0
          %1132 = vmatpush1.bf16.msra.mxu0 0
          %1133 = vmatprep.subr.bf16.mxu0 0
          %1134 = vmatpush1.bf16.msra.mxu0 0
          %1135 = vmatprep.subr.bf16.mxu0 0
          %1136 = vmatpush1.bf16.msra.mxu0 0
          %1137 = vmatprep.subr.bf16.mxu0 0
          %1138 = vmatpush1.bf16.msra.mxu0 0
          %1139 = vmatprep.subr.bf16.mxu0 0
          %1140 = vmatpush1.bf16.msra.mxu0 0
          %1141 = vmatprep.subr.bf16.mxu0 0
          %1142 = vmatpush1.bf16.msra.mxu0 0
          %1143 = vmatprep.subr.bf16.mxu0 0
          %1144 = vmatpush1.bf16.msra.mxu0 0
          %1145 = vmatprep.subr.bf16.mxu0 0
          %1146 = vmatpush1.bf16.msra.mxu0 0
          %1147 = vmatprep.subr.bf16.mxu0 0
          %1148 = vmatpush1.bf16.msra.mxu0 0
          %1149 = vmatprep.subr.bf16.mxu0 0
          %1150 = vmatpush1.bf16.msra.mxu0 0
          %1151 = vmatprep.subr.bf16.mxu0 0
          %1152 = vmatpush1.bf16.msra.mxu0 0
          %1153 = vmatprep.subr.bf16.mxu0 0
          %1154 = vmatpush1.bf16.msra.mxu0 0
          %1155 = vmatprep.subr.bf16.mxu0 0
          %1156 = vmatpush1.bf16.msra.mxu0 0
          %1157 = vmatprep.subr.bf16.mxu0 0
          %1158 = vmatpush1.bf16.msra.mxu0 0
          %1159 = vmatprep.subr.bf16.mxu0 0
          %1160 = vmatpush1.bf16.msra.mxu0 0
          %1161 = vmatprep.mubr.bf16.mxu0 0
          %1162 = vmatmul.mubr.bf16.gmra.mrb[0].mxu0 %v1124
          %v1163 = vpop.f32.mrb[0].mxu0
          %v1164 = vadd.f32 0.0, %v1163
          %v1165 = vpop.f32.mrb[0].mxu0
          %v1166 = vpop.f32.mrb[0].mxu0
          %v1167 = vpop.f32.mrb[0].mxu0
          %1168 = vdwg.mxu0
          %v1169 = vadd.f32 %v1120, %v1164
        $region82: #{tpu_custom_call.1} parent=55 // loop_footer
          %s1032 = sadd.s32 %s1030, 1
        $region83: #{tpu_custom_call.1} parent=55 // loop_footer_branch
          %1029 = sbr.rel target = $region79
        $region84: #{tpu_custom_call.1} parent=55 // loop_exit
          _
        %v1170 = vrcp.pop %v1036
        %v1171 = vmul.f32 %v1037, %v1170
        %v1172 = vpack.c.bf16 %v1171, %v1171
        %v1173 = vld [vmem:[%s5 + $0xc] sm:$0xf]
        %v1175 = vsel %vm743, %v1172, 0
        %v1178 = vsel %vm747, %v1173, 0
        %1180 = vmatprep.subr.bf16.mxu0 0
        %1181 = vmatpush1.bf16.msra.mxu0 %v1178
        %1182 = vmatprep.subr.bf16.mxu0 0
        %1183 = vmatpush1.bf16.msra.mxu0 0
        %1184 = vmatprep.subr.bf16.mxu0 0
        %1185 = vmatpush1.bf16.msra.mxu0 0
        %1186 = vmatprep.subr.bf16.mxu0 0
        %1187 = vmatpush1.bf16.msra.mxu0 0
        %1188 = vmatprep.subr.bf16.mxu0 0
        %1189 = vmatpush1.bf16.msra.mxu0 0
        %1190 = vmatprep.subr.bf16.mxu0 0
        %1191 = vmatpush1.bf16.msra.mxu0 0
        %1192 = vmatprep.subr.bf16.mxu0 0
        %1193 = vmatpush1.bf16.msra.mxu0 0
        %1194 = vmatprep.subr.bf16.mxu0 0
        %1195 = vmatpush1.bf16.msra.mxu0 0
        %1196 = vmatprep.subr.bf16.mxu0 0
        %1197 = vmatpush1.bf16.msra.mxu0 0
        %1198 = vmatprep.subr.bf16.mxu0 0
        %1199 = vmatpush1.bf16.msra.mxu0 0
        %1200 = vmatprep.subr.bf16.mxu0 0
        %1201 = vmatpush1.bf16.msra.mxu0 0
        %1202 = vmatprep.subr.bf16.mxu0 0
        %1203 = vmatpush1.bf16.msra.mxu0 0
        %1204 = vmatprep.subr.bf16.mxu0 0
        %1205 = vmatpush1.bf16.msra.mxu0 0
        %1206 = vmatprep.subr.bf16.mxu0 0
        %1207 = vmatpush1.bf16.msra.mxu0 0
        %1208 = vmatprep.subr.bf16.mxu0 0
        %1209 = vmatpush1.bf16.msra.mxu0 0
        %1210 = vmatprep.subr.bf16.mxu0 0
        %1211 = vmatpush1.bf16.msra.mxu0 0
        %1212 = vmatprep.mubr.bf16.mxu0 0
        %1213 = vmatmul.mubr.bf16.gmra.mrb[0].mxu0 %v1175
        %v1214 = vpop.f32.mrb[0].mxu0
        %v1215 = vadd.f32 0.0, %v1214
        %v1216 = vpop.f32.mrb[0].mxu0
        %v1217 = vpop.f32.mrb[0].mxu0
        %v1218 = vpop.f32.mrb[0].mxu0
        %1219 = vdwg.mxu0
        %v1220 = vadd.f32 %v1028, %v1215
        %v1221 = vld [vmem:[%s6] sm:$0x1]
        %v1223 = vlaneseq
        %v1224 = vshrl.u32 %v1223, 7
        %v1225 = vsub.s32 0, %v1224
        %v1226 = vrot.slane %v1221, %v1225
        %v1228 = vadd.f32 %v1220, %v1226
        %v1229 = vadd.f32 %v354, %v1228
        %v1230 = vld [vmem:[%s2] sm:$0x1]
        %v1231 = vmul.f32 %v1229, %v1229
        %v1232 = vsel %vm357, %v1231, 0.0
        %1233 = vadd.xlane.f32.xlu0 %v1232
        %v1234 = vpop.xlane.xlu0 %1233
        %v1235 = vmul.f32 %v1234, %v361
        %v1236 = vadd.f32 %v1235, 1e-06
        %v1237 = vrsqrt.pop %v1236
        %v1238 = vmul.f32 %v1229, %v1237
        %v1240 = vlaneseq
        %v1241 = vshrl.u32 %v1240, 7
        %v1242 = vsub.s32 0, %v1241
        %v1243 = vrot.slane %v1230, %v1242
        %v1245 = vmul.f32 %v1238, %v1243
        %v1246 = vpack.c.bf16 %v1245, %v1245
        %v1247 = vld [vmem:[%s7] sm:$0xff]
        %v1248 = vld [vmem:[%s7 + $0x8] sm:$0xff]
        %v1249 = vld [vmem:[%s7 + $0x10] sm:$0xff]
        %v1250 = vld [vmem:[%s7 + $0x18] sm:$0xff]
        %v1255 = vunpack.c.l.b16 %v1247
        %v1256 = vunpack.c.h.b16 %v1247
        %v1257 = vunpack.c.l.b16 %v1248
        %v1258 = vunpack.c.h.b16 %v1248
        %v1259 = vunpack.c.l.b16 %v1249
        %v1260 = vunpack.c.h.b16 %v1249
        %v1261 = vunpack.c.l.b16 %v1250
        %v1262 = vunpack.c.h.b16 %v1250
        %v1263 = vpack.c.b16 %v1257, %v1255
        %v1264 = vpack.c.b16 %v1258, %v1256
        %v1265 = vpack.c.b16 %v1261, %v1259
        %v1266 = vpack.c.b16 %v1262, %v1260
        %v1272 = vsel %vm357, %v1246, 0
        %1274 = vmatprep.subr.bf16.mxu0 %v1264
        %1275 = vmatpush1.bf16.msra.mxu0 %v1263
        %1276 = vmatprep.subr.bf16.mxu0 %v1266
        %1277 = vmatpush1.bf16.msra.mxu0 %v1265
        %1278 = vmatprep.subr.bf16.mxu0 0
        %1279 = vmatpush1.bf16.msra.mxu0 0
        %1280 = vmatprep.subr.bf16.mxu0 0
        %1281 = vmatpush1.bf16.msra.mxu0 0
        %1282 = vmatprep.subr.bf16.mxu0 0
        %1283 = vmatpush1.bf16.msra.mxu0 0
        %1284 = vmatprep.subr.bf16.mxu0 0
        %1285 = vmatpush1.bf16.msra.mxu0 0
        %1286 = vmatprep.subr.bf16.mxu0 0
        %1287 = vmatpush1.bf16.msra.mxu0 0
        %1288 = vmatprep.subr.bf16.mxu0 0
        %1289 = vmatpush1.bf16.msra.mxu0 0
        %1290 = vmatprep.subr.bf16.mxu0 0
        %1291 = vmatpush1.bf16.msra.mxu0 0
        %1292 = vmatprep.subr.bf16.mxu0 0
        %1293 = vmatpush1.bf16.msra.mxu0 0
        %1294 = vmatprep.subr.bf16.mxu0 0
        %1295 = vmatpush1.bf16.msra.mxu0 0
        %1296 = vmatprep.subr.bf16.mxu0 0
        %1297 = vmatpush1.bf16.msra.mxu0 0
        %1298 = vmatprep.subr.bf16.mxu0 0
        %1299 = vmatpush1.bf16.msra.mxu0 0
        %1300 = vmatprep.subr.bf16.mxu0 0
        %1301 = vmatpush1.bf16.msra.mxu0 0
        %1302 = vmatprep.subr.bf16.mxu0 0
        %1303 = vmatpush1.bf16.msra.mxu0 0
        %1304 = vmatprep.subr.bf16.mxu0 0
        %1305 = vmatpush1.bf16.msra.mxu0 0
        %1306 = vmatprep.mubr.bf16.mxu0 0
        %1307 = vmatmul.mubr.bf16.gmra.mrb[0].mxu0 %v1272
        %v1308 = vpop.f32.mrb[0].mxu0
        %v1309 = vadd.f32 0.0, %v1308
        %v1310 = vpop.f32.mrb[0].mxu0
        %v1311 = vadd.f32 0.0, %v1310
        %v1312 = vpop.f32.mrb[0].mxu0
        %v1313 = vpop.f32.mrb[0].mxu0
        %1314 = vdwg.mxu0
        %v1315 = vxor.u32 %v1309, 2147483648
        %v1316 = vmul.f32 %v1315, 1.442695
        %v1317 = vpow.pop %v1316
        %v1318 = vadd.f32 %v1317, 1.0
        %v1319 = vrcp.pop %v1318
        %v1320 = vmul.f32 1.0, %v1319
        %v1321 = vmul.f32 %v1309, %v1320
        %v1322 = vmul.f32 %v1321, %v1311
        %v1323 = vpack.c.bf16 %v1322, %v1322
        %v1324 = vld [vmem:[%s8] sm:$0xf]
        %v1325 = vld [vmem:[%s8 + $0x4] sm:$0xf]
        %v1326 = vld [vmem:[%s8 + $0x8] sm:$0xf]
        %v1327 = vld [vmem:[%s8 + $0xc] sm:$0xf]
        %v1328 = vld [vmem:[%s8 + $0x10] sm:$0xf]
        %v1329 = vld [vmem:[%s8 + $0x14] sm:$0xf]
        %v1330 = vld [vmem:[%s8 + $0x18] sm:$0xf]
        %v1331 = vld [vmem:[%s8 + $0x1c] sm:$0xf]
        %v1332 = vld [vmem:[%s8 + $0x20] sm:$0xf]
        %v1333 = vld [vmem:[%s8 + $0x24] sm:$0xf]
        %v1334 = vld [vmem:[%s8 + $0x28] sm:$0xf]
        %v1335 = vld [vmem:[%s8 + $0x2c] sm:$0xf]
        %v1336 = vld [vmem:[%s8 + $0x30] sm:$0xf]
        %v1337 = vld [vmem:[%s8 + $0x34] sm:$0xf]
        %v1338 = vld [vmem:[%s8 + $0x38] sm:$0xf]
        %v1339 = vld [vmem:[%s8 + $0x3c] sm:$0xf]
        %v1356 = vunpack.c.l.b16 %v1324
        %v1357 = vunpack.c.l.b16 %v1325
        %v1358 = vunpack.c.l.b16 %v1326
        %v1359 = vunpack.c.l.b16 %v1327
        %v1360 = vunpack.c.l.b16 %v1328
        %v1361 = vunpack.c.l.b16 %v1329
        %v1362 = vunpack.c.l.b16 %v1330
        %v1363 = vunpack.c.l.b16 %v1331
        %v1364 = vunpack.c.l.b16 %v1332
        %v1365 = vunpack.c.l.b16 %v1333
        %v1366 = vunpack.c.l.b16 %v1334
        %v1367 = vunpack.c.l.b16 %v1335
        %v1368 = vunpack.c.l.b16 %v1336
        %v1369 = vunpack.c.l.b16 %v1337
        %v1370 = vunpack.c.l.b16 %v1338
        %v1371 = vunpack.c.l.b16 %v1339
        %v1372 = vpack.c.b16 %v1357, %v1356
        %v1373 = vpack.c.b16 %v1359, %v1358
        %v1374 = vpack.c.b16 %v1361, %v1360
        %v1375 = vpack.c.b16 %v1363, %v1362
        %v1376 = vpack.c.b16 %v1365, %v1364
        %v1377 = vpack.c.b16 %v1367, %v1366
        %v1378 = vpack.c.b16 %v1369, %v1368
        %v1379 = vpack.c.b16 %v1371, %v1370
        %1388 = vmatprep.subr.bf16.mxu0 0
        %1389 = vmatpush1.bf16.msra.mxu0 %v1372
        %1390 = vmatprep.subr.bf16.mxu0 0
        %1391 = vmatpush1.bf16.msra.mxu0 %v1373
        %1392 = vmatprep.subr.bf16.mxu0 0
        %1393 = vmatpush1.bf16.msra.mxu0 %v1374
        %1394 = vmatprep.subr.bf16.mxu0 0
        %1395 = vmatpush1.bf16.msra.mxu0 %v1375
        %1396 = vmatprep.subr.bf16.mxu0 0
        %1397 = vmatpush1.bf16.msra.mxu0 %v1376
        %1398 = vmatprep.subr.bf16.mxu0 0
        %1399 = vmatpush1.bf16.msra.mxu0 %v1377
        %1400 = vmatprep.subr.bf16.mxu0 0
        %1401 = vmatpush1.bf16.msra.mxu0 %v1378
        %1402 = vmatprep.subr.bf16.mxu0 0
        %1403 = vmatpush1.bf16.msra.mxu0 %v1379
        %1404 = vmatprep.subr.bf16.mxu0 0
        %1405 = vmatpush1.bf16.msra.mxu0 0
        %1406 = vmatprep.subr.bf16.mxu0 0
        %1407 = vmatpush1.bf16.msra.mxu0 0
        %1408 = vmatprep.subr.bf16.mxu0 0
        %1409 = vmatpush1.bf16.msra.mxu0 0
        %1410 = vmatprep.subr.bf16.mxu0 0
        %1411 = vmatpush1.bf16.msra.mxu0 0
        %1412 = vmatprep.subr.bf16.mxu0 0
        %1413 = vmatpush1.bf16.msra.mxu0 0
        %1414 = vmatprep.subr.bf16.mxu0 0
        %1415 = vmatpush1.bf16.msra.mxu0 0
        %1416 = vmatprep.subr.bf16.mxu0 0
        %1417 = vmatpush1.bf16.msra.mxu0 0
        %1418 = vmatprep.subr.bf16.mxu0 0
        %1419 = vmatpush1.bf16.msra.mxu0 0
        %1420 = vmatprep.mubr.bf16.mxu0 0
        %1421 = vmatmul.mubr.bf16.gmra.mrb[0].mxu0 %v1323
        %v1422 = vpop.f32.mrb[0].mxu0
        %v1423 = vadd.f32 0.0, %v1422
        %v1424 = vpop.f32.mrb[0].mxu0
        %v1425 = vpop.f32.mrb[0].mxu0
        %v1426 = vpop.f32.mrb[0].mxu0
        %1427 = vdwg.mxu0
        %v1428 = vadd.f32 %v1229, %v1423
        %1429 = vst.msk [vmem:[%s345] sm:$0xff] %vm357, %v1428
        %s1430 = sand.u32 %s241, 1
        %s1431 = scalar_lea.sflag [#allocation4], %s1430
        %s1432 = sand.u32 %s241, 1
        %s1433 = smul.addr %s1432, 8
        %s1434 = scalar_lea.vmem [#allocation3], %s1433
        // Predicated region
        $region85: #{tpu_custom_call.1} parent=55 // pred_check
          %p1435 = pneg %p251
        $region86: #{tpu_custom_call.1} parent=55 // pred_check_branch
          %1437 = sbr.rel (%p1435) target = $region88
        $region87: #{tpu_custom_call.1} parent=55 // pred_region
          %s1439 = ssub.s32 128, 128
          %1440 = vsyncadd %s1431, %s1439
          %s1441 = sadd.s32 %s28, %s27
          %s1442 = smul.addr %s1441, 128
          %s1443 = scalar_lea.hbm %s9, %s1442
          %s1445 = sshll.u32 %s1434, 4
          %s1446 = int_to_ptr.vmem [resolvable:$true] %s1445
          %1448 = dma.vmem_to_hbm [thread:$0]  %s1446, 128, %s1443, %s1431
        $region88: #{tpu_custom_call.1} parent=55 // pred_fallthru
          _
      $region56: #{tpu_custom_call.1} parent=5 // pred_fallthru
        _
      %p1449 = scmp.le.s32.totalorder 2, %s18
      // Predicated region
      $region89: #{tpu_custom_call.1} parent=5 // pred_check
        %p1450 = pneg %p1449
      $region90: #{tpu_custom_call.1} parent=5 // pred_check_branch
        %1452 = sbr.rel (%p1450) target = $region92
      $region91: #{tpu_custom_call.1} parent=5 // pred_region
        %s1453 = ssub.s32 %s18, 2
        // Predicated region
        $region93: #{tpu_custom_call.1} parent=91 // pred_check
          %p1454 = pneg %p257
        $region94: #{tpu_custom_call.1} parent=91 // pred_check_branch
          %1456 = sbr.rel (%p1454) target = $region96
        $region95: #{tpu_custom_call.1} parent=91 // pred_region
          %s1457 = sand.u32 %s242, 1
          %s1458 = scalar_lea.sflag [#allocation4], %s1457
          %s1459 = sand.u32 %s242, 1
          %s1460 = smul.addr %s1459, 8
          %s1461 = scalar_lea.vmem [#allocation3], %s1460
          %1462 = dma.done %s1458, 128
        $region96: #{tpu_custom_call.1} parent=91 // pred_fallthru
          _
      $region92: #{tpu_custom_call.1} parent=5 // pred_fallthru
        _
    $region6: #{tpu_custom_call.1} parent=1 // loop_footer
      %s22 = sadd.s32 1, %s18
    $region7: #{tpu_custom_call.1} parent=1 // loop_footer_branch
      %17 = sbr.rel target = $region3
    $region8: #{tpu_custom_call.1} parent=1 // loop_exit
      _
    %1463 = vsyncpa [#allocation4], 1
    %s1464 = scalar_lea.sflag [#allocation4], 1
    %1465 = vsyncpa %s1464, 1

</llo_original>
